<compile_context>
chip_gen: v7x
topology: tpu7x:2x2x1
jax: 0.10.0
libtpu: 0.0.40
codegen_flags: <defaults>
</compile_context>

<pallas_src>
import functools

import jax
import jax.numpy as jnp
from jax.experimental import pallas as pl
from jax.experimental.pallas import tpu as pltpu

BN_EPS = 1e-5
LANES = 128
_FUSED_BN_VMEM_BUDGET = 12 * 1024 * 1024   # conservative vs 32 MiB scoped default


def _round_up(x, m):
    return (x + m - 1) // m * m


def _pick_tile(m, cap):
    """Largest row tile t <= cap (multiple of 8) that evenly divides m."""
    for t in (2048, 1024, 512, 256, 128, 64, 32, 16, 8):
        if t <= cap and m % t == 0:
            return t
    return m  # fall back to a single full-extent block


# ---------------------------------------------------------------------------
# Pallas kernels
# ---------------------------------------------------------------------------

def _convbn_relu_fused_kernel(a_ref, w_ref, g_ref, bt_ref, o_ref, *, inv_m):
    """Single-block fused ConvT(matmul) + BatchNorm(train stats) + ReLU."""
    y = jnp.dot(a_ref[...], w_ref[...], preferred_element_type=jnp.float32)
    mean = jnp.sum(y, axis=0, keepdims=True) * inv_m            # (1, Np)
    var = jnp.maximum(
        jnp.sum(y * y, axis=0, keepdims=True) * inv_m - mean * mean, 0.0)
    scale = g_ref[...] * jax.lax.rsqrt(var + BN_EPS)            # (1, Np)
    shift = bt_ref[...] - mean * scale
    o_ref[...] = jnp.maximum(y * scale + shift, 0.0).astype(o_ref.dtype)


def pallas_convbn_relu_fused(A, W, gamma, beta):
    """Whole-layer fused path (M fits VMEM): returns bf16 (M, Np)."""
    M, K = A.shape
    _, CO = W.shape
    Np = _round_up(CO, LANES)
    W16 = jnp.pad(W, ((0, 0), (0, Np - CO))).astype(jnp.bfloat16)
    A16 = A.astype(jnp.bfloat16)
    g = jnp.pad(gamma, (0, Np - CO)).reshape(1, Np).astype(jnp.float32)
    bt = jnp.pad(beta, (0, Np - CO)).reshape(1, Np).astype(jnp.float32)
    kernel = functools.partial(_convbn_relu_fused_kernel, inv_m=1.0 / M)
    return pl.pallas_call(
        kernel,
        out_shape=jax.ShapeDtypeStruct((M, Np), jnp.bfloat16),
        grid_spec=pltpu.PrefetchScalarGridSpec(
            num_scalar_prefetch=0,
            grid=(1,),
            in_specs=[pl.BlockSpec((M, K), lambda i: (0, 0)),
                      pl.BlockSpec((K, Np), lambda i: (0, 0)),
                      pl.BlockSpec((1, Np), lambda i: (0, 0)),
                      pl.BlockSpec((1, Np), lambda i: (0, 0))],
            out_specs=pl.BlockSpec((M, Np), lambda i: (0, 0)),
        ),
        compiler_params=pltpu.CompilerParams(
            dimension_semantics=("arbitrary",)),
    )(A16, W16, g, bt)


def _mm_stats_kernel(a_ref, w_ref, y_ref, stats_ref):
    """Fallback pass 1: Y_block = A_block @ W + per-block channel stats."""
    y = jnp.dot(a_ref[...], w_ref[...], preferred_element_type=jnp.float32)
    y_ref[...] = y
    s = jnp.sum(y, axis=0, keepdims=True)          # (1, Np)
    sq = jnp.sum(y * y, axis=0, keepdims=True)     # (1, Np)
    row = jax.lax.broadcasted_iota(jnp.int32, stats_ref.shape, 0)
    stats_ref[...] = jnp.where(row == 0, s, 0.0) + jnp.where(row == 1, sq, 0.0)


def pallas_matmul_stats(A, W):
    """Fallback: (M,K) @ (K,CO->Np) with fused per-block BN partial stats."""
    M, K = A.shape
    _, CO = W.shape
    Np = _round_up(CO, LANES)
    W16 = jnp.pad(W, ((0, 0), (0, Np - CO))).astype(jnp.bfloat16)
    A16 = A.astype(jnp.bfloat16)
    tm = _pick_tile(M, 512)
    nblk = M // tm
    y, stats = pl.pallas_call(
        _mm_stats_kernel,
        out_shape=(jax.ShapeDtypeStruct((M, Np), jnp.float32),
                   jax.ShapeDtypeStruct((nblk * 8, Np), jnp.float32)),
        grid_spec=pltpu.PrefetchScalarGridSpec(
            num_scalar_prefetch=0,
            grid=(nblk,),
            in_specs=[pl.BlockSpec((tm, K), lambda i: (i, 0)),
                      pl.BlockSpec((K, Np), lambda i: (0, 0))],
            out_specs=(pl.BlockSpec((tm, Np), lambda i: (i, 0)),
                       pl.BlockSpec((8, Np), lambda i: (i, 0))),
        ),
        compiler_params=pltpu.CompilerParams(
            dimension_semantics=("parallel",)),
    )(A16, W16)
    stats = stats.reshape(nblk, 8, Np)
    return y, jnp.sum(stats[:, 0, :], axis=0), jnp.sum(stats[:, 1, :], axis=0)


def _affine_relu_kernel(y_ref, scale_ref, shift_ref, o_ref):
    z = y_ref[...] * scale_ref[...] + shift_ref[...]
    o_ref[...] = jnp.maximum(z, 0.0).astype(o_ref.dtype)


def pallas_affine_relu(Y, scale, shift):
    """Fallback pass 2: BN affine (precomputed scale/shift) + ReLU; bf16 out."""
    M, Np = Y.shape
    tm = _pick_tile(M, 2048)
    return pl.pallas_call(
        _affine_relu_kernel,
        out_shape=jax.ShapeDtypeStruct((M, Np), jnp.bfloat16),
        grid_spec=pltpu.PrefetchScalarGridSpec(
            num_scalar_prefetch=0,
            grid=(M // tm,),
            in_specs=[pl.BlockSpec((tm, Np), lambda i: (i, 0)),
                      pl.BlockSpec((1, Np), lambda i: (0, 0)),
                      pl.BlockSpec((1, Np), lambda i: (0, 0))],
            out_specs=pl.BlockSpec((tm, Np), lambda i: (i, 0)),
        ),
        compiler_params=pltpu.CompilerParams(
            dimension_semantics=("parallel",)),
    )(Y, scale.reshape(1, Np).astype(jnp.float32),
      shift.reshape(1, Np).astype(jnp.float32))


def _mm_bias_tanh_kernel(a_ref, w_ref, b_ref, o_ref):
    y = jnp.dot(a_ref[...], w_ref[...], preferred_element_type=jnp.float32)
    o_ref[...] = jnp.tanh(y + b_ref[...])


def pallas_matmul_bias_tanh(A, W, bias):
    """Final layer: (M,K) @ (K,CO) + bias with tanh fused in the epilogue."""
    M, K = A.shape
    _, CO = W.shape
    Np = _round_up(CO, LANES)
    W16 = jnp.pad(W, ((0, 0), (0, Np - CO))).astype(jnp.bfloat16)
    bp = jnp.pad(bias, (0, Np - CO)).reshape(1, Np).astype(jnp.float32)
    A16 = A.astype(jnp.bfloat16)
    tm = _pick_tile(M, 512)
    return pl.pallas_call(
        _mm_bias_tanh_kernel,
        out_shape=jax.ShapeDtypeStruct((M, Np), jnp.float32),
        grid_spec=pltpu.PrefetchScalarGridSpec(
            num_scalar_prefetch=0,
            grid=(M // tm,),
            in_specs=[pl.BlockSpec((tm, K), lambda i: (i, 0)),
                      pl.BlockSpec((K, Np), lambda i: (0, 0)),
                      pl.BlockSpec((1, Np), lambda i: (0, 0))],
            out_specs=pl.BlockSpec((tm, Np), lambda i: (i, 0)),
        ),
        compiler_params=pltpu.CompilerParams(
            dimension_semantics=("parallel",)),
    )(A16, W16, bp)


# ---------------------------------------------------------------------------
# Glue: ConvTranspose2d -> (merged zero-dilate + pad + im2col) matmul form
# ---------------------------------------------------------------------------

def _conv_transpose_as_matmul(x_nhwc, w_t, stride, pad, k):
    """Return (A[M, k*k*CI], Wm[k*k*CI, CO], OH) for the equivalent conv."""
    N, H, W_, CI = x_nhwc.shape
    CO = w_t.shape[1]
    p = k - 1 - pad
    Hd = H * stride - (stride - 1)
    Wd = W_ * stride - (stride - 1)
    # one scatter does dilation + padding together (no separate jnp.pad pass)
    xp = jnp.zeros((N, Hd + 2 * p, Wd + 2 * p, CI), x_nhwc.dtype)
    xp = xp.at[:, p:p + Hd:stride, p:p + Wd:stride, :].set(x_nhwc)
    OH = Hd + 2 * p - k + 1
    OW = Wd + 2 * p - k + 1
    patches = [xp[:, ky:ky + OH, kx:kx + OW, :]
               for ky in range(k) for kx in range(k)]
    A = jnp.stack(patches, axis=3).reshape(N * OH * OW, k * k * CI)
    # equivalent regular-conv weight = spatially flipped transposed weight
    w_flip = w_t[:, :, ::-1, ::-1]                       # (CI, CO, ky, kx)
    Wm = jnp.transpose(w_flip, (2, 3, 0, 1)).reshape(k * k * CI, CO)
    return A, Wm, OH


def _bn_relu_layer(A, Wm, gamma, beta):
    """Conv-as-matmul followed by training-mode BatchNorm + ReLU."""
    M, K = A.shape
    CO = Wm.shape[1]
    Np = _round_up(CO, LANES)
    est_bytes = M * K * 2 + K * Np * 2 + M * Np * (4 + 2) + 8 * Np * 4
    if est_bytes <= _FUSED_BN_VMEM_BUDGET:
        return pallas_convbn_relu_fused(A, Wm, gamma, beta)
    # Tiled fallback for large M: matmul + partial stats, finalize, affine+ReLU.
    Y, ssum, ssq = pallas_matmul_stats(A, Wm)
    mean = ssum / M
    var = jnp.maximum(ssq / M - mean * mean, 0.0)
    g = jnp.pad(gamma, (0, Np - CO))
    b = jnp.pad(beta, (0, Np - CO))
    scale = g * jax.lax.rsqrt(var + BN_EPS)
    shift = b - mean * scale
    return pallas_affine_relu(Y, scale, shift)


# ---------------------------------------------------------------------------
# Model
# ---------------------------------------------------------------------------

def init_params(key, z_dim, ngf, output_nc):
    cfgs = [
        (z_dim,   ngf * 4, 4),
        (ngf * 4, ngf * 2, 4),
        (ngf * 2, ngf,     4),
        (ngf,     output_nc, 4),
    ]
    params = {"w": [], "b": [], "gamma": [], "beta": []}
    for i, (ci, co, k) in enumerate(cfgs):
        key, k1, k2 = jax.random.split(key, 3)
        params["w"].append(0.05 * jax.random.normal(k1, (ci, co, k, k),
                                                    jnp.float32))
        # Bias exists in the reference module; for BN layers it is exactly
        # cancelled by batch-stats mean subtraction so only the last is used.
        params["b"].append(0.01 * jax.random.normal(k2, (co,), jnp.float32))
        if i < len(cfgs) - 1:
            params["gamma"].append(jnp.ones((co,), jnp.float32))
            params["beta"].append(jnp.zeros((co,), jnp.float32))
    return params


@jax.jit
def egan_generator_32_forward(z, params):
    """Equivalent of EGANGenerator_32.forward(model_input); returns NCHW."""
    z_dim = params["w"][0].shape[0]
    # PyTorch: model_input.view(-1, z_dim, 1, 1)  ->  NHWC (N, 1, 1, z_dim)
    # Activations travel in bf16 (MXU dtype); all accumulation is f32.
    x = z.reshape(-1, z_dim)[:, None, None, :].astype(jnp.bfloat16)
    N = x.shape[0]
    n_layers = len(params["w"])
    for li in range(n_layers):
        w = params["w"][li]                 # (CI, CO, k, k), PyTorch layout
        k = w.shape[2]
        CO = w.shape[1]
        stride = 1 if li == 0 else 2
        pad = 0 if li == 0 else 1

        A, Wm, OH = _conv_transpose_as_matmul(x, w, stride, pad, k)

        if li < n_layers - 1:
            # Conv bias omitted: with training-mode batch statistics the
            # following BatchNorm subtracts it back out exactly.
            Z = _bn_relu_layer(A, Wm, params["gamma"][li], params["beta"][li])
        else:
            Z = pallas_matmul_bias_tanh(A, Wm, params["b"][li])

        x = Z[:, :CO].reshape(N, OH, OH, CO)               # NHWC for next layer

    return jnp.transpose(x.astype(jnp.float32), (0, 3, 1, 2))   # back to NCHW


if __name__ == "__main__":
    z_dim, ngf, output_nc, batch = 16, 8, 3, 2
    key = jax.random.PRNGKey(0)
    kp, kz = jax.random.split(key)
    params = init_params(kp, z_dim, ngf, output_nc)
    z = jax.random.normal(kz, (batch, z_dim), jnp.float32)

    out = egan_generator_32_forward(z, params)
    out = jax.block_until_ready(out)

    # spatial: 1 -> 4 (k4,s1,p0) -> 8 -> 16 -> 32 (three k4,s2,p1 deconvs)
    assert out.shape == (batch, output_nc, 32, 32), out.shape
    assert bool(jnp.all(jnp.isfinite(out)))
    print("KERNEL_OK")
</pallas_src>

<mosaic_0001>
module attributes {stable_mosaic.version = 11 : i64} {
  func.func @_convbn_relu_fused_kernel(%arg0: i32, %arg1: memref<32x256xbf16, #tpu.memory_space<vmem>>, %arg2: memref<256x128xbf16, #tpu.memory_space<vmem>>, %arg3: memref<1x128xf32, #tpu.memory_space<vmem>>, %arg4: memref<1x128xf32, #tpu.memory_space<vmem>>, %arg5: memref<32x128xbf16, #tpu.memory_space<vmem>>) attributes {dimension_semantics = [#tpu.dimension_semantics<arbitrary>], iteration_bounds = array<i64: 1>, scalar_prefetch = 0 : i64, scratch_operands = 0 : i64, tpu.core_type = #tpu.core_type<tc>, window_params = [{pipeline_mode = #tpu.pipeline_mode<synchronous>, transform_indices = @transform_0, window_bounds = array<i64: 32, 256>}, {pipeline_mode = #tpu.pipeline_mode<synchronous>, transform_indices = @transform_1, window_bounds = array<i64: 256, 128>}, {pipeline_mode = #tpu.pipeline_mode<synchronous>, transform_indices = @transform_2, window_bounds = array<i64: 1, 128>}, {pipeline_mode = #tpu.pipeline_mode<synchronous>, transform_indices = @transform_3, window_bounds = array<i64: 1, 128>}, {pipeline_mode = #tpu.pipeline_mode<synchronous>, transform_indices = @transform_4, window_bounds = array<i64: 32, 128>}]} {
    %c0 = arith.constant 0 : index
    %c0_0 = arith.constant 0 : index
    %0 = vector.load %arg1[%c0, %c0_0] : memref<32x256xbf16, #tpu.memory_space<vmem>>, vector<32x256xbf16>
    %c0_1 = arith.constant 0 : index
    %c0_2 = arith.constant 0 : index
    %1 = vector.load %arg2[%c0_1, %c0_2] : memref<256x128xbf16, #tpu.memory_space<vmem>>, vector<256x128xbf16>
    %cst = arith.constant dense<0.000000e+00> : vector<32x128xf32>
    %2 = tpu.matmul %0, %1, %cst {dimension_numbers = #tpu.dot_dimension_numbers<[1], [0], [0], [1], [0, 0, 1, 1], [], []>} : vector<32x256xbf16>, vector<256x128xbf16>, vector<32x128xf32> -> vector<32x128xf32>
    %cst_3 = arith.constant dense<0.000000e+00> : vector<128xf32>
    %3 = vector.multi_reduction <add>, %2, %cst_3 [0] : vector<32x128xf32> to vector<128xf32>
    %4 = vector.shape_cast %3 : vector<128xf32> to vector<1x128xf32>
    %cst_4 = arith.constant 3.125000e-02 : f32
    %5 = vector.broadcast %cst_4 : f32 to vector<1x128xf32>
    %6 = arith.mulf %4, %5 : vector<1x128xf32>
    %7 = arith.mulf %2, %2 : vector<32x128xf32>
    %cst_5 = arith.constant dense<0.000000e+00> : vector<128xf32>
    %8 = vector.multi_reduction <add>, %7, %cst_5 [0] : vector<32x128xf32> to vector<128xf32>
    %9 = vector.shape_cast %8 : vector<128xf32> to vector<1x128xf32>
    %cst_6 = arith.constant 3.125000e-02 : f32
    %10 = vector.broadcast %cst_6 : f32 to vector<1x128xf32>
    %11 = arith.mulf %9, %10 : vector<1x128xf32>
    %12 = arith.mulf %6, %6 : vector<1x128xf32>
    %13 = arith.subf %11, %12 : vector<1x128xf32>
    %cst_7 = arith.constant 0.000000e+00 : f32
    %14 = vector.broadcast %cst_7 : f32 to vector<1x128xf32>
    %15 = arith.maximumf %13, %14 : vector<1x128xf32>
    %c0_8 = arith.constant 0 : index
    %c0_9 = arith.constant 0 : index
    %16 = vector.load %arg3[%c0_8, %c0_9] : memref<1x128xf32, #tpu.memory_space<vmem>>, vector<1x128xf32>
    %cst_10 = arith.constant 9.99999974E-6 : f32
    %17 = vector.broadcast %cst_10 : f32 to vector<1x128xf32>
    %18 = arith.addf %15, %17 : vector<1x128xf32>
    %19 = math.rsqrt %18 : vector<1x128xf32>
    %20 = arith.mulf %16, %19 : vector<1x128xf32>
    %c0_11 = arith.constant 0 : index
    %c0_12 = arith.constant 0 : index
    %21 = vector.load %arg4[%c0_11, %c0_12] : memref<1x128xf32, #tpu.memory_space<vmem>>, vector<1x128xf32>
    %22 = arith.mulf %6, %20 : vector<1x128xf32>
    %23 = arith.subf %21, %22 : vector<1x128xf32>
    %24 = vector.broadcast %20 : vector<1x128xf32> to vector<32x128xf32>
    %25 = arith.mulf %2, %24 : vector<32x128xf32>
    %26 = vector.broadcast %23 : vector<1x128xf32> to vector<32x128xf32>
    %27 = arith.addf %25, %26 : vector<32x128xf32>
    %cst_13 = arith.constant 0.000000e+00 : f32
    %28 = vector.broadcast %cst_13 : f32 to vector<32x128xf32>
    %29 = arith.maximumf %27, %28 : vector<32x128xf32>
    %30 = arith.truncf %29 : vector<32x128xf32> to vector<32x128xbf16>
    %c0_14 = arith.constant 0 : index
    %c0_15 = arith.constant 0 : index
    %31 = vector.load %arg5[%c0_14, %c0_15] : memref<32x128xbf16, #tpu.memory_space<vmem>>, vector<32x128xbf16>
    tpu.vector_store %arg5[%c0_14, %c0_15], %30 {strides = array<i32>} : memref<32x128xbf16, #tpu.memory_space<vmem>>, vector<32x128xbf16>,
    return
  }
  func.func @transform_0(%arg0: i32) -> (i32, i32) {
    %c0_i32 = arith.constant 0 : i32
    %c0_i32_0 = arith.constant 0 : i32
    %c0_i32_1 = arith.constant 0 : i32
    return %c0_i32, %c0_i32_0 : i32, i32
  }
  func.func @transform_1(%arg0: i32) -> (i32, i32) {
    %c0_i32 = arith.constant 0 : i32
    %c0_i32_0 = arith.constant 0 : i32
    %c0_i32_1 = arith.constant 0 : i32
    return %c0_i32, %c0_i32_0 : i32, i32
  }
  func.func @transform_2(%arg0: i32) -> (i32, i32) {
    %c0_i32 = arith.constant 0 : i32
    %c0_i32_0 = arith.constant 0 : i32
    %c0_i32_1 = arith.constant 0 : i32
    return %c0_i32, %c0_i32_0 : i32, i32
  }
  func.func @transform_3(%arg0: i32) -> (i32, i32) {
    %c0_i32 = arith.constant 0 : i32
    %c0_i32_0 = arith.constant 0 : i32
    %c0_i32_1 = arith.constant 0 : i32
    return %c0_i32, %c0_i32_0 : i32, i32
  }
  func.func @transform_4(%arg0: i32) -> (i32, i32) {
    %c0_i32 = arith.constant 0 : i32
    %c0_i32_0 = arith.constant 0 : i32
    %c0_i32_1 = arith.constant 0 : i32
    return %c0_i32, %c0_i32_0 : i32, i32
  }
}

module attributes {stable_mosaic.version = 11 : i64} {
  func.func @_convbn_relu_fused_kernel(%arg0: i32, %arg1: memref<128x512xbf16, #tpu.memory_space<vmem>>, %arg2: memref<512x128xbf16, #tpu.memory_space<vmem>>, %arg3: memref<1x128xf32, #tpu.memory_space<vmem>>, %arg4: memref<1x128xf32, #tpu.memory_space<vmem>>, %arg5: memref<128x128xbf16, #tpu.memory_space<vmem>>) attributes {dimension_semantics = [#tpu.dimension_semantics<arbitrary>], iteration_bounds = array<i64: 1>, scalar_prefetch = 0 : i64, scratch_operands = 0 : i64, tpu.core_type = #tpu.core_type<tc>, window_params = [{pipeline_mode = #tpu.pipeline_mode<synchronous>, transform_indices = @transform_0, window_bounds = array<i64: 128, 512>}, {pipeline_mode = #tpu.pipeline_mode<synchronous>, transform_indices = @transform_1, window_bounds = array<i64: 512, 128>}, {pipeline_mode = #tpu.pipeline_mode<synchronous>, transform_indices = @transform_2, window_bounds = array<i64: 1, 128>}, {pipeline_mode = #tpu.pipeline_mode<synchronous>, transform_indices = @transform_3, window_bounds = array<i64: 1, 128>}, {pipeline_mode = #tpu.pipeline_mode<synchronous>, transform_indices = @transform_4, window_bounds = array<i64: 128, 128>}]} {
    %c0 = arith.constant 0 : index
    %c0_0 = arith.constant 0 : index
    %0 = vector.load %arg1[%c0, %c0_0] : memref<128x512xbf16, #tpu.memory_space<vmem>>, vector<128x512xbf16>
    %c0_1 = arith.constant 0 : index
    %c0_2 = arith.constant 0 : index
    %1 = vector.load %arg2[%c0_1, %c0_2] : memref<512x128xbf16, #tpu.memory_space<vmem>>, vector<512x128xbf16>
    %cst = arith.constant dense<0.000000e+00> : vector<128x128xf32>
    %2 = tpu.matmul %0, %1, %cst {dimension_numbers = #tpu.dot_dimension_numbers<[1], [0], [0], [1], [0, 0, 1, 1], [], []>} : vector<128x512xbf16>, vector<512x128xbf16>, vector<128x128xf32> -> vector<128x128xf32>
    %cst_3 = arith.constant dense<0.000000e+00> : vector<128xf32>
    %3 = vector.multi_reduction <add>, %2, %cst_3 [0] : vector<128x128xf32> to vector<128xf32>
    %4 = vector.shape_cast %3 : vector<128xf32> to vector<1x128xf32>
    %cst_4 = arith.constant 7.812500e-03 : f32
    %5 = vector.broadcast %cst_4 : f32 to vector<1x128xf32>
    %6 = arith.mulf %4, %5 : vector<1x128xf32>
    %7 = arith.mulf %2, %2 : vector<128x128xf32>
    %cst_5 = arith.constant dense<0.000000e+00> : vector<128xf32>
    %8 = vector.multi_reduction <add>, %7, %cst_5 [0] : vector<128x128xf32> to vector<128xf32>
    %9 = vector.shape_cast %8 : vector<128xf32> to vector<1x128xf32>
    %cst_6 = arith.constant 7.812500e-03 : f32
    %10 = vector.broadcast %cst_6 : f32 to vector<1x128xf32>
    %11 = arith.mulf %9, %10 : vector<1x128xf32>
    %12 = arith.mulf %6, %6 : vector<1x128xf32>
    %13 = arith.subf %11, %12 : vector<1x128xf32>
    %cst_7 = arith.constant 0.000000e+00 : f32
    %14 = vector.broadcast %cst_7 : f32 to vector<1x128xf32>
    %15 = arith.maximumf %13, %14 : vector<1x128xf32>
    %c0_8 = arith.constant 0 : index
    %c0_9 = arith.constant 0 : index
    %16 = vector.load %arg3[%c0_8, %c0_9] : memref<1x128xf32, #tpu.memory_space<vmem>>, vector<1x128xf32>
    %cst_10 = arith.constant 9.99999974E-6 : f32
    %17 = vector.broadcast %cst_10 : f32 to vector<1x128xf32>
    %18 = arith.addf %15, %17 : vector<1x128xf32>
    %19 = math.rsqrt %18 : vector<1x128xf32>
    %20 = arith.mulf %16, %19 : vector<1x128xf32>
    %c0_11 = arith.constant 0 : index
    %c0_12 = arith.constant 0 : index
    %21 = vector.load %arg4[%c0_11, %c0_12] : memref<1x128xf32, #tpu.memory_space<vmem>>, vector<1x128xf32>
    %22 = arith.mulf %6, %20 : vector<1x128xf32>
    %23 = arith.subf %21, %22 : vector<1x128xf32>
    %24 = vector.broadcast %20 : vector<1x128xf32> to vector<128x128xf32>
    %25 = arith.mulf %2, %24 : vector<128x128xf32>
    %26 = vector.broadcast %23 : vector<1x128xf32> to vector<128x128xf32>
    %27 = arith.addf %25, %26 : vector<128x128xf32>
    %cst_13 = arith.constant 0.000000e+00 : f32
    %28 = vector.broadcast %cst_13 : f32 to vector<128x128xf32>
    %29 = arith.maximumf %27, %28 : vector<128x128xf32>
    %30 = arith.truncf %29 : vector<128x128xf32> to vector<128x128xbf16>
    %c0_14 = arith.constant 0 : index
    %c0_15 = arith.constant 0 : index
    %31 = vector.load %arg5[%c0_14, %c0_15] : memref<128x128xbf16, #tpu.memory_space<vmem>>, vector<128x128xbf16>
    tpu.vector_store %arg5[%c0_14, %c0_15], %30 {strides = array<i32>} : memref<128x128xbf16, #tpu.memory_space<vmem>>, vector<128x128xbf16>,
    return
  }
  func.func @transform_0(%arg0: i32) -> (i32, i32) {
    %c0_i32 = arith.constant 0 : i32
    %c0_i32_0 = arith.constant 0 : i32
    %c0_i32_1 = arith.constant 0 : i32
    return %c0_i32, %c0_i32_0 : i32, i32
  }
  func.func @transform_1(%arg0: i32) -> (i32, i32) {
    %c0_i32 = arith.constant 0 : i32
    %c0_i32_0 = arith.constant 0 : i32
    %c0_i32_1 = arith.constant 0 : i32
    return %c0_i32, %c0_i32_0 : i32, i32
  }
  func.func @transform_2(%arg0: i32) -> (i32, i32) {
    %c0_i32 = arith.constant 0 : i32
    %c0_i32_0 = arith.constant 0 : i32
    %c0_i32_1 = arith.constant 0 : i32
    return %c0_i32, %c0_i32_0 : i32, i32
  }
  func.func @transform_3(%arg0: i32) -> (i32, i32) {
    %c0_i32 = arith.constant 0 : i32
    %c0_i32_0 = arith.constant 0 : i32
    %c0_i32_1 = arith.constant 0 : i32
    return %c0_i32, %c0_i32_0 : i32, i32
  }
  func.func @transform_4(%arg0: i32) -> (i32, i32) {
    %c0_i32 = arith.constant 0 : i32
    %c0_i32_0 = arith.constant 0 : i32
    %c0_i32_1 = arith.constant 0 : i32
    return %c0_i32, %c0_i32_0 : i32, i32
  }
}

module attributes {stable_mosaic.version = 11 : i64} {
  func.func @_convbn_relu_fused_kernel(%arg0: i32, %arg1: memref<512x256xbf16, #tpu.memory_space<vmem>>, %arg2: memref<256x128xbf16, #tpu.memory_space<vmem>>, %arg3: memref<1x128xf32, #tpu.memory_space<vmem>>, %arg4: memref<1x128xf32, #tpu.memory_space<vmem>>, %arg5: memref<512x128xbf16, #tpu.memory_space<vmem>>) attributes {dimension_semantics = [#tpu.dimension_semantics<arbitrary>], iteration_bounds = array<i64: 1>, scalar_prefetch = 0 : i64, scratch_operands = 0 : i64, tpu.core_type = #tpu.core_type<tc>, window_params = [{pipeline_mode = #tpu.pipeline_mode<synchronous>, transform_indices = @transform_0, window_bounds = array<i64: 512, 256>}, {pipeline_mode = #tpu.pipeline_mode<synchronous>, transform_indices = @transform_1, window_bounds = array<i64: 256, 128>}, {pipeline_mode = #tpu.pipeline_mode<synchronous>, transform_indices = @transform_2, window_bounds = array<i64: 1, 128>}, {pipeline_mode = #tpu.pipeline_mode<synchronous>, transform_indices = @transform_3, window_bounds = array<i64: 1, 128>}, {pipeline_mode = #tpu.pipeline_mode<synchronous>, transform_indices = @transform_4, window_bounds = array<i64: 512, 128>}]} {
    %c0 = arith.constant 0 : index
    %c0_0 = arith.constant 0 : index
    %0 = vector.load %arg1[%c0, %c0_0] : memref<512x256xbf16, #tpu.memory_space<vmem>>, vector<512x256xbf16>
    %c0_1 = arith.constant 0 : index
    %c0_2 = arith.constant 0 : index
    %1 = vector.load %arg2[%c0_1, %c0_2] : memref<256x128xbf16, #tpu.memory_space<vmem>>, vector<256x128xbf16>
    %cst = arith.constant dense<0.000000e+00> : vector<512x128xf32>
    %2 = tpu.matmul %0, %1, %cst {dimension_numbers = #tpu.dot_dimension_numbers<[1], [0], [0], [1], [0, 0, 1, 1], [], []>} : vector<512x256xbf16>, vector<256x128xbf16>, vector<512x128xf32> -> vector<512x128xf32>
    %cst_3 = arith.constant dense<0.000000e+00> : vector<128xf32>
    %3 = vector.multi_reduction <add>, %2, %cst_3 [0] : vector<512x128xf32> to vector<128xf32>
    %4 = vector.shape_cast %3 : vector<128xf32> to vector<1x128xf32>
    %cst_4 = arith.constant 0.001953125 : f32
    %5 = vector.broadcast %cst_4 : f32 to vector<1x128xf32>
    %6 = arith.mulf %4, %5 : vector<1x128xf32>
    %7 = arith.mulf %2, %2 : vector<512x128xf32>
    %cst_5 = arith.constant dense<0.000000e+00> : vector<128xf32>
    %8 = vector.multi_reduction <add>, %7, %cst_5 [0] : vector<512x128xf32> to vector<128xf32>
    %9 = vector.shape_cast %8 : vector<128xf32> to vector<1x128xf32>
    %cst_6 = arith.constant 0.001953125 : f32
    %10 = vector.broadcast %cst_6 : f32 to vector<1x128xf32>
    %11 = arith.mulf %9, %10 : vector<1x128xf32>
    %12 = arith.mulf %6, %6 : vector<1x128xf32>
    %13 = arith.subf %11, %12 : vector<1x128xf32>
    %cst_7 = arith.constant 0.000000e+00 : f32
    %14 = vector.broadcast %cst_7 : f32 to vector<1x128xf32>
    %15 = arith.maximumf %13, %14 : vector<1x128xf32>
    %c0_8 = arith.constant 0 : index
    %c0_9 = arith.constant 0 : index
    %16 = vector.load %arg3[%c0_8, %c0_9] : memref<1x128xf32, #tpu.memory_space<vmem>>, vector<1x128xf32>
    %cst_10 = arith.constant 9.99999974E-6 : f32
    %17 = vector.broadcast %cst_10 : f32 to vector<1x128xf32>
    %18 = arith.addf %15, %17 : vector<1x128xf32>
    %19 = math.rsqrt %18 : vector<1x128xf32>
    %20 = arith.mulf %16, %19 : vector<1x128xf32>
    %c0_11 = arith.constant 0 : index
    %c0_12 = arith.constant 0 : index
    %21 = vector.load %arg4[%c0_11, %c0_12] : memref<1x128xf32, #tpu.memory_space<vmem>>, vector<1x128xf32>
    %22 = arith.mulf %6, %20 : vector<1x128xf32>
    %23 = arith.subf %21, %22 : vector<1x128xf32>
    %24 = vector.broadcast %20 : vector<1x128xf32> to vector<512x128xf32>
    %25 = arith.mulf %2, %24 : vector<512x128xf32>
    %26 = vector.broadcast %23 : vector<1x128xf32> to vector<512x128xf32>
    %27 = arith.addf %25, %26 : vector<512x128xf32>
    %cst_13 = arith.constant 0.000000e+00 : f32
    %28 = vector.broadcast %cst_13 : f32 to vector<512x128xf32>
    %29 = arith.maximumf %27, %28 : vector<512x128xf32>
    %30 = arith.truncf %29 : vector<512x128xf32> to vector<512x128xbf16>
    %c0_14 = arith.constant 0 : index
    %c0_15 = arith.constant 0 : index
    %31 = vector.load %arg5[%c0_14, %c0_15] : memref<512x128xbf16, #tpu.memory_space<vmem>>, vector<512x128xbf16>
    tpu.vector_store %arg5[%c0_14, %c0_15], %30 {strides = array<i32>} : memref<512x128xbf16, #tpu.memory_space<vmem>>, vector<512x128xbf16>,
    return
  }
  func.func @transform_0(%arg0: i32) -> (i32, i32) {
    %c0_i32 = arith.constant 0 : i32
    %c0_i32_0 = arith.constant 0 : i32
    %c0_i32_1 = arith.constant 0 : i32
    return %c0_i32, %c0_i32_0 : i32, i32
  }
  func.func @transform_1(%arg0: i32) -> (i32, i32) {
    %c0_i32 = arith.constant 0 : i32
    %c0_i32_0 = arith.constant 0 : i32
    %c0_i32_1 = arith.constant 0 : i32
    return %c0_i32, %c0_i32_0 : i32, i32
  }
  func.func @transform_2(%arg0: i32) -> (i32, i32) {
    %c0_i32 = arith.constant 0 : i32
    %c0_i32_0 = arith.constant 0 : i32
    %c0_i32_1 = arith.constant 0 : i32
    return %c0_i32, %c0_i32_0 : i32, i32
  }
  func.func @transform_3(%arg0: i32) -> (i32, i32) {
    %c0_i32 = arith.constant 0 : i32
    %c0_i32_0 = arith.constant 0 : i32
    %c0_i32_1 = arith.constant 0 : i32
    return %c0_i32, %c0_i32_0 : i32, i32
  }
  func.func @transform_4(%arg0: i32) -> (i32, i32) {
    %c0_i32 = arith.constant 0 : i32
    %c0_i32_0 = arith.constant 0 : i32
    %c0_i32_1 = arith.constant 0 : i32
    return %c0_i32, %c0_i32_0 : i32, i32
  }
}

module attributes {stable_mosaic.version = 11 : i64} {
  func.func @_mm_bias_tanh_kernel(%arg0: i32, %arg1: memref<512x128xbf16, #tpu.memory_space<vmem>>, %arg2: memref<128x128xbf16, #tpu.memory_space<vmem>>, %arg3: memref<1x128xf32, #tpu.memory_space<vmem>>, %arg4: memref<512x128xf32, #tpu.memory_space<vmem>>) attributes {dimension_semantics = [#tpu.dimension_semantics<parallel>], iteration_bounds = array<i64: 4>, scalar_prefetch = 0 : i64, scratch_operands = 0 : i64, tpu.core_type = #tpu.core_type<tc>, window_params = [{transform_indices = @transform_0, window_bounds = array<i64: 512, 128>}, {pipeline_mode = #tpu.pipeline_mode<synchronous>, transform_indices = @transform_1, window_bounds = array<i64: 128, 128>}, {pipeline_mode = #tpu.pipeline_mode<synchronous>, transform_indices = @transform_2, window_bounds = array<i64: 1, 128>}, {transform_indices = @transform_3, window_bounds = array<i64: 512, 128>}]} {
    %c0 = arith.constant 0 : index
    %c0_0 = arith.constant 0 : index
    %0 = vector.load %arg1[%c0, %c0_0] : memref<512x128xbf16, #tpu.memory_space<vmem>>, vector<512x128xbf16>
    %c0_1 = arith.constant 0 : index
    %c0_2 = arith.constant 0 : index
    %1 = vector.load %arg2[%c0_1, %c0_2] : memref<128x128xbf16, #tpu.memory_space<vmem>>, vector<128x128xbf16>
    %cst = arith.constant dense<0.000000e+00> : vector<512x128xf32>
    %2 = tpu.matmul %0, %1, %cst {dimension_numbers = #tpu.dot_dimension_numbers<[1], [0], [0], [1], [0, 0, 1, 1], [], []>} : vector<512x128xbf16>, vector<128x128xbf16>, vector<512x128xf32> -> vector<512x128xf32>
    %c0_3 = arith.constant 0 : index
    %c0_4 = arith.constant 0 : index
    %3 = vector.load %arg3[%c0_3, %c0_4] : memref<1x128xf32, #tpu.memory_space<vmem>>, vector<1x128xf32>
    %4 = vector.broadcast %3 : vector<1x128xf32> to vector<512x128xf32>
    %5 = arith.addf %2, %4 : vector<512x128xf32>
    %6 = math.tanh %5 : vector<512x128xf32>
    %c0_5 = arith.constant 0 : index
    %c0_6 = arith.constant 0 : index
    %7 = vector.load %arg4[%c0_5, %c0_6] : memref<512x128xf32, #tpu.memory_space<vmem>>, vector<512x128xf32>
    tpu.vector_store %arg4[%c0_5, %c0_6], %6 {strides = array<i32>} : memref<512x128xf32, #tpu.memory_space<vmem>>, vector<512x128xf32>,
    return
  }
  func.func @transform_0(%arg0: i32) -> (i32, i32) {
    %c0_i32 = arith.constant 0 : i32
    %c0_i32_0 = arith.constant 0 : i32
    return %arg0, %c0_i32 : i32, i32
  }
  func.func @transform_1(%arg0: i32) -> (i32, i32) {
    %c0_i32 = arith.constant 0 : i32
    %c0_i32_0 = arith.constant 0 : i32
    %c0_i32_1 = arith.constant 0 : i32
    return %c0_i32, %c0_i32_0 : i32, i32
  }
  func.func @transform_2(%arg0: i32) -> (i32, i32) {
    %c0_i32 = arith.constant 0 : i32
    %c0_i32_0 = arith.constant 0 : i32
    %c0_i32_1 = arith.constant 0 : i32
    return %c0_i32, %c0_i32_0 : i32, i32
  }
  func.func @transform_3(%arg0: i32) -> (i32, i32) {
    %c0_i32 = arith.constant 0 : i32
    %c0_i32_0 = arith.constant 0 : i32
    return %arg0, %c0_i32 : i32, i32
  }
}

</mosaic_0001>

<llo_original>
// kernel: egan_generator_32_forward.4
$region0: #{egan_generator_32_forward.4}
  #allocation0 [shape = 'u32[]', space=smem, size = 0x4, offset = 0x4, fixed_abs, tag = 'smem constant byte address 0x4 - core index']
  #allocation1 [shape = 'u32[144,128]{1,0:T(1,128)}', space=vmem, size = 0x12000, scoped, tag = 'internal scratch']
  %s0 = inlined_call_operand.vmem [shape: bf16[32,256], index: 0, kind: input, shape index: {}]
  %s1 = inlined_call_operand.vmem [shape: bf16[256,128], index: 1, kind: input, shape index: {}]
  %s2 = inlined_call_operand.vmem [shape: f32[1,128], index: 2, kind: input, shape index: {}]
  %s3 = inlined_call_operand.vmem [shape: f32[1,128], index: 3, kind: input, shape index: {}]
  %s4 = inlined_call_operand.vmem [shape: bf16[32,128], index: 4, kind: output, shape index: {}]
  %s5 = sld [smem:[#allocation0]]
  $region26: #{egan_generator_32_forward.4} parent=0
    _
  %s7 = ssub.s32 1, %s5
  %s8 = scalar_select 0, %s7, %s5
  // Predicated region
  $region2: #{egan_generator_32_forward.4} parent=0 // pred_check
    _
  $region3: #{egan_generator_32_forward.4} parent=0 // pred_check_branch
    %10 = sbr.rel (0) target = $region5
  $region4: #{egan_generator_32_forward.4} parent=0 // pred_region
    _
  $region5: #{egan_generator_32_forward.4} parent=0 // pred_fallthru
    _
  // Predicated region
  $region6: #{egan_generator_32_forward.4} parent=0 // pred_check
    _
  $region7: #{egan_generator_32_forward.4} parent=0 // pred_check_branch
    %12 = sbr.rel (0) target = $region9
  $region8: #{egan_generator_32_forward.4} parent=0 // pred_region
    _
  $region9: #{egan_generator_32_forward.4} parent=0 // pred_fallthru
    _
  // Predicated region
  $region10: #{egan_generator_32_forward.4} parent=0 // pred_check
    _
  $region11: #{egan_generator_32_forward.4} parent=0 // pred_check_branch
    %14 = sbr.rel (0) target = $region13
  $region12: #{egan_generator_32_forward.4} parent=0 // pred_region
    _
  $region13: #{egan_generator_32_forward.4} parent=0 // pred_fallthru
    _
  // Predicated region
  $region14: #{egan_generator_32_forward.4} parent=0 // pred_check
    _
  $region15: #{egan_generator_32_forward.4} parent=0 // pred_check_branch
    %16 = sbr.rel (0) target = $region17
  $region16: #{egan_generator_32_forward.4} parent=0 // pred_region
    _
  $region17: #{egan_generator_32_forward.4} parent=0 // pred_fallthru
    _
  %v18 = vld [vmem:[%s0] sm:$0xff]
  %v19 = vld [vmem:[%s0 + $0x8] sm:$0xff]
  %v20 = vld [vmem:[%s0 + $0x10] sm:$0xff]
  %v21 = vld [vmem:[%s0 + $0x18] sm:$0xff]
  %v22 = vld [vmem:[%s1] sm:$0xf]
  %v23 = vld [vmem:[%s1 + $0x4] sm:$0xf]
  %v24 = vld [vmem:[%s1 + $0x8] sm:$0xf]
  %v25 = vld [vmem:[%s1 + $0xc] sm:$0xf]
  %v26 = vld [vmem:[%s1 + $0x10] sm:$0xf]
  %v27 = vld [vmem:[%s1 + $0x14] sm:$0xf]
  %v28 = vld [vmem:[%s1 + $0x18] sm:$0xf]
  %v29 = vld [vmem:[%s1 + $0x1c] sm:$0xf]
  %v30 = vld [vmem:[%s1 + $0x20] sm:$0xf]
  %v31 = vld [vmem:[%s1 + $0x24] sm:$0xf]
  %v32 = vld [vmem:[%s1 + $0x28] sm:$0xf]
  %v33 = vld [vmem:[%s1 + $0x2c] sm:$0xf]
  %v34 = vld [vmem:[%s1 + $0x30] sm:$0xf]
  %v35 = vld [vmem:[%s1 + $0x34] sm:$0xf]
  %v36 = vld [vmem:[%s1 + $0x38] sm:$0xf]
  %v37 = vld [vmem:[%s1 + $0x3c] sm:$0xf]
  %v38 = vld [vmem:[%s1 + $0x40] sm:$0xf]
  %v39 = vld [vmem:[%s1 + $0x44] sm:$0xf]
  %v40 = vld [vmem:[%s1 + $0x48] sm:$0xf]
  %v41 = vld [vmem:[%s1 + $0x4c] sm:$0xf]
  %v42 = vld [vmem:[%s1 + $0x50] sm:$0xf]
  %v43 = vld [vmem:[%s1 + $0x54] sm:$0xf]
  %v44 = vld [vmem:[%s1 + $0x58] sm:$0xf]
  %v45 = vld [vmem:[%s1 + $0x5c] sm:$0xf]
  %v46 = vld [vmem:[%s1 + $0x60] sm:$0xf]
  %v47 = vld [vmem:[%s1 + $0x64] sm:$0xf]
  %v48 = vld [vmem:[%s1 + $0x68] sm:$0xf]
  %v49 = vld [vmem:[%s1 + $0x6c] sm:$0xf]
  %v50 = vld [vmem:[%s1 + $0x70] sm:$0xf]
  %v51 = vld [vmem:[%s1 + $0x74] sm:$0xf]
  %v52 = vld [vmem:[%s1 + $0x78] sm:$0xf]
  %v53 = vld [vmem:[%s1 + $0x7c] sm:$0xf]
  %v58 = vunpack.c.l.b16 %v18
  %v59 = vunpack.c.h.b16 %v18
  %v60 = vunpack.c.l.b16 %v19
  %v61 = vunpack.c.h.b16 %v19
  %v62 = vunpack.c.l.b16 %v20
  %v63 = vunpack.c.h.b16 %v20
  %v64 = vunpack.c.l.b16 %v21
  %v65 = vunpack.c.h.b16 %v21
  %v66 = vpack.c.b16 %v60, %v58
  %v67 = vpack.c.b16 %v61, %v59
  %v68 = vpack.c.b16 %v64, %v62
  %v69 = vpack.c.b16 %v65, %v63
  %v106 = vunpack.c.l.b16 %v22
  %v107 = vunpack.c.l.b16 %v23
  %v108 = vunpack.c.l.b16 %v24
  %v109 = vunpack.c.l.b16 %v25
  %v110 = vunpack.c.l.b16 %v26
  %v111 = vunpack.c.l.b16 %v27
  %v112 = vunpack.c.l.b16 %v28
  %v113 = vunpack.c.l.b16 %v29
  %v114 = vunpack.c.l.b16 %v30
  %v115 = vunpack.c.l.b16 %v31
  %v116 = vunpack.c.l.b16 %v32
  %v117 = vunpack.c.l.b16 %v33
  %v118 = vunpack.c.l.b16 %v34
  %v119 = vunpack.c.l.b16 %v35
  %v120 = vunpack.c.l.b16 %v36
  %v121 = vunpack.c.l.b16 %v37
  %v122 = vunpack.c.l.b16 %v38
  %v123 = vunpack.c.l.b16 %v39
  %v124 = vunpack.c.l.b16 %v40
  %v125 = vunpack.c.l.b16 %v41
  %v126 = vunpack.c.l.b16 %v42
  %v127 = vunpack.c.l.b16 %v43
  %v128 = vunpack.c.l.b16 %v44
  %v129 = vunpack.c.l.b16 %v45
  %v130 = vunpack.c.l.b16 %v46
  %v131 = vunpack.c.l.b16 %v47
  %v132 = vunpack.c.l.b16 %v48
  %v133 = vunpack.c.l.b16 %v49
  %v134 = vunpack.c.l.b16 %v50
  %v135 = vunpack.c.l.b16 %v51
  %v136 = vunpack.c.l.b16 %v52
  %v137 = vunpack.c.l.b16 %v53
  %v138 = vpack.c.b16 %v107, %v106
  %v139 = vpack.c.b16 %v109, %v108
  %v140 = vpack.c.b16 %v111, %v110
  %v141 = vpack.c.b16 %v113, %v112
  %v142 = vpack.c.b16 %v115, %v114
  %v143 = vpack.c.b16 %v117, %v116
  %v144 = vpack.c.b16 %v119, %v118
  %v145 = vpack.c.b16 %v121, %v120
  %v146 = vpack.c.b16 %v123, %v122
  %v147 = vpack.c.b16 %v125, %v124
  %v148 = vpack.c.b16 %v127, %v126
  %v149 = vpack.c.b16 %v129, %v128
  %v150 = vpack.c.b16 %v131, %v130
  %v151 = vpack.c.b16 %v133, %v132
  %v152 = vpack.c.b16 %v135, %v134
  %v153 = vpack.c.b16 %v137, %v136
  %170 = vmatprep.subr.bf16.mxu0 0
  %171 = vmatpush1.bf16.msra.mxu0 %v138
  %172 = vmatprep.subr.bf16.mxu0 0
  %173 = vmatpush1.bf16.msra.mxu0 %v139
  %174 = vmatprep.subr.bf16.mxu0 0
  %175 = vmatpush1.bf16.msra.mxu0 %v140
  %176 = vmatprep.subr.bf16.mxu0 0
  %177 = vmatpush1.bf16.msra.mxu0 %v141
  %178 = vmatprep.subr.bf16.mxu0 0
  %179 = vmatpush1.bf16.msra.mxu0 %v142
  %180 = vmatprep.subr.bf16.mxu0 0
  %181 = vmatpush1.bf16.msra.mxu0 %v143
  %182 = vmatprep.subr.bf16.mxu0 0
  %183 = vmatpush1.bf16.msra.mxu0 %v144
  %184 = vmatprep.subr.bf16.mxu0 0
  %185 = vmatpush1.bf16.msra.mxu0 %v145
  %186 = vmatprep.subr.bf16.mxu0 0
  %187 = vmatpush1.bf16.msra.mxu0 %v146
  %188 = vmatprep.subr.bf16.mxu0 0
  %189 = vmatpush1.bf16.msra.mxu0 %v147
  %190 = vmatprep.subr.bf16.mxu0 0
  %191 = vmatpush1.bf16.msra.mxu0 %v148
  %192 = vmatprep.subr.bf16.mxu0 0
  %193 = vmatpush1.bf16.msra.mxu0 %v149
  %194 = vmatprep.subr.bf16.mxu0 0
  %195 = vmatpush1.bf16.msra.mxu0 %v150
  %196 = vmatprep.subr.bf16.mxu0 0
  %197 = vmatpush1.bf16.msra.mxu0 %v151
  %198 = vmatprep.subr.bf16.mxu0 0
  %199 = vmatpush1.bf16.msra.mxu0 %v152
  %200 = vmatprep.subr.bf16.mxu0 0
  %201 = vmatpush1.bf16.msra.mxu0 %v153
  %202 = vmatprep.mubr.bf16.mxu0 %v67
  %203 = vmatmul.mubr.bf16.gmra.mrb[0].mxu0 %v66
  %v204 = vpop.f32.mrb[0].mxu0
  %v205 = vadd.f32 0.0, %v204
  %v206 = vpop.f32.mrb[0].mxu0
  %v207 = vpop.f32.mrb[0].mxu0
  %v208 = vadd.f32 0.0, %v207
  %v209 = vpop.f32.mrb[0].mxu0
  %210 = vmatprep.mubr.bf16.mxu0 %v69
  %211 = vmatmul.mubr.bf16.gmra.mrb[0].mxu0 %v68
  %v212 = vpop.f32.mrb[0].mxu0
  %v213 = vadd.f32 0.0, %v212
  %v214 = vpop.f32.mrb[0].mxu0
  %v215 = vpop.f32.mrb[0].mxu0
  %v216 = vadd.f32 0.0, %v215
  %v217 = vpop.f32.mrb[0].mxu0
  %218 = vdwg.mxu0
  %v219 = vadd.f32 %v205, %v208
  %v220 = vadd.f32 %v219, %v213
  %v221 = vadd.f32 %v220, %v216
  %v222 = vrot.slane %v221, 4
  %v223 = vadd.f32 %v221, %v222
  %v224 = vrot.slane %v223, 2
  %v225 = vadd.f32 %v223, %v224
  %v226 = vrot.slane %v225, 1
  %v227 = vadd.f32 %v225, %v226
  %v228 = vmul.f32 %v227, 0.03125
  %v229 = vmul.f32 %v205, %v205
  %v230 = vmul.f32 %v208, %v208
  %v231 = vmul.f32 %v213, %v213
  %v232 = vmul.f32 %v216, %v216
  %v233 = vadd.f32 %v229, %v230
  %v234 = vadd.f32 %v233, %v231
  %v235 = vadd.f32 %v234, %v232
  %v236 = vrot.slane %v235, 4
  %v237 = vadd.f32 %v235, %v236
  %v238 = vrot.slane %v237, 2
  %v239 = vadd.f32 %v237, %v238
  %v240 = vrot.slane %v239, 1
  %v241 = vadd.f32 %v239, %v240
  %v242 = vmul.f32 %v241, 0.03125
  %v243 = vmul.f32 %v228, %v228
  %v244 = vsub.f32 %v242, %v243
  %v245 = vmax.f32 %v244, 0.0
  %v246 = vld [vmem:[%s2] sm:$0x1]
  %v247 = vadd.f32 %v245, 1e-05
  %v248 = vrsqrt.pop %v247
  %v249 = vmul.f32 %v246, %v248
  %v250 = vld [vmem:[%s3] sm:$0x1]
  %v251 = vmul.f32 %v228, %v249
  %v252 = vsub.f32 %v250, %v251
  %v254 = vlaneseq
  %v255 = vshrl.u32 %v254, 7
  %v256 = vsub.s32 0, %v255
  %v257 = vrot.slane %v249, %v256
  %v259 = vmul.f32 %v205, %v257
  %v260 = vmul.f32 %v208, %v257
  %v261 = vmul.f32 %v213, %v257
  %v262 = vmul.f32 %v216, %v257
  %v264 = vlaneseq
  %v265 = vshrl.u32 %v264, 7
  %v266 = vsub.s32 0, %v265
  %v267 = vrot.slane %v252, %v266
  %v269 = vadd.f32 %v259, %v267
  %v270 = vadd.f32 %v260, %v267
  %v271 = vadd.f32 %v261, %v267
  %v272 = vadd.f32 %v262, %v267
  %v273 = vmax.f32 %v269, 0.0
  %v274 = vmax.f32 %v270, 0.0
  %v275 = vmax.f32 %v271, 0.0
  %v276 = vmax.f32 %v272, 0.0
  %v277 = vpack.c.bf16 %v274, %v273
  %v278 = vpack.c.bf16 %v276, %v275
  %v281 = vunpack.c.l.b16 %v277
  %v282 = vunpack.c.h.b16 %v277
  %v283 = vunpack.c.l.b16 %v278
  %v284 = vunpack.c.h.b16 %v278
  %v285 = vpack.c.b16 %v281, %v281
  %v286 = vpack.c.b16 %v282, %v282
  %v287 = vpack.c.b16 %v283, %v283
  %v288 = vpack.c.b16 %v284, %v284
  %293 = vst [vmem:[%s4] sm:$0xf] %v285
  %294 = vst [vmem:[%s4 + $0x4] sm:$0xf] %v286
  %295 = vst [vmem:[%s4 + $0x8] sm:$0xf] %v287
  %296 = vst [vmem:[%s4 + $0xc] sm:$0xf] %v288
  // Predicated region
  $region18: #{egan_generator_32_forward.4} parent=0 // pred_check
    _
  $region19: #{egan_generator_32_forward.4} parent=0 // pred_check_branch
    %298 = sbr.rel (0) target = $region21
  $region20: #{egan_generator_32_forward.4} parent=0 // pred_region
    _
  $region21: #{egan_generator_32_forward.4} parent=0 // pred_fallthru
    _
  // Predicated region
  $region22: #{egan_generator_32_forward.4} parent=0 // pred_check
    _
  $region23: #{egan_generator_32_forward.4} parent=0 // pred_check_branch
    %300 = sbr.rel (0) target = $region25
  $region24: #{egan_generator_32_forward.4} parent=0 // pred_region
    _
  $region25: #{egan_generator_32_forward.4} parent=0 // pred_fallthru
    _

// kernel: egan_generator_32_forward.5
$region0: #{egan_generator_32_forward.5}
  #allocation0 [shape = 'u32[]', space=smem, size = 0x4, offset = 0x4, fixed_abs, tag = 'smem constant byte address 0x4 - core index']
  #allocation1 [shape = 'u32[144,128]{1,0:T(1,128)}', space=vmem, size = 0x12000, scoped, tag = 'internal scratch']
  %s0 = inlined_call_operand.vmem [shape: bf16[128,512], index: 0, kind: input, shape index: {}]
  %s1 = inlined_call_operand.vmem [shape: bf16[512,128], index: 1, kind: input, shape index: {}]
  %s2 = inlined_call_operand.vmem [shape: f32[1,128], index: 2, kind: input, shape index: {}]
  %s3 = inlined_call_operand.vmem [shape: f32[1,128], index: 3, kind: input, shape index: {}]
  %s4 = inlined_call_operand.vmem [shape: bf16[128,128], index: 4, kind: output, shape index: {}]
  %s5 = sld [smem:[#allocation0]]
  $region26: #{egan_generator_32_forward.5} parent=0
    _
  %s7 = ssub.s32 1, %s5
  %s8 = scalar_select 0, %s7, %s5
  // Predicated region
  $region2: #{egan_generator_32_forward.5} parent=0 // pred_check
    _
  $region3: #{egan_generator_32_forward.5} parent=0 // pred_check_branch
    %10 = sbr.rel (0) target = $region5
  $region4: #{egan_generator_32_forward.5} parent=0 // pred_region
    _
  $region5: #{egan_generator_32_forward.5} parent=0 // pred_fallthru
    _
  // Predicated region
  $region6: #{egan_generator_32_forward.5} parent=0 // pred_check
    _
  $region7: #{egan_generator_32_forward.5} parent=0 // pred_check_branch
    %12 = sbr.rel (0) target = $region9
  $region8: #{egan_generator_32_forward.5} parent=0 // pred_region
    _
  $region9: #{egan_generator_32_forward.5} parent=0 // pred_fallthru
    _
  // Predicated region
  $region10: #{egan_generator_32_forward.5} parent=0 // pred_check
    _
  $region11: #{egan_generator_32_forward.5} parent=0 // pred_check_branch
    %14 = sbr.rel (0) target = $region13
  $region12: #{egan_generator_32_forward.5} parent=0 // pred_region
    _
  $region13: #{egan_generator_32_forward.5} parent=0 // pred_fallthru
    _
  // Predicated region
  $region14: #{egan_generator_32_forward.5} parent=0 // pred_check
    _
  $region15: #{egan_generator_32_forward.5} parent=0 // pred_check_branch
    %16 = sbr.rel (0) target = $region17
  $region16: #{egan_generator_32_forward.5} parent=0 // pred_region
    _
  $region17: #{egan_generator_32_forward.5} parent=0 // pred_fallthru
    _
  %v18 = vld [vmem:[%s0] sm:$0xff]
  %v19 = vld [vmem:[%s0 + $0x8] sm:$0xff]
  %v20 = vld [vmem:[%s0 + $0x10] sm:$0xff]
  %v21 = vld [vmem:[%s0 + $0x18] sm:$0xff]
  %v22 = vld [vmem:[%s0 + $0x20] sm:$0xff]
  %v23 = vld [vmem:[%s0 + $0x28] sm:$0xff]
  %v24 = vld [vmem:[%s0 + $0x30] sm:$0xff]
  %v25 = vld [vmem:[%s0 + $0x38] sm:$0xff]
  %v26 = vld [vmem:[%s0 + $0x40] sm:$0xff]
  %v27 = vld [vmem:[%s0 + $0x48] sm:$0xff]
  %v28 = vld [vmem:[%s0 + $0x50] sm:$0xff]
  %v29 = vld [vmem:[%s0 + $0x58] sm:$0xff]
  %v30 = vld [vmem:[%s0 + $0x60] sm:$0xff]
  %v31 = vld [vmem:[%s0 + $0x68] sm:$0xff]
  %v32 = vld [vmem:[%s0 + $0x70] sm:$0xff]
  %v33 = vld [vmem:[%s0 + $0x78] sm:$0xff]
  %v34 = vld [vmem:[%s0 + $0x80] sm:$0xff]
  %v35 = vld [vmem:[%s0 + $0x88] sm:$0xff]
  %v36 = vld [vmem:[%s0 + $0x90] sm:$0xff]
  %v37 = vld [vmem:[%s0 + $0x98] sm:$0xff]
  %v38 = vld [vmem:[%s0 + $0xa0] sm:$0xff]
  %v39 = vld [vmem:[%s0 + $0xa8] sm:$0xff]
  %v40 = vld [vmem:[%s0 + $0xb0] sm:$0xff]
  %v41 = vld [vmem:[%s0 + $0xb8] sm:$0xff]
  %v42 = vld [vmem:[%s0 + $0xc0] sm:$0xff]
  %v43 = vld [vmem:[%s0 + $0xc8] sm:$0xff]
  %v44 = vld [vmem:[%s0 + $0xd0] sm:$0xff]
  %v45 = vld [vmem:[%s0 + $0xd8] sm:$0xff]
  %v46 = vld [vmem:[%s0 + $0xe0] sm:$0xff]
  %v47 = vld [vmem:[%s0 + $0xe8] sm:$0xff]
  %v48 = vld [vmem:[%s0 + $0xf0] sm:$0xff]
  %v49 = vld [vmem:[%s0 + $0xf8] sm:$0xff]
  %v50 = vld [vmem:[%s1] sm:$0xf]
  %v51 = vld [vmem:[%s1 + $0x4] sm:$0xf]
  %v52 = vld [vmem:[%s1 + $0x8] sm:$0xf]
  %v53 = vld [vmem:[%s1 + $0xc] sm:$0xf]
  %v54 = vld [vmem:[%s1 + $0x10] sm:$0xf]
  %v55 = vld [vmem:[%s1 + $0x14] sm:$0xf]
  %v56 = vld [vmem:[%s1 + $0x18] sm:$0xf]
  %v57 = vld [vmem:[%s1 + $0x1c] sm:$0xf]
  %v58 = vld [vmem:[%s1 + $0x20] sm:$0xf]
  %v59 = vld [vmem:[%s1 + $0x24] sm:$0xf]
  %v60 = vld [vmem:[%s1 + $0x28] sm:$0xf]
  %v61 = vld [vmem:[%s1 + $0x2c] sm:$0xf]
  %v62 = vld [vmem:[%s1 + $0x30] sm:$0xf]
  %v63 = vld [vmem:[%s1 + $0x34] sm:$0xf]
  %v64 = vld [vmem:[%s1 + $0x38] sm:$0xf]
  %v65 = vld [vmem:[%s1 + $0x3c] sm:$0xf]
  %v66 = vld [vmem:[%s1 + $0x40] sm:$0xf]
  %v67 = vld [vmem:[%s1 + $0x44] sm:$0xf]
  %v68 = vld [vmem:[%s1 + $0x48] sm:$0xf]
  %v69 = vld [vmem:[%s1 + $0x4c] sm:$0xf]
  %v70 = vld [vmem:[%s1 + $0x50] sm:$0xf]
  %v71 = vld [vmem:[%s1 + $0x54] sm:$0xf]
  %v72 = vld [vmem:[%s1 + $0x58] sm:$0xf]
  %v73 = vld [vmem:[%s1 + $0x5c] sm:$0xf]
  %v74 = vld [vmem:[%s1 + $0x60] sm:$0xf]
  %v75 = vld [vmem:[%s1 + $0x64] sm:$0xf]
  %v76 = vld [vmem:[%s1 + $0x68] sm:$0xf]
  %v77 = vld [vmem:[%s1 + $0x6c] sm:$0xf]
  %v78 = vld [vmem:[%s1 + $0x70] sm:$0xf]
  %v79 = vld [vmem:[%s1 + $0x74] sm:$0xf]
  %v80 = vld [vmem:[%s1 + $0x78] sm:$0xf]
  %v81 = vld [vmem:[%s1 + $0x7c] sm:$0xf]
  %v82 = vld [vmem:[%s1 + $0x80] sm:$0xf]
  %v83 = vld [vmem:[%s1 + $0x84] sm:$0xf]
  %v84 = vld [vmem:[%s1 + $0x88] sm:$0xf]
  %v85 = vld [vmem:[%s1 + $0x8c] sm:$0xf]
  %v86 = vld [vmem:[%s1 + $0x90] sm:$0xf]
  %v87 = vld [vmem:[%s1 + $0x94] sm:$0xf]
  %v88 = vld [vmem:[%s1 + $0x98] sm:$0xf]
  %v89 = vld [vmem:[%s1 + $0x9c] sm:$0xf]
  %v90 = vld [vmem:[%s1 + $0xa0] sm:$0xf]
  %v91 = vld [vmem:[%s1 + $0xa4] sm:$0xf]
  %v92 = vld [vmem:[%s1 + $0xa8] sm:$0xf]
  %v93 = vld [vmem:[%s1 + $0xac] sm:$0xf]
  %v94 = vld [vmem:[%s1 + $0xb0] sm:$0xf]
  %v95 = vld [vmem:[%s1 + $0xb4] sm:$0xf]
  %v96 = vld [vmem:[%s1 + $0xb8] sm:$0xf]
  %v97 = vld [vmem:[%s1 + $0xbc] sm:$0xf]
  %v98 = vld [vmem:[%s1 + $0xc0] sm:$0xf]
  %v99 = vld [vmem:[%s1 + $0xc4] sm:$0xf]
  %v100 = vld [vmem:[%s1 + $0xc8] sm:$0xf]
  %v101 = vld [vmem:[%s1 + $0xcc] sm:$0xf]
  %v102 = vld [vmem:[%s1 + $0xd0] sm:$0xf]
  %v103 = vld [vmem:[%s1 + $0xd4] sm:$0xf]
  %v104 = vld [vmem:[%s1 + $0xd8] sm:$0xf]
  %v105 = vld [vmem:[%s1 + $0xdc] sm:$0xf]
  %v106 = vld [vmem:[%s1 + $0xe0] sm:$0xf]
  %v107 = vld [vmem:[%s1 + $0xe4] sm:$0xf]
  %v108 = vld [vmem:[%s1 + $0xe8] sm:$0xf]
  %v109 = vld [vmem:[%s1 + $0xec] sm:$0xf]
  %v110 = vld [vmem:[%s1 + $0xf0] sm:$0xf]
  %v111 = vld [vmem:[%s1 + $0xf4] sm:$0xf]
  %v112 = vld [vmem:[%s1 + $0xf8] sm:$0xf]
  %v113 = vld [vmem:[%s1 + $0xfc] sm:$0xf]
  %v146 = vunpack.c.l.b16 %v18
  %v147 = vunpack.c.h.b16 %v18
  %v148 = vunpack.c.l.b16 %v19
  %v149 = vunpack.c.h.b16 %v19
  %v150 = vunpack.c.l.b16 %v20
  %v151 = vunpack.c.h.b16 %v20
  %v152 = vunpack.c.l.b16 %v21
  %v153 = vunpack.c.h.b16 %v21
  %v154 = vunpack.c.l.b16 %v22
  %v155 = vunpack.c.h.b16 %v22
  %v156 = vunpack.c.l.b16 %v23
  %v157 = vunpack.c.h.b16 %v23
  %v158 = vunpack.c.l.b16 %v24
  %v159 = vunpack.c.h.b16 %v24
  %v160 = vunpack.c.l.b16 %v25
  %v161 = vunpack.c.h.b16 %v25
  %v162 = vunpack.c.l.b16 %v26
  %v163 = vunpack.c.h.b16 %v26
  %v164 = vunpack.c.l.b16 %v27
  %v165 = vunpack.c.h.b16 %v27
  %v166 = vunpack.c.l.b16 %v28
  %v167 = vunpack.c.h.b16 %v28
  %v168 = vunpack.c.l.b16 %v29
  %v169 = vunpack.c.h.b16 %v29
  %v170 = vunpack.c.l.b16 %v30
  %v171 = vunpack.c.h.b16 %v30
  %v172 = vunpack.c.l.b16 %v31
  %v173 = vunpack.c.h.b16 %v31
  %v174 = vunpack.c.l.b16 %v32
  %v175 = vunpack.c.h.b16 %v32
  %v176 = vunpack.c.l.b16 %v33
  %v177 = vunpack.c.h.b16 %v33
  %v178 = vunpack.c.l.b16 %v34
  %v179 = vunpack.c.h.b16 %v34
  %v180 = vunpack.c.l.b16 %v35
  %v181 = vunpack.c.h.b16 %v35
  %v182 = vunpack.c.l.b16 %v36
  %v183 = vunpack.c.h.b16 %v36
  %v184 = vunpack.c.l.b16 %v37
  %v185 = vunpack.c.h.b16 %v37
  %v186 = vunpack.c.l.b16 %v38
  %v187 = vunpack.c.h.b16 %v38
  %v188 = vunpack.c.l.b16 %v39
  %v189 = vunpack.c.h.b16 %v39
  %v190 = vunpack.c.l.b16 %v40
  %v191 = vunpack.c.h.b16 %v40
  %v192 = vunpack.c.l.b16 %v41
  %v193 = vunpack.c.h.b16 %v41
  %v194 = vunpack.c.l.b16 %v42
  %v195 = vunpack.c.h.b16 %v42
  %v196 = vunpack.c.l.b16 %v43
  %v197 = vunpack.c.h.b16 %v43
  %v198 = vunpack.c.l.b16 %v44
  %v199 = vunpack.c.h.b16 %v44
  %v200 = vunpack.c.l.b16 %v45
  %v201 = vunpack.c.h.b16 %v45
  %v202 = vunpack.c.l.b16 %v46
  %v203 = vunpack.c.h.b16 %v46
  %v204 = vunpack.c.l.b16 %v47
  %v205 = vunpack.c.h.b16 %v47
  %v206 = vunpack.c.l.b16 %v48
  %v207 = vunpack.c.h.b16 %v48
  %v208 = vunpack.c.l.b16 %v49
  %v209 = vunpack.c.h.b16 %v49
  %v210 = vpack.c.b16 %v150, %v146
  %v211 = vpack.c.b16 %v151, %v147
  %v212 = vpack.c.b16 %v152, %v148
  %v213 = vpack.c.b16 %v153, %v149
  %v214 = vpack.c.b16 %v158, %v154
  %v215 = vpack.c.b16 %v159, %v155
  %v216 = vpack.c.b16 %v160, %v156
  %v217 = vpack.c.b16 %v161, %v157
  %v218 = vpack.c.b16 %v166, %v162
  %v219 = vpack.c.b16 %v167, %v163
  %v220 = vpack.c.b16 %v168, %v164
  %v221 = vpack.c.b16 %v169, %v165
  %v222 = vpack.c.b16 %v174, %v170
  %v223 = vpack.c.b16 %v175, %v171
  %v224 = vpack.c.b16 %v176, %v172
  %v225 = vpack.c.b16 %v177, %v173
  %v226 = vpack.c.b16 %v182, %v178
  %v227 = vpack.c.b16 %v183, %v179
  %v228 = vpack.c.b16 %v184, %v180
  %v229 = vpack.c.b16 %v185, %v181
  %v230 = vpack.c.b16 %v190, %v186
  %v231 = vpack.c.b16 %v191, %v187
  %v232 = vpack.c.b16 %v192, %v188
  %v233 = vpack.c.b16 %v193, %v189
  %v234 = vpack.c.b16 %v198, %v194
  %v235 = vpack.c.b16 %v199, %v195
  %v236 = vpack.c.b16 %v200, %v196
  %v237 = vpack.c.b16 %v201, %v197
  %v238 = vpack.c.b16 %v206, %v202
  %v239 = vpack.c.b16 %v207, %v203
  %v240 = vpack.c.b16 %v208, %v204
  %v241 = vpack.c.b16 %v209, %v205
  %v338 = vunpack.c.l.b16 %v50
  %v339 = vunpack.c.l.b16 %v51
  %v340 = vunpack.c.l.b16 %v52
  %v341 = vunpack.c.l.b16 %v53
  %v342 = vunpack.c.l.b16 %v54
  %v343 = vunpack.c.l.b16 %v55
  %v344 = vunpack.c.l.b16 %v56
  %v345 = vunpack.c.l.b16 %v57
  %v346 = vunpack.c.l.b16 %v58
  %v347 = vunpack.c.l.b16 %v59
  %v348 = vunpack.c.l.b16 %v60
  %v349 = vunpack.c.l.b16 %v61
  %v350 = vunpack.c.l.b16 %v62
  %v351 = vunpack.c.l.b16 %v63
  %v352 = vunpack.c.l.b16 %v64
  %v353 = vunpack.c.l.b16 %v65
  %v354 = vunpack.c.l.b16 %v66
  %v355 = vunpack.c.l.b16 %v67
  %v356 = vunpack.c.l.b16 %v68
  %v357 = vunpack.c.l.b16 %v69
  %v358 = vunpack.c.l.b16 %v70
  %v359 = vunpack.c.l.b16 %v71
  %v360 = vunpack.c.l.b16 %v72
  %v361 = vunpack.c.l.b16 %v73
  %v362 = vunpack.c.l.b16 %v74
  %v363 = vunpack.c.l.b16 %v75
  %v364 = vunpack.c.l.b16 %v76
  %v365 = vunpack.c.l.b16 %v77
  %v366 = vunpack.c.l.b16 %v78
  %v367 = vunpack.c.l.b16 %v79
  %v368 = vunpack.c.l.b16 %v80
  %v369 = vunpack.c.l.b16 %v81
  %v370 = vunpack.c.l.b16 %v82
  %v371 = vunpack.c.l.b16 %v83
  %v372 = vunpack.c.l.b16 %v84
  %v373 = vunpack.c.l.b16 %v85
  %v374 = vunpack.c.l.b16 %v86
  %v375 = vunpack.c.l.b16 %v87
  %v376 = vunpack.c.l.b16 %v88
  %v377 = vunpack.c.l.b16 %v89
  %v378 = vunpack.c.l.b16 %v90
  %v379 = vunpack.c.l.b16 %v91
  %v380 = vunpack.c.l.b16 %v92
  %v381 = vunpack.c.l.b16 %v93
  %v382 = vunpack.c.l.b16 %v94
  %v383 = vunpack.c.l.b16 %v95
  %v384 = vunpack.c.l.b16 %v96
  %v385 = vunpack.c.l.b16 %v97
  %v386 = vunpack.c.l.b16 %v98
  %v387 = vunpack.c.l.b16 %v99
  %v388 = vunpack.c.l.b16 %v100
  %v389 = vunpack.c.l.b16 %v101
  %v390 = vunpack.c.l.b16 %v102
  %v391 = vunpack.c.l.b16 %v103
  %v392 = vunpack.c.l.b16 %v104
  %v393 = vunpack.c.l.b16 %v105
  %v394 = vunpack.c.l.b16 %v106
  %v395 = vunpack.c.l.b16 %v107
  %v396 = vunpack.c.l.b16 %v108
  %v397 = vunpack.c.l.b16 %v109
  %v398 = vunpack.c.l.b16 %v110
  %v399 = vunpack.c.l.b16 %v111
  %v400 = vunpack.c.l.b16 %v112
  %v401 = vunpack.c.l.b16 %v113
  %v402 = vpack.c.b16 %v339, %v338
  %v403 = vpack.c.b16 %v341, %v340
  %v404 = vpack.c.b16 %v343, %v342
  %v405 = vpack.c.b16 %v345, %v344
  %v406 = vpack.c.b16 %v347, %v346
  %v407 = vpack.c.b16 %v349, %v348
  %v408 = vpack.c.b16 %v351, %v350
  %v409 = vpack.c.b16 %v353, %v352
  %v410 = vpack.c.b16 %v355, %v354
  %v411 = vpack.c.b16 %v357, %v356
  %v412 = vpack.c.b16 %v359, %v358
  %v413 = vpack.c.b16 %v361, %v360
  %v414 = vpack.c.b16 %v363, %v362
  %v415 = vpack.c.b16 %v365, %v364
  %v416 = vpack.c.b16 %v367, %v366
  %v417 = vpack.c.b16 %v369, %v368
  %v418 = vpack.c.b16 %v371, %v370
  %v419 = vpack.c.b16 %v373, %v372
  %v420 = vpack.c.b16 %v375, %v374
  %v421 = vpack.c.b16 %v377, %v376
  %v422 = vpack.c.b16 %v379, %v378
  %v423 = vpack.c.b16 %v381, %v380
  %v424 = vpack.c.b16 %v383, %v382
  %v425 = vpack.c.b16 %v385, %v384
  %v426 = vpack.c.b16 %v387, %v386
  %v427 = vpack.c.b16 %v389, %v388
  %v428 = vpack.c.b16 %v391, %v390
  %v429 = vpack.c.b16 %v393, %v392
  %v430 = vpack.c.b16 %v395, %v394
  %v431 = vpack.c.b16 %v397, %v396
  %v432 = vpack.c.b16 %v399, %v398
  %v433 = vpack.c.b16 %v401, %v400
  %466 = vmatprep.subr.bf16.mxu0 0
  %467 = vmatpush1.bf16.msra.mxu0 %v402
  %468 = vmatprep.subr.bf16.mxu0 0
  %469 = vmatpush1.bf16.msra.mxu0 %v403
  %470 = vmatprep.subr.bf16.mxu0 0
  %471 = vmatpush1.bf16.msra.mxu0 %v404
  %472 = vmatprep.subr.bf16.mxu0 0
  %473 = vmatpush1.bf16.msra.mxu0 %v405
  %474 = vmatprep.subr.bf16.mxu0 0
  %475 = vmatpush1.bf16.msra.mxu0 %v406
  %476 = vmatprep.subr.bf16.mxu0 0
  %477 = vmatpush1.bf16.msra.mxu0 %v407
  %478 = vmatprep.subr.bf16.mxu0 0
  %479 = vmatpush1.bf16.msra.mxu0 %v408
  %480 = vmatprep.subr.bf16.mxu0 0
  %481 = vmatpush1.bf16.msra.mxu0 %v409
  %482 = vmatprep.subr.bf16.mxu0 0
  %483 = vmatpush1.bf16.msra.mxu0 %v410
  %484 = vmatprep.subr.bf16.mxu0 0
  %485 = vmatpush1.bf16.msra.mxu0 %v411
  %486 = vmatprep.subr.bf16.mxu0 0
  %487 = vmatpush1.bf16.msra.mxu0 %v412
  %488 = vmatprep.subr.bf16.mxu0 0
  %489 = vmatpush1.bf16.msra.mxu0 %v413
  %490 = vmatprep.subr.bf16.mxu0 0
  %491 = vmatpush1.bf16.msra.mxu0 %v414
  %492 = vmatprep.subr.bf16.mxu0 0
  %493 = vmatpush1.bf16.msra.mxu0 %v415
  %494 = vmatprep.subr.bf16.mxu0 0
  %495 = vmatpush1.bf16.msra.mxu0 %v416
  %496 = vmatprep.subr.bf16.mxu0 0
  %497 = vmatpush1.bf16.msra.mxu0 %v417
  %498 = vmatprep.mubr.bf16.mxu0 %v211
  %499 = vmatmul.mubr.bf16.gmra.mrb[0].mxu0 %v210
  %v500 = vpop.f32.mrb[0].mxu0
  %v501 = vadd.f32 0.0, %v500
  %v502 = vpop.f32.mrb[0].mxu0
  %v503 = vpop.f32.mrb[0].mxu0
  %v504 = vadd.f32 0.0, %v503
  %v505 = vpop.f32.mrb[0].mxu0
  %506 = vmatprep.mubr.bf16.mxu0 %v215
  %507 = vmatmul.mubr.bf16.gmra.mrb[0].mxu0 %v214
  %v508 = vpop.f32.mrb[0].mxu0
  %v509 = vadd.f32 0.0, %v508
  %v510 = vpop.f32.mrb[0].mxu0
  %v511 = vpop.f32.mrb[0].mxu0
  %v512 = vadd.f32 0.0, %v511
  %v513 = vpop.f32.mrb[0].mxu0
  %514 = vmatprep.mubr.bf16.mxu0 %v219
  %515 = vmatmul.mubr.bf16.gmra.mrb[0].mxu0 %v218
  %v516 = vpop.f32.mrb[0].mxu0
  %v517 = vadd.f32 0.0, %v516
  %v518 = vpop.f32.mrb[0].mxu0
  %v519 = vpop.f32.mrb[0].mxu0
  %v520 = vadd.f32 0.0, %v519
  %v521 = vpop.f32.mrb[0].mxu0
  %522 = vmatprep.mubr.bf16.mxu0 %v223
  %523 = vmatmul.mubr.bf16.gmra.mrb[0].mxu0 %v222
  %v524 = vpop.f32.mrb[0].mxu0
  %v525 = vadd.f32 0.0, %v524
  %v526 = vpop.f32.mrb[0].mxu0
  %v527 = vpop.f32.mrb[0].mxu0
  %v528 = vadd.f32 0.0, %v527
  %v529 = vpop.f32.mrb[0].mxu0
  %530 = vmatprep.mubr.bf16.mxu0 %v227
  %531 = vmatmul.mubr.bf16.gmra.mrb[0].mxu0 %v226
  %v532 = vpop.f32.mrb[0].mxu0
  %v533 = vadd.f32 0.0, %v532
  %v534 = vpop.f32.mrb[0].mxu0
  %v535 = vpop.f32.mrb[0].mxu0
  %v536 = vadd.f32 0.0, %v535
  %v537 = vpop.f32.mrb[0].mxu0
  %538 = vmatprep.mubr.bf16.mxu0 %v231
  %539 = vmatmul.mubr.bf16.gmra.mrb[0].mxu0 %v230
  %v540 = vpop.f32.mrb[0].mxu0
  %v541 = vadd.f32 0.0, %v540
  %v542 = vpop.f32.mrb[0].mxu0
  %v543 = vpop.f32.mrb[0].mxu0
  %v544 = vadd.f32 0.0, %v543
  %v545 = vpop.f32.mrb[0].mxu0
  %546 = vmatprep.mubr.bf16.mxu0 %v235
  %547 = vmatmul.mubr.bf16.gmra.mrb[0].mxu0 %v234
  %v548 = vpop.f32.mrb[0].mxu0
  %v549 = vadd.f32 0.0, %v548
  %v550 = vpop.f32.mrb[0].mxu0
  %v551 = vpop.f32.mrb[0].mxu0
  %v552 = vadd.f32 0.0, %v551
  %v553 = vpop.f32.mrb[0].mxu0
  %554 = vmatprep.mubr.bf16.mxu0 %v239
  %555 = vmatmul.mubr.bf16.gmra.mrb[0].mxu0 %v238
  %v556 = vpop.f32.mrb[0].mxu0
  %v557 = vadd.f32 0.0, %v556
  %v558 = vpop.f32.mrb[0].mxu0
  %v559 = vpop.f32.mrb[0].mxu0
  %v560 = vadd.f32 0.0, %v559
  %v561 = vpop.f32.mrb[0].mxu0
  %562 = vdwg.mxu0
  %563 = vmatprep.subr.bf16.mxu0 0
  %564 = vmatpush1.bf16.msra.mxu0 %v418
  %565 = vmatprep.subr.bf16.mxu0 0
  %566 = vmatpush1.bf16.msra.mxu0 %v419
  %567 = vmatprep.subr.bf16.mxu0 0
  %568 = vmatpush1.bf16.msra.mxu0 %v420
  %569 = vmatprep.subr.bf16.mxu0 0
  %570 = vmatpush1.bf16.msra.mxu0 %v421
  %571 = vmatprep.subr.bf16.mxu0 0
  %572 = vmatpush1.bf16.msra.mxu0 %v422
  %573 = vmatprep.subr.bf16.mxu0 0
  %574 = vmatpush1.bf16.msra.mxu0 %v423
  %575 = vmatprep.subr.bf16.mxu0 0
  %576 = vmatpush1.bf16.msra.mxu0 %v424
  %577 = vmatprep.subr.bf16.mxu0 0
  %578 = vmatpush1.bf16.msra.mxu0 %v425
  %579 = vmatprep.subr.bf16.mxu0 0
  %580 = vmatpush1.bf16.msra.mxu0 %v426
  %581 = vmatprep.subr.bf16.mxu0 0
  %582 = vmatpush1.bf16.msra.mxu0 %v427
  %583 = vmatprep.subr.bf16.mxu0 0
  %584 = vmatpush1.bf16.msra.mxu0 %v428
  %585 = vmatprep.subr.bf16.mxu0 0
  %586 = vmatpush1.bf16.msra.mxu0 %v429
  %587 = vmatprep.subr.bf16.mxu0 0
  %588 = vmatpush1.bf16.msra.mxu0 %v430
  %589 = vmatprep.subr.bf16.mxu0 0
  %590 = vmatpush1.bf16.msra.mxu0 %v431
  %591 = vmatprep.subr.bf16.mxu0 0
  %592 = vmatpush1.bf16.msra.mxu0 %v432
  %593 = vmatprep.subr.bf16.mxu0 0
  %594 = vmatpush1.bf16.msra.mxu0 %v433
  %595 = vmatprep.mubr.bf16.mxu0 %v213
  %596 = vmatmul.mubr.bf16.gmra.mrb[0].mxu0 %v212
  %v597 = vpop.f32.mrb[0].mxu0
  %v598 = vadd.f32 %v501, %v597
  %v599 = vpop.f32.mrb[0].mxu0
  %v600 = vpop.f32.mrb[0].mxu0
  %v601 = vadd.f32 %v504, %v600
  %v602 = vpop.f32.mrb[0].mxu0
  %603 = vmatprep.mubr.bf16.mxu0 %v217
  %604 = vmatmul.mubr.bf16.gmra.mrb[0].mxu0 %v216
  %v605 = vpop.f32.mrb[0].mxu0
  %v606 = vadd.f32 %v509, %v605
  %v607 = vpop.f32.mrb[0].mxu0
  %v608 = vpop.f32.mrb[0].mxu0
  %v609 = vadd.f32 %v512, %v608
  %v610 = vpop.f32.mrb[0].mxu0
  %611 = vmatprep.mubr.bf16.mxu0 %v221
  %612 = vmatmul.mubr.bf16.gmra.mrb[0].mxu0 %v220
  %v613 = vpop.f32.mrb[0].mxu0
  %v614 = vadd.f32 %v517, %v613
  %v615 = vpop.f32.mrb[0].mxu0
  %v616 = vpop.f32.mrb[0].mxu0
  %v617 = vadd.f32 %v520, %v616
  %v618 = vpop.f32.mrb[0].mxu0
  %619 = vmatprep.mubr.bf16.mxu0 %v225
  %620 = vmatmul.mubr.bf16.gmra.mrb[0].mxu0 %v224
  %v621 = vpop.f32.mrb[0].mxu0
  %v622 = vadd.f32 %v525, %v621
  %v623 = vpop.f32.mrb[0].mxu0
  %v624 = vpop.f32.mrb[0].mxu0
  %v625 = vadd.f32 %v528, %v624
  %v626 = vpop.f32.mrb[0].mxu0
  %627 = vmatprep.mubr.bf16.mxu0 %v229
  %628 = vmatmul.mubr.bf16.gmra.mrb[0].mxu0 %v228
  %v629 = vpop.f32.mrb[0].mxu0
  %v630 = vadd.f32 %v533, %v629
  %v631 = vpop.f32.mrb[0].mxu0
  %v632 = vpop.f32.mrb[0].mxu0
  %v633 = vadd.f32 %v536, %v632
  %v634 = vpop.f32.mrb[0].mxu0
  %635 = vmatprep.mubr.bf16.mxu0 %v233
  %636 = vmatmul.mubr.bf16.gmra.mrb[0].mxu0 %v232
  %v637 = vpop.f32.mrb[0].mxu0
  %v638 = vadd.f32 %v541, %v637
  %v639 = vpop.f32.mrb[0].mxu0
  %v640 = vpop.f32.mrb[0].mxu0
  %v641 = vadd.f32 %v544, %v640
  %v642 = vpop.f32.mrb[0].mxu0
  %643 = vmatprep.mubr.bf16.mxu0 %v237
  %644 = vmatmul.mubr.bf16.gmra.mrb[0].mxu0 %v236
  %v645 = vpop.f32.mrb[0].mxu0
  %v646 = vadd.f32 %v549, %v645
  %v647 = vpop.f32.mrb[0].mxu0
  %v648 = vpop.f32.mrb[0].mxu0
  %v649 = vadd.f32 %v552, %v648
  %v650 = vpop.f32.mrb[0].mxu0
  %651 = vmatprep.mubr.bf16.mxu0 %v241
  %652 = vmatmul.mubr.bf16.gmra.mrb[0].mxu0 %v240
  %v653 = vpop.f32.mrb[0].mxu0
  %v654 = vadd.f32 %v557, %v653
  %v655 = vpop.f32.mrb[0].mxu0
  %v656 = vpop.f32.mrb[0].mxu0
  %v657 = vadd.f32 %v560, %v656
  %v658 = vpop.f32.mrb[0].mxu0
  %659 = vdwg.mxu0
  %v660 = vadd.f32 %v598, %v601
  %v661 = vadd.f32 %v660, %v606
  %v662 = vadd.f32 %v661, %v609
  %v663 = vadd.f32 %v662, %v614
  %v664 = vadd.f32 %v663, %v617
  %v665 = vadd.f32 %v664, %v622
  %v666 = vadd.f32 %v665, %v625
  %v667 = vadd.f32 %v666, %v630
  %v668 = vadd.f32 %v667, %v633
  %v669 = vadd.f32 %v668, %v638
  %v670 = vadd.f32 %v669, %v641
  %v671 = vadd.f32 %v670, %v646
  %v672 = vadd.f32 %v671, %v649
  %v673 = vadd.f32 %v672, %v654
  %v674 = vadd.f32 %v673, %v657
  %v675 = vrot.slane %v674, 4
  %v676 = vadd.f32 %v674, %v675
  %v677 = vrot.slane %v676, 2
  %v678 = vadd.f32 %v676, %v677
  %v679 = vrot.slane %v678, 1
  %v680 = vadd.f32 %v678, %v679
  %v681 = vmul.f32 %v680, 0.0078125
  %v682 = vmul.f32 %v598, %v598
  %v683 = vmul.f32 %v601, %v601
  %v684 = vmul.f32 %v606, %v606
  %v685 = vmul.f32 %v609, %v609
  %v686 = vmul.f32 %v614, %v614
  %v687 = vmul.f32 %v617, %v617
  %v688 = vmul.f32 %v622, %v622
  %v689 = vmul.f32 %v625, %v625
  %v690 = vmul.f32 %v630, %v630
  %v691 = vmul.f32 %v633, %v633
  %v692 = vmul.f32 %v638, %v638
  %v693 = vmul.f32 %v641, %v641
  %v694 = vmul.f32 %v646, %v646
  %v695 = vmul.f32 %v649, %v649
  %v696 = vmul.f32 %v654, %v654
  %v697 = vmul.f32 %v657, %v657
  %v698 = vadd.f32 %v682, %v683
  %v699 = vadd.f32 %v698, %v684
  %v700 = vadd.f32 %v699, %v685
  %v701 = vadd.f32 %v700, %v686
  %v702 = vadd.f32 %v701, %v687
  %v703 = vadd.f32 %v702, %v688
  %v704 = vadd.f32 %v703, %v689
  %v705 = vadd.f32 %v704, %v690
  %v706 = vadd.f32 %v705, %v691
  %v707 = vadd.f32 %v706, %v692
  %v708 = vadd.f32 %v707, %v693
  %v709 = vadd.f32 %v708, %v694
  %v710 = vadd.f32 %v709, %v695
  %v711 = vadd.f32 %v710, %v696
  %v712 = vadd.f32 %v711, %v697
  %v713 = vrot.slane %v712, 4
  %v714 = vadd.f32 %v712, %v713
  %v715 = vrot.slane %v714, 2
  %v716 = vadd.f32 %v714, %v715
  %v717 = vrot.slane %v716, 1
  %v718 = vadd.f32 %v716, %v717
  %v719 = vmul.f32 %v718, 0.0078125
  %v720 = vmul.f32 %v681, %v681
  %v721 = vsub.f32 %v719, %v720
  %v722 = vmax.f32 %v721, 0.0
  %v723 = vld [vmem:[%s2] sm:$0x1]
  %v724 = vadd.f32 %v722, 1e-05
  %v725 = vrsqrt.pop %v724
  %v726 = vmul.f32 %v723, %v725
  %v727 = vld [vmem:[%s3] sm:$0x1]
  %v728 = vmul.f32 %v681, %v726
  %v729 = vsub.f32 %v727, %v728
  %v731 = vlaneseq
  %v732 = vshrl.u32 %v731, 7
  %v733 = vsub.s32 0, %v732
  %v734 = vrot.slane %v726, %v733
  %v736 = vmul.f32 %v598, %v734
  %v737 = vmul.f32 %v601, %v734
  %v738 = vmul.f32 %v606, %v734
  %v739 = vmul.f32 %v609, %v734
  %v740 = vmul.f32 %v614, %v734
  %v741 = vmul.f32 %v617, %v734
  %v742 = vmul.f32 %v622, %v734
  %v743 = vmul.f32 %v625, %v734
  %v744 = vmul.f32 %v630, %v734
  %v745 = vmul.f32 %v633, %v734
  %v746 = vmul.f32 %v638, %v734
  %v747 = vmul.f32 %v641, %v734
  %v748 = vmul.f32 %v646, %v734
  %v749 = vmul.f32 %v649, %v734
  %v750 = vmul.f32 %v654, %v734
  %v751 = vmul.f32 %v657, %v734
  %v753 = vlaneseq
  %v754 = vshrl.u32 %v753, 7
  %v755 = vsub.s32 0, %v754
  %v756 = vrot.slane %v729, %v755
  %v758 = vadd.f32 %v736, %v756
  %v759 = vadd.f32 %v737, %v756
  %v760 = vadd.f32 %v738, %v756
  %v761 = vadd.f32 %v739, %v756
  %v762 = vadd.f32 %v740, %v756
  %v763 = vadd.f32 %v741, %v756
  %v764 = vadd.f32 %v742, %v756
  %v765 = vadd.f32 %v743, %v756
  %v766 = vadd.f32 %v744, %v756
  %v767 = vadd.f32 %v745, %v756
  %v768 = vadd.f32 %v746, %v756
  %v769 = vadd.f32 %v747, %v756
  %v770 = vadd.f32 %v748, %v756
  %v771 = vadd.f32 %v749, %v756
  %v772 = vadd.f32 %v750, %v756
  %v773 = vadd.f32 %v751, %v756
  %v774 = vmax.f32 %v758, 0.0
  %v775 = vmax.f32 %v759, 0.0
  %v776 = vmax.f32 %v760, 0.0
  %v777 = vmax.f32 %v761, 0.0
  %v778 = vmax.f32 %v762, 0.0
  %v779 = vmax.f32 %v763, 0.0
  %v780 = vmax.f32 %v764, 0.0
  %v781 = vmax.f32 %v765, 0.0
  %v782 = vmax.f32 %v766, 0.0
  %v783 = vmax.f32 %v767, 0.0
  %v784 = vmax.f32 %v768, 0.0
  %v785 = vmax.f32 %v769, 0.0
  %v786 = vmax.f32 %v770, 0.0
  %v787 = vmax.f32 %v771, 0.0
  %v788 = vmax.f32 %v772, 0.0
  %v789 = vmax.f32 %v773, 0.0
  %v790 = vpack.c.bf16 %v775, %v774
  %v791 = vpack.c.bf16 %v777, %v776
  %v792 = vpack.c.bf16 %v779, %v778
  %v793 = vpack.c.bf16 %v781, %v780
  %v794 = vpack.c.bf16 %v783, %v782
  %v795 = vpack.c.bf16 %v785, %v784
  %v796 = vpack.c.bf16 %v787, %v786
  %v797 = vpack.c.bf16 %v789, %v788
  %v806 = vunpack.c.l.b16 %v790
  %v807 = vunpack.c.h.b16 %v790
  %v808 = vunpack.c.l.b16 %v791
  %v809 = vunpack.c.h.b16 %v791
  %v810 = vunpack.c.l.b16 %v792
  %v811 = vunpack.c.h.b16 %v792
  %v812 = vunpack.c.l.b16 %v793
  %v813 = vunpack.c.h.b16 %v793
  %v814 = vunpack.c.l.b16 %v794
  %v815 = vunpack.c.h.b16 %v794
  %v816 = vunpack.c.l.b16 %v795
  %v817 = vunpack.c.h.b16 %v795
  %v818 = vunpack.c.l.b16 %v796
  %v819 = vunpack.c.h.b16 %v796
  %v820 = vunpack.c.l.b16 %v797
  %v821 = vunpack.c.h.b16 %v797
  %v822 = vpack.c.b16 %v806, %v806
  %v823 = vpack.c.b16 %v807, %v807
  %v824 = vpack.c.b16 %v808, %v808
  %v825 = vpack.c.b16 %v809, %v809
  %v826 = vpack.c.b16 %v810, %v810
  %v827 = vpack.c.b16 %v811, %v811
  %v828 = vpack.c.b16 %v812, %v812
  %v829 = vpack.c.b16 %v813, %v813
  %v830 = vpack.c.b16 %v814, %v814
  %v831 = vpack.c.b16 %v815, %v815
  %v832 = vpack.c.b16 %v816, %v816
  %v833 = vpack.c.b16 %v817, %v817
  %v834 = vpack.c.b16 %v818, %v818
  %v835 = vpack.c.b16 %v819, %v819
  %v836 = vpack.c.b16 %v820, %v820
  %v837 = vpack.c.b16 %v821, %v821
  %854 = vst [vmem:[%s4] sm:$0xf] %v822
  %855 = vst [vmem:[%s4 + $0x4] sm:$0xf] %v823
  %856 = vst [vmem:[%s4 + $0x8] sm:$0xf] %v824
  %857 = vst [vmem:[%s4 + $0xc] sm:$0xf] %v825
  %858 = vst [vmem:[%s4 + $0x10] sm:$0xf] %v826
  %859 = vst [vmem:[%s4 + $0x14] sm:$0xf] %v827
  %860 = vst [vmem:[%s4 + $0x18] sm:$0xf] %v828
  %861 = vst [vmem:[%s4 + $0x1c] sm:$0xf] %v829
  %862 = vst [vmem:[%s4 + $0x20] sm:$0xf] %v830
  %863 = vst [vmem:[%s4 + $0x24] sm:$0xf] %v831
  %864 = vst [vmem:[%s4 + $0x28] sm:$0xf] %v832
  %865 = vst [vmem:[%s4 + $0x2c] sm:$0xf] %v833
  %866 = vst [vmem:[%s4 + $0x30] sm:$0xf] %v834
  %867 = vst [vmem:[%s4 + $0x34] sm:$0xf] %v835
  %868 = vst [vmem:[%s4 + $0x38] sm:$0xf] %v836
  %869 = vst [vmem:[%s4 + $0x3c] sm:$0xf] %v837
  // Predicated region
  $region18: #{egan_generator_32_forward.5} parent=0 // pred_check
    _
  $region19: #{egan_generator_32_forward.5} parent=0 // pred_check_branch
    %871 = sbr.rel (0) target = $region21
  $region20: #{egan_generator_32_forward.5} parent=0 // pred_region
    _
  $region21: #{egan_generator_32_forward.5} parent=0 // pred_fallthru
    _
  // Predicated region
  $region22: #{egan_generator_32_forward.5} parent=0 // pred_check
    _
  $region23: #{egan_generator_32_forward.5} parent=0 // pred_check_branch
    %873 = sbr.rel (0) target = $region25
  $region24: #{egan_generator_32_forward.5} parent=0 // pred_region
    _
  $region25: #{egan_generator_32_forward.5} parent=0 // pred_fallthru
    _

// kernel: egan_generator_32_forward.6
$region0: #{egan_generator_32_forward.6}
  #allocation0 [shape = 'u32[]', space=smem, size = 0x4, offset = 0x4, fixed_abs, tag = 'smem constant byte address 0x4 - core index']
  #allocation1 [shape = 'u32[144,128]{1,0:T(1,128)}', space=vmem, size = 0x12000, scoped, tag = 'internal scratch']
  %s0 = inlined_call_operand.vmem [shape: bf16[512,256], index: 0, kind: input, shape index: {}]
  %s1 = inlined_call_operand.vmem [shape: bf16[256,128], index: 1, kind: input, shape index: {}]
  %s2 = inlined_call_operand.vmem [shape: f32[1,128], index: 2, kind: input, shape index: {}]
  %s3 = inlined_call_operand.vmem [shape: f32[1,128], index: 3, kind: input, shape index: {}]
  %s4 = inlined_call_operand.vmem [shape: bf16[512,128], index: 4, kind: output, shape index: {}]
  %s5 = sld [smem:[#allocation0]]
  $region26: #{egan_generator_32_forward.6} parent=0
    _
  %s7 = ssub.s32 1, %s5
  %s8 = scalar_select 0, %s7, %s5
  // Predicated region
  $region2: #{egan_generator_32_forward.6} parent=0 // pred_check
    _
  $region3: #{egan_generator_32_forward.6} parent=0 // pred_check_branch
    %10 = sbr.rel (0) target = $region5
  $region4: #{egan_generator_32_forward.6} parent=0 // pred_region
    _
  $region5: #{egan_generator_32_forward.6} parent=0 // pred_fallthru
    _
  // Predicated region
  $region6: #{egan_generator_32_forward.6} parent=0 // pred_check
    _
  $region7: #{egan_generator_32_forward.6} parent=0 // pred_check_branch
    %12 = sbr.rel (0) target = $region9
  $region8: #{egan_generator_32_forward.6} parent=0 // pred_region
    _
  $region9: #{egan_generator_32_forward.6} parent=0 // pred_fallthru
    _
  // Predicated region
  $region10: #{egan_generator_32_forward.6} parent=0 // pred_check
    _
  $region11: #{egan_generator_32_forward.6} parent=0 // pred_check_branch
    %14 = sbr.rel (0) target = $region13
  $region12: #{egan_generator_32_forward.6} parent=0 // pred_region
    _
  $region13: #{egan_generator_32_forward.6} parent=0 // pred_fallthru
    _
  // Predicated region
  $region14: #{egan_generator_32_forward.6} parent=0 // pred_check
    _
  $region15: #{egan_generator_32_forward.6} parent=0 // pred_check_branch
    %16 = sbr.rel (0) target = $region17
  $region16: #{egan_generator_32_forward.6} parent=0 // pred_region
    _
  $region17: #{egan_generator_32_forward.6} parent=0 // pred_fallthru
    _
  %v18 = vld [vmem:[%s0] sm:$0xff]
  %v19 = vld [vmem:[%s0 + $0x8] sm:$0xff]
  %v20 = vld [vmem:[%s0 + $0x10] sm:$0xff]
  %v21 = vld [vmem:[%s0 + $0x18] sm:$0xff]
  %v22 = vld [vmem:[%s0 + $0x20] sm:$0xff]
  %v23 = vld [vmem:[%s0 + $0x28] sm:$0xff]
  %v24 = vld [vmem:[%s0 + $0x30] sm:$0xff]
  %v25 = vld [vmem:[%s0 + $0x38] sm:$0xff]
  %v26 = vld [vmem:[%s0 + $0x40] sm:$0xff]
  %v27 = vld [vmem:[%s0 + $0x48] sm:$0xff]
  %v28 = vld [vmem:[%s0 + $0x50] sm:$0xff]
  %v29 = vld [vmem:[%s0 + $0x58] sm:$0xff]
  %v30 = vld [vmem:[%s0 + $0x60] sm:$0xff]
  %v31 = vld [vmem:[%s0 + $0x68] sm:$0xff]
  %v32 = vld [vmem:[%s0 + $0x70] sm:$0xff]
  %v33 = vld [vmem:[%s0 + $0x78] sm:$0xff]
  %v34 = vld [vmem:[%s0 + $0x80] sm:$0xff]
  %v35 = vld [vmem:[%s0 + $0x88] sm:$0xff]
  %v36 = vld [vmem:[%s0 + $0x90] sm:$0xff]
  %v37 = vld [vmem:[%s0 + $0x98] sm:$0xff]
  %v38 = vld [vmem:[%s0 + $0xa0] sm:$0xff]
  %v39 = vld [vmem:[%s0 + $0xa8] sm:$0xff]
  %v40 = vld [vmem:[%s0 + $0xb0] sm:$0xff]
  %v41 = vld [vmem:[%s0 + $0xb8] sm:$0xff]
  %v42 = vld [vmem:[%s0 + $0xc0] sm:$0xff]
  %v43 = vld [vmem:[%s0 + $0xc8] sm:$0xff]
  %v44 = vld [vmem:[%s0 + $0xd0] sm:$0xff]
  %v45 = vld [vmem:[%s0 + $0xd8] sm:$0xff]
  %v46 = vld [vmem:[%s0 + $0xe0] sm:$0xff]
  %v47 = vld [vmem:[%s0 + $0xe8] sm:$0xff]
  %v48 = vld [vmem:[%s0 + $0xf0] sm:$0xff]
  %v49 = vld [vmem:[%s0 + $0xf8] sm:$0xff]
  %v50 = vld [vmem:[%s0 + $0x100] sm:$0xff]
  %v51 = vld [vmem:[%s0 + $0x108] sm:$0xff]
  %v52 = vld [vmem:[%s0 + $0x110] sm:$0xff]
  %v53 = vld [vmem:[%s0 + $0x118] sm:$0xff]
  %v54 = vld [vmem:[%s0 + $0x120] sm:$0xff]
  %v55 = vld [vmem:[%s0 + $0x128] sm:$0xff]
  %v56 = vld [vmem:[%s0 + $0x130] sm:$0xff]
  %v57 = vld [vmem:[%s0 + $0x138] sm:$0xff]
  %v58 = vld [vmem:[%s0 + $0x140] sm:$0xff]
  %v59 = vld [vmem:[%s0 + $0x148] sm:$0xff]
  %v60 = vld [vmem:[%s0 + $0x150] sm:$0xff]
  %v61 = vld [vmem:[%s0 + $0x158] sm:$0xff]
  %v62 = vld [vmem:[%s0 + $0x160] sm:$0xff]
  %v63 = vld [vmem:[%s0 + $0x168] sm:$0xff]
  %v64 = vld [vmem:[%s0 + $0x170] sm:$0xff]
  %v65 = vld [vmem:[%s0 + $0x178] sm:$0xff]
  %v66 = vld [vmem:[%s0 + $0x180] sm:$0xff]
  %v67 = vld [vmem:[%s0 + $0x188] sm:$0xff]
  %v68 = vld [vmem:[%s0 + $0x190] sm:$0xff]
  %v69 = vld [vmem:[%s0 + $0x198] sm:$0xff]
  %v70 = vld [vmem:[%s0 + $0x1a0] sm:$0xff]
  %v71 = vld [vmem:[%s0 + $0x1a8] sm:$0xff]
  %v72 = vld [vmem:[%s0 + $0x1b0] sm:$0xff]
  %v73 = vld [vmem:[%s0 + $0x1b8] sm:$0xff]
  %v74 = vld [vmem:[%s0 + $0x1c0] sm:$0xff]
  %v75 = vld [vmem:[%s0 + $0x1c8] sm:$0xff]
  %v76 = vld [vmem:[%s0 + $0x1d0] sm:$0xff]
  %v77 = vld [vmem:[%s0 + $0x1d8] sm:$0xff]
  %v78 = vld [vmem:[%s0 + $0x1e0] sm:$0xff]
  %v79 = vld [vmem:[%s0 + $0x1e8] sm:$0xff]
  %v80 = vld [vmem:[%s0 + $0x1f0] sm:$0xff]
  %v81 = vld [vmem:[%s0 + $0x1f8] sm:$0xff]
  %v82 = vld [vmem:[%s1] sm:$0xf]
  %v83 = vld [vmem:[%s1 + $0x4] sm:$0xf]
  %v84 = vld [vmem:[%s1 + $0x8] sm:$0xf]
  %v85 = vld [vmem:[%s1 + $0xc] sm:$0xf]
  %v86 = vld [vmem:[%s1 + $0x10] sm:$0xf]
  %v87 = vld [vmem:[%s1 + $0x14] sm:$0xf]
  %v88 = vld [vmem:[%s1 + $0x18] sm:$0xf]
  %v89 = vld [vmem:[%s1 + $0x1c] sm:$0xf]
  %v90 = vld [vmem:[%s1 + $0x20] sm:$0xf]
  %v91 = vld [vmem:[%s1 + $0x24] sm:$0xf]
  %v92 = vld [vmem:[%s1 + $0x28] sm:$0xf]
  %v93 = vld [vmem:[%s1 + $0x2c] sm:$0xf]
  %v94 = vld [vmem:[%s1 + $0x30] sm:$0xf]
  %v95 = vld [vmem:[%s1 + $0x34] sm:$0xf]
  %v96 = vld [vmem:[%s1 + $0x38] sm:$0xf]
  %v97 = vld [vmem:[%s1 + $0x3c] sm:$0xf]
  %v98 = vld [vmem:[%s1 + $0x40] sm:$0xf]
  %v99 = vld [vmem:[%s1 + $0x44] sm:$0xf]
  %v100 = vld [vmem:[%s1 + $0x48] sm:$0xf]
  %v101 = vld [vmem:[%s1 + $0x4c] sm:$0xf]
  %v102 = vld [vmem:[%s1 + $0x50] sm:$0xf]
  %v103 = vld [vmem:[%s1 + $0x54] sm:$0xf]
  %v104 = vld [vmem:[%s1 + $0x58] sm:$0xf]
  %v105 = vld [vmem:[%s1 + $0x5c] sm:$0xf]
  %v106 = vld [vmem:[%s1 + $0x60] sm:$0xf]
  %v107 = vld [vmem:[%s1 + $0x64] sm:$0xf]
  %v108 = vld [vmem:[%s1 + $0x68] sm:$0xf]
  %v109 = vld [vmem:[%s1 + $0x6c] sm:$0xf]
  %v110 = vld [vmem:[%s1 + $0x70] sm:$0xf]
  %v111 = vld [vmem:[%s1 + $0x74] sm:$0xf]
  %v112 = vld [vmem:[%s1 + $0x78] sm:$0xf]
  %v113 = vld [vmem:[%s1 + $0x7c] sm:$0xf]
  %v178 = vunpack.c.l.b16 %v18
  %v179 = vunpack.c.h.b16 %v18
  %v180 = vunpack.c.l.b16 %v19
  %v181 = vunpack.c.h.b16 %v19
  %v182 = vunpack.c.l.b16 %v20
  %v183 = vunpack.c.h.b16 %v20
  %v184 = vunpack.c.l.b16 %v21
  %v185 = vunpack.c.h.b16 %v21
  %v186 = vunpack.c.l.b16 %v22
  %v187 = vunpack.c.h.b16 %v22
  %v188 = vunpack.c.l.b16 %v23
  %v189 = vunpack.c.h.b16 %v23
  %v190 = vunpack.c.l.b16 %v24
  %v191 = vunpack.c.h.b16 %v24
  %v192 = vunpack.c.l.b16 %v25
  %v193 = vunpack.c.h.b16 %v25
  %v194 = vunpack.c.l.b16 %v26
  %v195 = vunpack.c.h.b16 %v26
  %v196 = vunpack.c.l.b16 %v27
  %v197 = vunpack.c.h.b16 %v27
  %v198 = vunpack.c.l.b16 %v28
  %v199 = vunpack.c.h.b16 %v28
  %v200 = vunpack.c.l.b16 %v29
  %v201 = vunpack.c.h.b16 %v29
  %v202 = vunpack.c.l.b16 %v30
  %v203 = vunpack.c.h.b16 %v30
  %v204 = vunpack.c.l.b16 %v31
  %v205 = vunpack.c.h.b16 %v31
  %v206 = vunpack.c.l.b16 %v32
  %v207 = vunpack.c.h.b16 %v32
  %v208 = vunpack.c.l.b16 %v33
  %v209 = vunpack.c.h.b16 %v33
  %v210 = vunpack.c.l.b16 %v34
  %v211 = vunpack.c.h.b16 %v34
  %v212 = vunpack.c.l.b16 %v35
  %v213 = vunpack.c.h.b16 %v35
  %v214 = vunpack.c.l.b16 %v36
  %v215 = vunpack.c.h.b16 %v36
  %v216 = vunpack.c.l.b16 %v37
  %v217 = vunpack.c.h.b16 %v37
  %v218 = vunpack.c.l.b16 %v38
  %v219 = vunpack.c.h.b16 %v38
  %v220 = vunpack.c.l.b16 %v39
  %v221 = vunpack.c.h.b16 %v39
  %v222 = vunpack.c.l.b16 %v40
  %v223 = vunpack.c.h.b16 %v40
  %v224 = vunpack.c.l.b16 %v41
  %v225 = vunpack.c.h.b16 %v41
  %v226 = vunpack.c.l.b16 %v42
  %v227 = vunpack.c.h.b16 %v42
  %v228 = vunpack.c.l.b16 %v43
  %v229 = vunpack.c.h.b16 %v43
  %v230 = vunpack.c.l.b16 %v44
  %v231 = vunpack.c.h.b16 %v44
  %v232 = vunpack.c.l.b16 %v45
  %v233 = vunpack.c.h.b16 %v45
  %v234 = vunpack.c.l.b16 %v46
  %v235 = vunpack.c.h.b16 %v46
  %v236 = vunpack.c.l.b16 %v47
  %v237 = vunpack.c.h.b16 %v47
  %v238 = vunpack.c.l.b16 %v48
  %v239 = vunpack.c.h.b16 %v48
  %v240 = vunpack.c.l.b16 %v49
  %v241 = vunpack.c.h.b16 %v49
  %v242 = vunpack.c.l.b16 %v50
  %v243 = vunpack.c.h.b16 %v50
  %v244 = vunpack.c.l.b16 %v51
  %v245 = vunpack.c.h.b16 %v51
  %v246 = vunpack.c.l.b16 %v52
  %v247 = vunpack.c.h.b16 %v52
  %v248 = vunpack.c.l.b16 %v53
  %v249 = vunpack.c.h.b16 %v53
  %v250 = vunpack.c.l.b16 %v54
  %v251 = vunpack.c.h.b16 %v54
  %v252 = vunpack.c.l.b16 %v55
  %v253 = vunpack.c.h.b16 %v55
  %v254 = vunpack.c.l.b16 %v56
  %v255 = vunpack.c.h.b16 %v56
  %v256 = vunpack.c.l.b16 %v57
  %v257 = vunpack.c.h.b16 %v57
  %v258 = vunpack.c.l.b16 %v58
  %v259 = vunpack.c.h.b16 %v58
  %v260 = vunpack.c.l.b16 %v59
  %v261 = vunpack.c.h.b16 %v59
  %v262 = vunpack.c.l.b16 %v60
  %v263 = vunpack.c.h.b16 %v60
  %v264 = vunpack.c.l.b16 %v61
  %v265 = vunpack.c.h.b16 %v61
  %v266 = vunpack.c.l.b16 %v62
  %v267 = vunpack.c.h.b16 %v62
  %v268 = vunpack.c.l.b16 %v63
  %v269 = vunpack.c.h.b16 %v63
  %v270 = vunpack.c.l.b16 %v64
  %v271 = vunpack.c.h.b16 %v64
  %v272 = vunpack.c.l.b16 %v65
  %v273 = vunpack.c.h.b16 %v65
  %v274 = vunpack.c.l.b16 %v66
  %v275 = vunpack.c.h.b16 %v66
  %v276 = vunpack.c.l.b16 %v67
  %v277 = vunpack.c.h.b16 %v67
  %v278 = vunpack.c.l.b16 %v68
  %v279 = vunpack.c.h.b16 %v68
  %v280 = vunpack.c.l.b16 %v69
  %v281 = vunpack.c.h.b16 %v69
  %v282 = vunpack.c.l.b16 %v70
  %v283 = vunpack.c.h.b16 %v70
  %v284 = vunpack.c.l.b16 %v71
  %v285 = vunpack.c.h.b16 %v71
  %v286 = vunpack.c.l.b16 %v72
  %v287 = vunpack.c.h.b16 %v72
  %v288 = vunpack.c.l.b16 %v73
  %v289 = vunpack.c.h.b16 %v73
  %v290 = vunpack.c.l.b16 %v74
  %v291 = vunpack.c.h.b16 %v74
  %v292 = vunpack.c.l.b16 %v75
  %v293 = vunpack.c.h.b16 %v75
  %v294 = vunpack.c.l.b16 %v76
  %v295 = vunpack.c.h.b16 %v76
  %v296 = vunpack.c.l.b16 %v77
  %v297 = vunpack.c.h.b16 %v77
  %v298 = vunpack.c.l.b16 %v78
  %v299 = vunpack.c.h.b16 %v78
  %v300 = vunpack.c.l.b16 %v79
  %v301 = vunpack.c.h.b16 %v79
  %v302 = vunpack.c.l.b16 %v80
  %v303 = vunpack.c.h.b16 %v80
  %v304 = vunpack.c.l.b16 %v81
  %v305 = vunpack.c.h.b16 %v81
  %v306 = vpack.c.b16 %v180, %v178
  %v307 = vpack.c.b16 %v181, %v179
  %v308 = vpack.c.b16 %v184, %v182
  %v309 = vpack.c.b16 %v185, %v183
  %v310 = vpack.c.b16 %v188, %v186
  %v311 = vpack.c.b16 %v189, %v187
  %v312 = vpack.c.b16 %v192, %v190
  %v313 = vpack.c.b16 %v193, %v191
  %v314 = vpack.c.b16 %v196, %v194
  %v315 = vpack.c.b16 %v197, %v195
  %v316 = vpack.c.b16 %v200, %v198
  %v317 = vpack.c.b16 %v201, %v199
  %v318 = vpack.c.b16 %v204, %v202
  %v319 = vpack.c.b16 %v205, %v203
  %v320 = vpack.c.b16 %v208, %v206
  %v321 = vpack.c.b16 %v209, %v207
  %v322 = vpack.c.b16 %v212, %v210
  %v323 = vpack.c.b16 %v213, %v211
  %v324 = vpack.c.b16 %v216, %v214
  %v325 = vpack.c.b16 %v217, %v215
  %v326 = vpack.c.b16 %v220, %v218
  %v327 = vpack.c.b16 %v221, %v219
  %v328 = vpack.c.b16 %v224, %v222
  %v329 = vpack.c.b16 %v225, %v223
  %v330 = vpack.c.b16 %v228, %v226
  %v331 = vpack.c.b16 %v229, %v227
  %v332 = vpack.c.b16 %v232, %v230
  %v333 = vpack.c.b16 %v233, %v231
  %v334 = vpack.c.b16 %v236, %v234
  %v335 = vpack.c.b16 %v237, %v235
  %v336 = vpack.c.b16 %v240, %v238
  %v337 = vpack.c.b16 %v241, %v239
  %v338 = vpack.c.b16 %v244, %v242
  %v339 = vpack.c.b16 %v245, %v243
  %v340 = vpack.c.b16 %v248, %v246
  %v341 = vpack.c.b16 %v249, %v247
  %v342 = vpack.c.b16 %v252, %v250
  %v343 = vpack.c.b16 %v253, %v251
  %v344 = vpack.c.b16 %v256, %v254
  %v345 = vpack.c.b16 %v257, %v255
  %v346 = vpack.c.b16 %v260, %v258
  %v347 = vpack.c.b16 %v261, %v259
  %v348 = vpack.c.b16 %v264, %v262
  %v349 = vpack.c.b16 %v265, %v263
  %v350 = vpack.c.b16 %v268, %v266
  %v351 = vpack.c.b16 %v269, %v267
  %v352 = vpack.c.b16 %v272, %v270
  %v353 = vpack.c.b16 %v273, %v271
  %v354 = vpack.c.b16 %v276, %v274
  %v355 = vpack.c.b16 %v277, %v275
  %v356 = vpack.c.b16 %v280, %v278
  %v357 = vpack.c.b16 %v281, %v279
  %v358 = vpack.c.b16 %v284, %v282
  %v359 = vpack.c.b16 %v285, %v283
  %v360 = vpack.c.b16 %v288, %v286
  %v361 = vpack.c.b16 %v289, %v287
  %v362 = vpack.c.b16 %v292, %v290
  %v363 = vpack.c.b16 %v293, %v291
  %v364 = vpack.c.b16 %v296, %v294
  %v365 = vpack.c.b16 %v297, %v295
  %v366 = vpack.c.b16 %v300, %v298
  %v367 = vpack.c.b16 %v301, %v299
  %v368 = vpack.c.b16 %v304, %v302
  %v369 = vpack.c.b16 %v305, %v303
  %v466 = vunpack.c.l.b16 %v82
  %v467 = vunpack.c.l.b16 %v83
  %v468 = vunpack.c.l.b16 %v84
  %v469 = vunpack.c.l.b16 %v85
  %v470 = vunpack.c.l.b16 %v86
  %v471 = vunpack.c.l.b16 %v87
  %v472 = vunpack.c.l.b16 %v88
  %v473 = vunpack.c.l.b16 %v89
  %v474 = vunpack.c.l.b16 %v90
  %v475 = vunpack.c.l.b16 %v91
  %v476 = vunpack.c.l.b16 %v92
  %v477 = vunpack.c.l.b16 %v93
  %v478 = vunpack.c.l.b16 %v94
  %v479 = vunpack.c.l.b16 %v95
  %v480 = vunpack.c.l.b16 %v96
  %v481 = vunpack.c.l.b16 %v97
  %v482 = vunpack.c.l.b16 %v98
  %v483 = vunpack.c.l.b16 %v99
  %v484 = vunpack.c.l.b16 %v100
  %v485 = vunpack.c.l.b16 %v101
  %v486 = vunpack.c.l.b16 %v102
  %v487 = vunpack.c.l.b16 %v103
  %v488 = vunpack.c.l.b16 %v104
  %v489 = vunpack.c.l.b16 %v105
  %v490 = vunpack.c.l.b16 %v106
  %v491 = vunpack.c.l.b16 %v107
  %v492 = vunpack.c.l.b16 %v108
  %v493 = vunpack.c.l.b16 %v109
  %v494 = vunpack.c.l.b16 %v110
  %v495 = vunpack.c.l.b16 %v111
  %v496 = vunpack.c.l.b16 %v112
  %v497 = vunpack.c.l.b16 %v113
  %v498 = vpack.c.b16 %v467, %v466
  %v499 = vpack.c.b16 %v469, %v468
  %v500 = vpack.c.b16 %v471, %v470
  %v501 = vpack.c.b16 %v473, %v472
  %v502 = vpack.c.b16 %v475, %v474
  %v503 = vpack.c.b16 %v477, %v476
  %v504 = vpack.c.b16 %v479, %v478
  %v505 = vpack.c.b16 %v481, %v480
  %v506 = vpack.c.b16 %v483, %v482
  %v507 = vpack.c.b16 %v485, %v484
  %v508 = vpack.c.b16 %v487, %v486
  %v509 = vpack.c.b16 %v489, %v488
  %v510 = vpack.c.b16 %v491, %v490
  %v511 = vpack.c.b16 %v493, %v492
  %v512 = vpack.c.b16 %v495, %v494
  %v513 = vpack.c.b16 %v497, %v496
  %530 = vmatprep.subr.bf16.mxu0 0
  %531 = vmatpush1.bf16.msra.mxu0 %v498
  %532 = vmatprep.subr.bf16.mxu0 0
  %533 = vmatpush1.bf16.msra.mxu0 %v499
  %534 = vmatprep.subr.bf16.mxu0 0
  %535 = vmatpush1.bf16.msra.mxu0 %v500
  %536 = vmatprep.subr.bf16.mxu0 0
  %537 = vmatpush1.bf16.msra.mxu0 %v501
  %538 = vmatprep.subr.bf16.mxu0 0
  %539 = vmatpush1.bf16.msra.mxu0 %v502
  %540 = vmatprep.subr.bf16.mxu0 0
  %541 = vmatpush1.bf16.msra.mxu0 %v503
  %542 = vmatprep.subr.bf16.mxu0 0
  %543 = vmatpush1.bf16.msra.mxu0 %v504
  %544 = vmatprep.subr.bf16.mxu0 0
  %545 = vmatpush1.bf16.msra.mxu0 %v505
  %546 = vmatprep.subr.bf16.mxu0 0
  %547 = vmatpush1.bf16.msra.mxu0 %v506
  %548 = vmatprep.subr.bf16.mxu0 0
  %549 = vmatpush1.bf16.msra.mxu0 %v507
  %550 = vmatprep.subr.bf16.mxu0 0
  %551 = vmatpush1.bf16.msra.mxu0 %v508
  %552 = vmatprep.subr.bf16.mxu0 0
  %553 = vmatpush1.bf16.msra.mxu0 %v509
  %554 = vmatprep.subr.bf16.mxu0 0
  %555 = vmatpush1.bf16.msra.mxu0 %v510
  %556 = vmatprep.subr.bf16.mxu0 0
  %557 = vmatpush1.bf16.msra.mxu0 %v511
  %558 = vmatprep.subr.bf16.mxu0 0
  %559 = vmatpush1.bf16.msra.mxu0 %v512
  %560 = vmatprep.subr.bf16.mxu0 0
  %561 = vmatpush1.bf16.msra.mxu0 %v513
  %562 = vmatprep.mubr.bf16.mxu0 %v307
  %563 = vmatmul.mubr.bf16.gmra.mrb[0].mxu0 %v306
  %v564 = vpop.f32.mrb[0].mxu0
  %v565 = vadd.f32 0.0, %v564
  %v566 = vpop.f32.mrb[0].mxu0
  %v567 = vpop.f32.mrb[0].mxu0
  %v568 = vadd.f32 0.0, %v567
  %v569 = vpop.f32.mrb[0].mxu0
  %570 = vmatprep.mubr.bf16.mxu0 %v309
  %571 = vmatmul.mubr.bf16.gmra.mrb[0].mxu0 %v308
  %v572 = vpop.f32.mrb[0].mxu0
  %v573 = vadd.f32 0.0, %v572
  %v574 = vpop.f32.mrb[0].mxu0
  %v575 = vpop.f32.mrb[0].mxu0
  %v576 = vadd.f32 0.0, %v575
  %v577 = vpop.f32.mrb[0].mxu0
  %578 = vmatprep.mubr.bf16.mxu0 %v311
  %579 = vmatmul.mubr.bf16.gmra.mrb[0].mxu0 %v310
  %v580 = vpop.f32.mrb[0].mxu0
  %v581 = vadd.f32 0.0, %v580
  %v582 = vpop.f32.mrb[0].mxu0
  %v583 = vpop.f32.mrb[0].mxu0
  %v584 = vadd.f32 0.0, %v583
  %v585 = vpop.f32.mrb[0].mxu0
  %586 = vmatprep.mubr.bf16.mxu0 %v313
  %587 = vmatmul.mubr.bf16.gmra.mrb[0].mxu0 %v312
  %v588 = vpop.f32.mrb[0].mxu0
  %v589 = vadd.f32 0.0, %v588
  %v590 = vpop.f32.mrb[0].mxu0
  %v591 = vpop.f32.mrb[0].mxu0
  %v592 = vadd.f32 0.0, %v591
  %v593 = vpop.f32.mrb[0].mxu0
  %594 = vmatprep.mubr.bf16.mxu0 %v315
  %595 = vmatmul.mubr.bf16.gmra.mrb[0].mxu0 %v314
  %v596 = vpop.f32.mrb[0].mxu0
  %v597 = vadd.f32 0.0, %v596
  %v598 = vpop.f32.mrb[0].mxu0
  %v599 = vpop.f32.mrb[0].mxu0
  %v600 = vadd.f32 0.0, %v599
  %v601 = vpop.f32.mrb[0].mxu0
  %602 = vmatprep.mubr.bf16.mxu0 %v317
  %603 = vmatmul.mubr.bf16.gmra.mrb[0].mxu0 %v316
  %v604 = vpop.f32.mrb[0].mxu0
  %v605 = vadd.f32 0.0, %v604
  %v606 = vpop.f32.mrb[0].mxu0
  %v607 = vpop.f32.mrb[0].mxu0
  %v608 = vadd.f32 0.0, %v607
  %v609 = vpop.f32.mrb[0].mxu0
  %610 = vmatprep.mubr.bf16.mxu0 %v319
  %611 = vmatmul.mubr.bf16.gmra.mrb[0].mxu0 %v318
  %v612 = vpop.f32.mrb[0].mxu0
  %v613 = vadd.f32 0.0, %v612
  %v614 = vpop.f32.mrb[0].mxu0
  %v615 = vpop.f32.mrb[0].mxu0
  %v616 = vadd.f32 0.0, %v615
  %v617 = vpop.f32.mrb[0].mxu0
  %618 = vmatprep.mubr.bf16.mxu0 %v321
  %619 = vmatmul.mubr.bf16.gmra.mrb[0].mxu0 %v320
  %v620 = vpop.f32.mrb[0].mxu0
  %v621 = vadd.f32 0.0, %v620
  %v622 = vpop.f32.mrb[0].mxu0
  %v623 = vpop.f32.mrb[0].mxu0
  %v624 = vadd.f32 0.0, %v623
  %v625 = vpop.f32.mrb[0].mxu0
  %626 = vmatprep.mubr.bf16.mxu0 %v323
  %627 = vmatmul.mubr.bf16.gmra.mrb[0].mxu0 %v322
  %v628 = vpop.f32.mrb[0].mxu0
  %v629 = vadd.f32 0.0, %v628
  %v630 = vpop.f32.mrb[0].mxu0
  %v631 = vpop.f32.mrb[0].mxu0
  %v632 = vadd.f32 0.0, %v631
  %v633 = vpop.f32.mrb[0].mxu0
  %634 = vmatprep.mubr.bf16.mxu0 %v325
  %635 = vmatmul.mubr.bf16.gmra.mrb[0].mxu0 %v324
  %v636 = vpop.f32.mrb[0].mxu0
  %v637 = vadd.f32 0.0, %v636
  %v638 = vpop.f32.mrb[0].mxu0
  %v639 = vpop.f32.mrb[0].mxu0
  %v640 = vadd.f32 0.0, %v639
  %v641 = vpop.f32.mrb[0].mxu0
  %642 = vmatprep.mubr.bf16.mxu0 %v327
  %643 = vmatmul.mubr.bf16.gmra.mrb[0].mxu0 %v326
  %v644 = vpop.f32.mrb[0].mxu0
  %v645 = vadd.f32 0.0, %v644
  %v646 = vpop.f32.mrb[0].mxu0
  %v647 = vpop.f32.mrb[0].mxu0
  %v648 = vadd.f32 0.0, %v647
  %v649 = vpop.f32.mrb[0].mxu0
  %650 = vmatprep.mubr.bf16.mxu0 %v329
  %651 = vmatmul.mubr.bf16.gmra.mrb[0].mxu0 %v328
  %v652 = vpop.f32.mrb[0].mxu0
  %v653 = vadd.f32 0.0, %v652
  %v654 = vpop.f32.mrb[0].mxu0
  %v655 = vpop.f32.mrb[0].mxu0
  %v656 = vadd.f32 0.0, %v655
  %v657 = vpop.f32.mrb[0].mxu0
  %658 = vmatprep.mubr.bf16.mxu0 %v331
  %659 = vmatmul.mubr.bf16.gmra.mrb[0].mxu0 %v330
  %v660 = vpop.f32.mrb[0].mxu0
  %v661 = vadd.f32 0.0, %v660
  %v662 = vpop.f32.mrb[0].mxu0
  %v663 = vpop.f32.mrb[0].mxu0
  %v664 = vadd.f32 0.0, %v663
  %v665 = vpop.f32.mrb[0].mxu0
  %666 = vmatprep.mubr.bf16.mxu0 %v333
  %667 = vmatmul.mubr.bf16.gmra.mrb[0].mxu0 %v332
  %v668 = vpop.f32.mrb[0].mxu0
  %v669 = vadd.f32 0.0, %v668
  %v670 = vpop.f32.mrb[0].mxu0
  %v671 = vpop.f32.mrb[0].mxu0
  %v672 = vadd.f32 0.0, %v671
  %v673 = vpop.f32.mrb[0].mxu0
  %674 = vmatprep.mubr.bf16.mxu0 %v335
  %675 = vmatmul.mubr.bf16.gmra.mrb[0].mxu0 %v334
  %v676 = vpop.f32.mrb[0].mxu0
  %v677 = vadd.f32 0.0, %v676
  %v678 = vpop.f32.mrb[0].mxu0
  %v679 = vpop.f32.mrb[0].mxu0
  %v680 = vadd.f32 0.0, %v679
  %v681 = vpop.f32.mrb[0].mxu0
  %682 = vmatprep.mubr.bf16.mxu0 %v337
  %683 = vmatmul.mubr.bf16.gmra.mrb[0].mxu0 %v336
  %v684 = vpop.f32.mrb[0].mxu0
  %v685 = vadd.f32 0.0, %v684
  %v686 = vpop.f32.mrb[0].mxu0
  %v687 = vpop.f32.mrb[0].mxu0
  %v688 = vadd.f32 0.0, %v687
  %v689 = vpop.f32.mrb[0].mxu0
  %690 = vmatprep.mubr.bf16.mxu0 %v339
  %691 = vmatmul.mubr.bf16.gmra.mrb[0].mxu0 %v338
  %v692 = vpop.f32.mrb[0].mxu0
  %v693 = vadd.f32 0.0, %v692
  %v694 = vpop.f32.mrb[0].mxu0
  %v695 = vpop.f32.mrb[0].mxu0
  %v696 = vadd.f32 0.0, %v695
  %v697 = vpop.f32.mrb[0].mxu0
  %698 = vmatprep.mubr.bf16.mxu0 %v341
  %699 = vmatmul.mubr.bf16.gmra.mrb[0].mxu0 %v340
  %v700 = vpop.f32.mrb[0].mxu0
  %v701 = vadd.f32 0.0, %v700
  %v702 = vpop.f32.mrb[0].mxu0
  %v703 = vpop.f32.mrb[0].mxu0
  %v704 = vadd.f32 0.0, %v703
  %v705 = vpop.f32.mrb[0].mxu0
  %706 = vmatprep.mubr.bf16.mxu0 %v343
  %707 = vmatmul.mubr.bf16.gmra.mrb[0].mxu0 %v342
  %v708 = vpop.f32.mrb[0].mxu0
  %v709 = vadd.f32 0.0, %v708
  %v710 = vpop.f32.mrb[0].mxu0
  %v711 = vpop.f32.mrb[0].mxu0
  %v712 = vadd.f32 0.0, %v711
  %v713 = vpop.f32.mrb[0].mxu0
  %714 = vmatprep.mubr.bf16.mxu0 %v345
  %715 = vmatmul.mubr.bf16.gmra.mrb[0].mxu0 %v344
  %v716 = vpop.f32.mrb[0].mxu0
  %v717 = vadd.f32 0.0, %v716
  %v718 = vpop.f32.mrb[0].mxu0
  %v719 = vpop.f32.mrb[0].mxu0
  %v720 = vadd.f32 0.0, %v719
  %v721 = vpop.f32.mrb[0].mxu0
  %722 = vmatprep.mubr.bf16.mxu0 %v347
  %723 = vmatmul.mubr.bf16.gmra.mrb[0].mxu0 %v346
  %v724 = vpop.f32.mrb[0].mxu0
  %v725 = vadd.f32 0.0, %v724
  %v726 = vpop.f32.mrb[0].mxu0
  %v727 = vpop.f32.mrb[0].mxu0
  %v728 = vadd.f32 0.0, %v727
  %v729 = vpop.f32.mrb[0].mxu0
  %730 = vmatprep.mubr.bf16.mxu0 %v349
  %731 = vmatmul.mubr.bf16.gmra.mrb[0].mxu0 %v348
  %v732 = vpop.f32.mrb[0].mxu0
  %v733 = vadd.f32 0.0, %v732
  %v734 = vpop.f32.mrb[0].mxu0
  %v735 = vpop.f32.mrb[0].mxu0
  %v736 = vadd.f32 0.0, %v735
  %v737 = vpop.f32.mrb[0].mxu0
  %738 = vmatprep.mubr.bf16.mxu0 %v351
  %739 = vmatmul.mubr.bf16.gmra.mrb[0].mxu0 %v350
  %v740 = vpop.f32.mrb[0].mxu0
  %v741 = vadd.f32 0.0, %v740
  %v742 = vpop.f32.mrb[0].mxu0
  %v743 = vpop.f32.mrb[0].mxu0
  %v744 = vadd.f32 0.0, %v743
  %v745 = vpop.f32.mrb[0].mxu0
  %746 = vmatprep.mubr.bf16.mxu0 %v353
  %747 = vmatmul.mubr.bf16.gmra.mrb[0].mxu0 %v352
  %v748 = vpop.f32.mrb[0].mxu0
  %v749 = vadd.f32 0.0, %v748
  %v750 = vpop.f32.mrb[0].mxu0
  %v751 = vpop.f32.mrb[0].mxu0
  %v752 = vadd.f32 0.0, %v751
  %v753 = vpop.f32.mrb[0].mxu0
  %754 = vmatprep.mubr.bf16.mxu0 %v355
  %755 = vmatmul.mubr.bf16.gmra.mrb[0].mxu0 %v354
  %v756 = vpop.f32.mrb[0].mxu0
  %v757 = vadd.f32 0.0, %v756
  %v758 = vpop.f32.mrb[0].mxu0
  %v759 = vpop.f32.mrb[0].mxu0
  %v760 = vadd.f32 0.0, %v759
  %v761 = vpop.f32.mrb[0].mxu0
  %762 = vmatprep.mubr.bf16.mxu0 %v357
  %763 = vmatmul.mubr.bf16.gmra.mrb[0].mxu0 %v356
  %v764 = vpop.f32.mrb[0].mxu0
  %v765 = vadd.f32 0.0, %v764
  %v766 = vpop.f32.mrb[0].mxu0
  %v767 = vpop.f32.mrb[0].mxu0
  %v768 = vadd.f32 0.0, %v767
  %v769 = vpop.f32.mrb[0].mxu0
  %770 = vmatprep.mubr.bf16.mxu0 %v359
  %771 = vmatmul.mubr.bf16.gmra.mrb[0].mxu0 %v358
  %v772 = vpop.f32.mrb[0].mxu0
  %v773 = vadd.f32 0.0, %v772
  %v774 = vpop.f32.mrb[0].mxu0
  %v775 = vpop.f32.mrb[0].mxu0
  %v776 = vadd.f32 0.0, %v775
  %v777 = vpop.f32.mrb[0].mxu0
  %778 = vmatprep.mubr.bf16.mxu0 %v361
  %779 = vmatmul.mubr.bf16.gmra.mrb[0].mxu0 %v360
  %v780 = vpop.f32.mrb[0].mxu0
  %v781 = vadd.f32 0.0, %v780
  %v782 = vpop.f32.mrb[0].mxu0
  %v783 = vpop.f32.mrb[0].mxu0
  %v784 = vadd.f32 0.0, %v783
  %v785 = vpop.f32.mrb[0].mxu0
  %786 = vmatprep.mubr.bf16.mxu0 %v363
  %787 = vmatmul.mubr.bf16.gmra.mrb[0].mxu0 %v362
  %v788 = vpop.f32.mrb[0].mxu0
  %v789 = vadd.f32 0.0, %v788
  %v790 = vpop.f32.mrb[0].mxu0
  %v791 = vpop.f32.mrb[0].mxu0
  %v792 = vadd.f32 0.0, %v791
  %v793 = vpop.f32.mrb[0].mxu0
  %794 = vmatprep.mubr.bf16.mxu0 %v365
  %795 = vmatmul.mubr.bf16.gmra.mrb[0].mxu0 %v364
  %v796 = vpop.f32.mrb[0].mxu0
  %v797 = vadd.f32 0.0, %v796
  %v798 = vpop.f32.mrb[0].mxu0
  %v799 = vpop.f32.mrb[0].mxu0
  %v800 = vadd.f32 0.0, %v799
  %v801 = vpop.f32.mrb[0].mxu0
  %802 = vmatprep.mubr.bf16.mxu0 %v367
  %803 = vmatmul.mubr.bf16.gmra.mrb[0].mxu0 %v366
  %v804 = vpop.f32.mrb[0].mxu0
  %v805 = vadd.f32 0.0, %v804
  %v806 = vpop.f32.mrb[0].mxu0
  %v807 = vpop.f32.mrb[0].mxu0
  %v808 = vadd.f32 0.0, %v807
  %v809 = vpop.f32.mrb[0].mxu0
  %810 = vmatprep.mubr.bf16.mxu0 %v369
  %811 = vmatmul.mubr.bf16.gmra.mrb[0].mxu0 %v368
  %v812 = vpop.f32.mrb[0].mxu0
  %v813 = vadd.f32 0.0, %v812
  %v814 = vpop.f32.mrb[0].mxu0
  %v815 = vpop.f32.mrb[0].mxu0
  %v816 = vadd.f32 0.0, %v815
  %v817 = vpop.f32.mrb[0].mxu0
  %818 = vdwg.mxu0
  %v819 = vadd.f32 %v565, %v568
  %v820 = vadd.f32 %v819, %v573
  %v821 = vadd.f32 %v820, %v576
  %v822 = vadd.f32 %v821, %v581
  %v823 = vadd.f32 %v822, %v584
  %v824 = vadd.f32 %v823, %v589
  %v825 = vadd.f32 %v824, %v592
  %v826 = vadd.f32 %v825, %v597
  %v827 = vadd.f32 %v826, %v600
  %v828 = vadd.f32 %v827, %v605
  %v829 = vadd.f32 %v828, %v608
  %v830 = vadd.f32 %v829, %v613
  %v831 = vadd.f32 %v830, %v616
  %v832 = vadd.f32 %v831, %v621
  %v833 = vadd.f32 %v832, %v624
  %v834 = vadd.f32 %v833, %v629
  %v835 = vadd.f32 %v834, %v632
  %v836 = vadd.f32 %v835, %v637
  %v837 = vadd.f32 %v836, %v640
  %v838 = vadd.f32 %v837, %v645
  %v839 = vadd.f32 %v838, %v648
  %v840 = vadd.f32 %v839, %v653
  %v841 = vadd.f32 %v840, %v656
  %v842 = vadd.f32 %v841, %v661
  %v843 = vadd.f32 %v842, %v664
  %v844 = vadd.f32 %v843, %v669
  %v845 = vadd.f32 %v844, %v672
  %v846 = vadd.f32 %v845, %v677
  %v847 = vadd.f32 %v846, %v680
  %v848 = vadd.f32 %v847, %v685
  %v849 = vadd.f32 %v848, %v688
  %v850 = vadd.f32 %v849, %v693
  %v851 = vadd.f32 %v850, %v696
  %v852 = vadd.f32 %v851, %v701
  %v853 = vadd.f32 %v852, %v704
  %v854 = vadd.f32 %v853, %v709
  %v855 = vadd.f32 %v854, %v712
  %v856 = vadd.f32 %v855, %v717
  %v857 = vadd.f32 %v856, %v720
  %v858 = vadd.f32 %v857, %v725
  %v859 = vadd.f32 %v858, %v728
  %v860 = vadd.f32 %v859, %v733
  %v861 = vadd.f32 %v860, %v736
  %v862 = vadd.f32 %v861, %v741
  %v863 = vadd.f32 %v862, %v744
  %v864 = vadd.f32 %v863, %v749
  %v865 = vadd.f32 %v864, %v752
  %v866 = vadd.f32 %v865, %v757
  %v867 = vadd.f32 %v866, %v760
  %v868 = vadd.f32 %v867, %v765
  %v869 = vadd.f32 %v868, %v768
  %v870 = vadd.f32 %v869, %v773
  %v871 = vadd.f32 %v870, %v776
  %v872 = vadd.f32 %v871, %v781
  %v873 = vadd.f32 %v872, %v784
  %v874 = vadd.f32 %v873, %v789
  %v875 = vadd.f32 %v874, %v792
  %v876 = vadd.f32 %v875, %v797
  %v877 = vadd.f32 %v876, %v800
  %v878 = vadd.f32 %v877, %v805
  %v879 = vadd.f32 %v878, %v808
  %v880 = vadd.f32 %v879, %v813
  %v881 = vadd.f32 %v880, %v816
  %v882 = vrot.slane %v881, 4
  %v883 = vadd.f32 %v881, %v882
  %v884 = vrot.slane %v883, 2
  %v885 = vadd.f32 %v883, %v884
  %v886 = vrot.slane %v885, 1
  %v887 = vadd.f32 %v885, %v886
  %v888 = vmul.f32 %v887, 0.001953125
  %v889 = vmul.f32 %v565, %v565
  %v890 = vmul.f32 %v568, %v568
  %v891 = vmul.f32 %v573, %v573
  %v892 = vmul.f32 %v576, %v576
  %v893 = vmul.f32 %v581, %v581
  %v894 = vmul.f32 %v584, %v584
  %v895 = vmul.f32 %v589, %v589
  %v896 = vmul.f32 %v592, %v592
  %v897 = vmul.f32 %v597, %v597
  %v898 = vmul.f32 %v600, %v600
  %v899 = vmul.f32 %v605, %v605
  %v900 = vmul.f32 %v608, %v608
  %v901 = vmul.f32 %v613, %v613
  %v902 = vmul.f32 %v616, %v616
  %v903 = vmul.f32 %v621, %v621
  %v904 = vmul.f32 %v624, %v624
  %v905 = vmul.f32 %v629, %v629
  %v906 = vmul.f32 %v632, %v632
  %v907 = vmul.f32 %v637, %v637
  %v908 = vmul.f32 %v640, %v640
  %v909 = vmul.f32 %v645, %v645
  %v910 = vmul.f32 %v648, %v648
  %v911 = vmul.f32 %v653, %v653
  %v912 = vmul.f32 %v656, %v656
  %v913 = vmul.f32 %v661, %v661
  %v914 = vmul.f32 %v664, %v664
  %v915 = vmul.f32 %v669, %v669
  %v916 = vmul.f32 %v672, %v672
  %v917 = vmul.f32 %v677, %v677
  %v918 = vmul.f32 %v680, %v680
  %v919 = vmul.f32 %v685, %v685
  %v920 = vmul.f32 %v688, %v688
  %v921 = vmul.f32 %v693, %v693
  %v922 = vmul.f32 %v696, %v696
  %v923 = vmul.f32 %v701, %v701
  %v924 = vmul.f32 %v704, %v704
  %v925 = vmul.f32 %v709, %v709
  %v926 = vmul.f32 %v712, %v712
  %v927 = vmul.f32 %v717, %v717
  %v928 = vmul.f32 %v720, %v720
  %v929 = vmul.f32 %v725, %v725
  %v930 = vmul.f32 %v728, %v728
  %v931 = vmul.f32 %v733, %v733
  %v932 = vmul.f32 %v736, %v736
  %v933 = vmul.f32 %v741, %v741
  %v934 = vmul.f32 %v744, %v744
  %v935 = vmul.f32 %v749, %v749
  %v936 = vmul.f32 %v752, %v752
  %v937 = vmul.f32 %v757, %v757
  %v938 = vmul.f32 %v760, %v760
  %v939 = vmul.f32 %v765, %v765
  %v940 = vmul.f32 %v768, %v768
  %v941 = vmul.f32 %v773, %v773
  %v942 = vmul.f32 %v776, %v776
  %v943 = vmul.f32 %v781, %v781
  %v944 = vmul.f32 %v784, %v784
  %v945 = vmul.f32 %v789, %v789
  %v946 = vmul.f32 %v792, %v792
  %v947 = vmul.f32 %v797, %v797
  %v948 = vmul.f32 %v800, %v800
  %v949 = vmul.f32 %v805, %v805
  %v950 = vmul.f32 %v808, %v808
  %v951 = vmul.f32 %v813, %v813
  %v952 = vmul.f32 %v816, %v816
  %v953 = vadd.f32 %v889, %v890
  %v954 = vadd.f32 %v953, %v891
  %v955 = vadd.f32 %v954, %v892
  %v956 = vadd.f32 %v955, %v893
  %v957 = vadd.f32 %v956, %v894
  %v958 = vadd.f32 %v957, %v895
  %v959 = vadd.f32 %v958, %v896
  %v960 = vadd.f32 %v959, %v897
  %v961 = vadd.f32 %v960, %v898
  %v962 = vadd.f32 %v961, %v899
  %v963 = vadd.f32 %v962, %v900
  %v964 = vadd.f32 %v963, %v901
  %v965 = vadd.f32 %v964, %v902
  %v966 = vadd.f32 %v965, %v903
  %v967 = vadd.f32 %v966, %v904
  %v968 = vadd.f32 %v967, %v905
  %v969 = vadd.f32 %v968, %v906
  %v970 = vadd.f32 %v969, %v907
  %v971 = vadd.f32 %v970, %v908
  %v972 = vadd.f32 %v971, %v909
  %v973 = vadd.f32 %v972, %v910
  %v974 = vadd.f32 %v973, %v911
  %v975 = vadd.f32 %v974, %v912
  %v976 = vadd.f32 %v975, %v913
  %v977 = vadd.f32 %v976, %v914
  %v978 = vadd.f32 %v977, %v915
  %v979 = vadd.f32 %v978, %v916
  %v980 = vadd.f32 %v979, %v917
  %v981 = vadd.f32 %v980, %v918
  %v982 = vadd.f32 %v981, %v919
  %v983 = vadd.f32 %v982, %v920
  %v984 = vadd.f32 %v983, %v921
  %v985 = vadd.f32 %v984, %v922
  %v986 = vadd.f32 %v985, %v923
  %v987 = vadd.f32 %v986, %v924
  %v988 = vadd.f32 %v987, %v925
  %v989 = vadd.f32 %v988, %v926
  %v990 = vadd.f32 %v989, %v927
  %v991 = vadd.f32 %v990, %v928
  %v992 = vadd.f32 %v991, %v929
  %v993 = vadd.f32 %v992, %v930
  %v994 = vadd.f32 %v993, %v931
  %v995 = vadd.f32 %v994, %v932
  %v996 = vadd.f32 %v995, %v933
  %v997 = vadd.f32 %v996, %v934
  %v998 = vadd.f32 %v997, %v935
  %v999 = vadd.f32 %v998, %v936
  %v1000 = vadd.f32 %v999, %v937
  %v1001 = vadd.f32 %v1000, %v938
  %v1002 = vadd.f32 %v1001, %v939
  %v1003 = vadd.f32 %v1002, %v940
  %v1004 = vadd.f32 %v1003, %v941
  %v1005 = vadd.f32 %v1004, %v942
  %v1006 = vadd.f32 %v1005, %v943
  %v1007 = vadd.f32 %v1006, %v944
  %v1008 = vadd.f32 %v1007, %v945
  %v1009 = vadd.f32 %v1008, %v946
  %v1010 = vadd.f32 %v1009, %v947
  %v1011 = vadd.f32 %v1010, %v948
  %v1012 = vadd.f32 %v1011, %v949
  %v1013 = vadd.f32 %v1012, %v950
  %v1014 = vadd.f32 %v1013, %v951
  %v1015 = vadd.f32 %v1014, %v952
  %v1016 = vrot.slane %v1015, 4
  %v1017 = vadd.f32 %v1015, %v1016
  %v1018 = vrot.slane %v1017, 2
  %v1019 = vadd.f32 %v1017, %v1018
  %v1020 = vrot.slane %v1019, 1
  %v1021 = vadd.f32 %v1019, %v1020
  %v1022 = vmul.f32 %v1021, 0.001953125
  %v1023 = vmul.f32 %v888, %v888
  %v1024 = vsub.f32 %v1022, %v1023
  %v1025 = vmax.f32 %v1024, 0.0
  %v1026 = vld [vmem:[%s2] sm:$0x1]
  %v1027 = vadd.f32 %v1025, 1e-05
  %v1028 = vrsqrt.pop %v1027
  %v1029 = vmul.f32 %v1026, %v1028
  %v1030 = vld [vmem:[%s3] sm:$0x1]
  %v1031 = vmul.f32 %v888, %v1029
  %v1032 = vsub.f32 %v1030, %v1031
  %v1034 = vlaneseq
  %v1035 = vshrl.u32 %v1034, 7
  %v1036 = vsub.s32 0, %v1035
  %v1037 = vrot.slane %v1029, %v1036
  %v1039 = vmul.f32 %v565, %v1037
  %v1040 = vmul.f32 %v568, %v1037
  %v1041 = vmul.f32 %v573, %v1037
  %v1042 = vmul.f32 %v576, %v1037
  %v1043 = vmul.f32 %v581, %v1037
  %v1044 = vmul.f32 %v584, %v1037
  %v1045 = vmul.f32 %v589, %v1037
  %v1046 = vmul.f32 %v592, %v1037
  %v1047 = vmul.f32 %v597, %v1037
  %v1048 = vmul.f32 %v600, %v1037
  %v1049 = vmul.f32 %v605, %v1037
  %v1050 = vmul.f32 %v608, %v1037
  %v1051 = vmul.f32 %v613, %v1037
  %v1052 = vmul.f32 %v616, %v1037
  %v1053 = vmul.f32 %v621, %v1037
  %v1054 = vmul.f32 %v624, %v1037
  %v1055 = vmul.f32 %v629, %v1037
  %v1056 = vmul.f32 %v632, %v1037
  %v1057 = vmul.f32 %v637, %v1037
  %v1058 = vmul.f32 %v640, %v1037
  %v1059 = vmul.f32 %v645, %v1037
  %v1060 = vmul.f32 %v648, %v1037
  %v1061 = vmul.f32 %v653, %v1037
  %v1062 = vmul.f32 %v656, %v1037
  %v1063 = vmul.f32 %v661, %v1037
  %v1064 = vmul.f32 %v664, %v1037
  %v1065 = vmul.f32 %v669, %v1037
  %v1066 = vmul.f32 %v672, %v1037
  %v1067 = vmul.f32 %v677, %v1037
  %v1068 = vmul.f32 %v680, %v1037
  %v1069 = vmul.f32 %v685, %v1037
  %v1070 = vmul.f32 %v688, %v1037
  %v1071 = vmul.f32 %v693, %v1037
  %v1072 = vmul.f32 %v696, %v1037
  %v1073 = vmul.f32 %v701, %v1037
  %v1074 = vmul.f32 %v704, %v1037
  %v1075 = vmul.f32 %v709, %v1037
  %v1076 = vmul.f32 %v712, %v1037
  %v1077 = vmul.f32 %v717, %v1037
  %v1078 = vmul.f32 %v720, %v1037
  %v1079 = vmul.f32 %v725, %v1037
  %v1080 = vmul.f32 %v728, %v1037
  %v1081 = vmul.f32 %v733, %v1037
  %v1082 = vmul.f32 %v736, %v1037
  %v1083 = vmul.f32 %v741, %v1037
  %v1084 = vmul.f32 %v744, %v1037
  %v1085 = vmul.f32 %v749, %v1037
  %v1086 = vmul.f32 %v752, %v1037
  %v1087 = vmul.f32 %v757, %v1037
  %v1088 = vmul.f32 %v760, %v1037
  %v1089 = vmul.f32 %v765, %v1037
  %v1090 = vmul.f32 %v768, %v1037
  %v1091 = vmul.f32 %v773, %v1037
  %v1092 = vmul.f32 %v776, %v1037
  %v1093 = vmul.f32 %v781, %v1037
  %v1094 = vmul.f32 %v784, %v1037
  %v1095 = vmul.f32 %v789, %v1037
  %v1096 = vmul.f32 %v792, %v1037
  %v1097 = vmul.f32 %v797, %v1037
  %v1098 = vmul.f32 %v800, %v1037
  %v1099 = vmul.f32 %v805, %v1037
  %v1100 = vmul.f32 %v808, %v1037
  %v1101 = vmul.f32 %v813, %v1037
  %v1102 = vmul.f32 %v816, %v1037
  %v1104 = vlaneseq
  %v1105 = vshrl.u32 %v1104, 7
  %v1106 = vsub.s32 0, %v1105
  %v1107 = vrot.slane %v1032, %v1106
  %v1109 = vadd.f32 %v1039, %v1107
  %v1110 = vadd.f32 %v1040, %v1107
  %v1111 = vadd.f32 %v1041, %v1107
  %v1112 = vadd.f32 %v1042, %v1107
  %v1113 = vadd.f32 %v1043, %v1107
  %v1114 = vadd.f32 %v1044, %v1107
  %v1115 = vadd.f32 %v1045, %v1107
  %v1116 = vadd.f32 %v1046, %v1107
  %v1117 = vadd.f32 %v1047, %v1107
  %v1118 = vadd.f32 %v1048, %v1107
  %v1119 = vadd.f32 %v1049, %v1107
  %v1120 = vadd.f32 %v1050, %v1107
  %v1121 = vadd.f32 %v1051, %v1107
  %v1122 = vadd.f32 %v1052, %v1107
  %v1123 = vadd.f32 %v1053, %v1107
  %v1124 = vadd.f32 %v1054, %v1107
  %v1125 = vadd.f32 %v1055, %v1107
  %v1126 = vadd.f32 %v1056, %v1107
  %v1127 = vadd.f32 %v1057, %v1107
  %v1128 = vadd.f32 %v1058, %v1107
  %v1129 = vadd.f32 %v1059, %v1107
  %v1130 = vadd.f32 %v1060, %v1107
  %v1131 = vadd.f32 %v1061, %v1107
  %v1132 = vadd.f32 %v1062, %v1107
  %v1133 = vadd.f32 %v1063, %v1107
  %v1134 = vadd.f32 %v1064, %v1107
  %v1135 = vadd.f32 %v1065, %v1107
  %v1136 = vadd.f32 %v1066, %v1107
  %v1137 = vadd.f32 %v1067, %v1107
  %v1138 = vadd.f32 %v1068, %v1107
  %v1139 = vadd.f32 %v1069, %v1107
  %v1140 = vadd.f32 %v1070, %v1107
  %v1141 = vadd.f32 %v1071, %v1107
  %v1142 = vadd.f32 %v1072, %v1107
  %v1143 = vadd.f32 %v1073, %v1107
  %v1144 = vadd.f32 %v1074, %v1107
  %v1145 = vadd.f32 %v1075, %v1107
  %v1146 = vadd.f32 %v1076, %v1107
  %v1147 = vadd.f32 %v1077, %v1107
  %v1148 = vadd.f32 %v1078, %v1107
  %v1149 = vadd.f32 %v1079, %v1107
  %v1150 = vadd.f32 %v1080, %v1107
  %v1151 = vadd.f32 %v1081, %v1107
  %v1152 = vadd.f32 %v1082, %v1107
  %v1153 = vadd.f32 %v1083, %v1107
  %v1154 = vadd.f32 %v1084, %v1107
  %v1155 = vadd.f32 %v1085, %v1107
  %v1156 = vadd.f32 %v1086, %v1107
  %v1157 = vadd.f32 %v1087, %v1107
  %v1158 = vadd.f32 %v1088, %v1107
  %v1159 = vadd.f32 %v1089, %v1107
  %v1160 = vadd.f32 %v1090, %v1107
  %v1161 = vadd.f32 %v1091, %v1107
  %v1162 = vadd.f32 %v1092, %v1107
  %v1163 = vadd.f32 %v1093, %v1107
  %v1164 = vadd.f32 %v1094, %v1107
  %v1165 = vadd.f32 %v1095, %v1107
  %v1166 = vadd.f32 %v1096, %v1107
  %v1167 = vadd.f32 %v1097, %v1107
  %v1168 = vadd.f32 %v1098, %v1107
  %v1169 = vadd.f32 %v1099, %v1107
  %v1170 = vadd.f32 %v1100, %v1107
  %v1171 = vadd.f32 %v1101, %v1107
  %v1172 = vadd.f32 %v1102, %v1107
  %v1173 = vmax.f32 %v1109, 0.0
  %v1174 = vmax.f32 %v1110, 0.0
  %v1175 = vmax.f32 %v1111, 0.0
  %v1176 = vmax.f32 %v1112, 0.0
  %v1177 = vmax.f32 %v1113, 0.0
  %v1178 = vmax.f32 %v1114, 0.0
  %v1179 = vmax.f32 %v1115, 0.0
  %v1180 = vmax.f32 %v1116, 0.0
  %v1181 = vmax.f32 %v1117, 0.0
  %v1182 = vmax.f32 %v1118, 0.0
  %v1183 = vmax.f32 %v1119, 0.0
  %v1184 = vmax.f32 %v1120, 0.0
  %v1185 = vmax.f32 %v1121, 0.0
  %v1186 = vmax.f32 %v1122, 0.0
  %v1187 = vmax.f32 %v1123, 0.0
  %v1188 = vmax.f32 %v1124, 0.0
  %v1189 = vmax.f32 %v1125, 0.0
  %v1190 = vmax.f32 %v1126, 0.0
  %v1191 = vmax.f32 %v1127, 0.0
  %v1192 = vmax.f32 %v1128, 0.0
  %v1193 = vmax.f32 %v1129, 0.0
  %v1194 = vmax.f32 %v1130, 0.0
  %v1195 = vmax.f32 %v1131, 0.0
  %v1196 = vmax.f32 %v1132, 0.0
  %v1197 = vmax.f32 %v1133, 0.0
  %v1198 = vmax.f32 %v1134, 0.0
  %v1199 = vmax.f32 %v1135, 0.0
  %v1200 = vmax.f32 %v1136, 0.0
  %v1201 = vmax.f32 %v1137, 0.0
  %v1202 = vmax.f32 %v1138, 0.0
  %v1203 = vmax.f32 %v1139, 0.0
  %v1204 = vmax.f32 %v1140, 0.0
  %v1205 = vmax.f32 %v1141, 0.0
  %v1206 = vmax.f32 %v1142, 0.0
  %v1207 = vmax.f32 %v1143, 0.0
  %v1208 = vmax.f32 %v1144, 0.0
  %v1209 = vmax.f32 %v1145, 0.0
  %v1210 = vmax.f32 %v1146, 0.0
  %v1211 = vmax.f32 %v1147, 0.0
  %v1212 = vmax.f32 %v1148, 0.0
  %v1213 = vmax.f32 %v1149, 0.0
  %v1214 = vmax.f32 %v1150, 0.0
  %v1215 = vmax.f32 %v1151, 0.0
  %v1216 = vmax.f32 %v1152, 0.0
  %v1217 = vmax.f32 %v1153, 0.0
  %v1218 = vmax.f32 %v1154, 0.0
  %v1219 = vmax.f32 %v1155, 0.0
  %v1220 = vmax.f32 %v1156, 0.0
  %v1221 = vmax.f32 %v1157, 0.0
  %v1222 = vmax.f32 %v1158, 0.0
  %v1223 = vmax.f32 %v1159, 0.0
  %v1224 = vmax.f32 %v1160, 0.0
  %v1225 = vmax.f32 %v1161, 0.0
  %v1226 = vmax.f32 %v1162, 0.0
  %v1227 = vmax.f32 %v1163, 0.0
  %v1228 = vmax.f32 %v1164, 0.0
  %v1229 = vmax.f32 %v1165, 0.0
  %v1230 = vmax.f32 %v1166, 0.0
  %v1231 = vmax.f32 %v1167, 0.0
  %v1232 = vmax.f32 %v1168, 0.0
  %v1233 = vmax.f32 %v1169, 0.0
  %v1234 = vmax.f32 %v1170, 0.0
  %v1235 = vmax.f32 %v1171, 0.0
  %v1236 = vmax.f32 %v1172, 0.0
  %v1237 = vpack.c.bf16 %v1174, %v1173
  %v1238 = vpack.c.bf16 %v1176, %v1175
  %v1239 = vpack.c.bf16 %v1178, %v1177
  %v1240 = vpack.c.bf16 %v1180, %v1179
  %v1241 = vpack.c.bf16 %v1182, %v1181
  %v1242 = vpack.c.bf16 %v1184, %v1183
  %v1243 = vpack.c.bf16 %v1186, %v1185
  %v1244 = vpack.c.bf16 %v1188, %v1187
  %v1245 = vpack.c.bf16 %v1190, %v1189
  %v1246 = vpack.c.bf16 %v1192, %v1191
  %v1247 = vpack.c.bf16 %v1194, %v1193
  %v1248 = vpack.c.bf16 %v1196, %v1195
  %v1249 = vpack.c.bf16 %v1198, %v1197
  %v1250 = vpack.c.bf16 %v1200, %v1199
  %v1251 = vpack.c.bf16 %v1202, %v1201
  %v1252 = vpack.c.bf16 %v1204, %v1203
  %v1253 = vpack.c.bf16 %v1206, %v1205
  %v1254 = vpack.c.bf16 %v1208, %v1207
  %v1255 = vpack.c.bf16 %v1210, %v1209
  %v1256 = vpack.c.bf16 %v1212, %v1211
  %v1257 = vpack.c.bf16 %v1214, %v1213
  %v1258 = vpack.c.bf16 %v1216, %v1215
  %v1259 = vpack.c.bf16 %v1218, %v1217
  %v1260 = vpack.c.bf16 %v1220, %v1219
  %v1261 = vpack.c.bf16 %v1222, %v1221
  %v1262 = vpack.c.bf16 %v1224, %v1223
  %v1263 = vpack.c.bf16 %v1226, %v1225
  %v1264 = vpack.c.bf16 %v1228, %v1227
  %v1265 = vpack.c.bf16 %v1230, %v1229
  %v1266 = vpack.c.bf16 %v1232, %v1231
  %v1267 = vpack.c.bf16 %v1234, %v1233
  %v1268 = vpack.c.bf16 %v1236, %v1235
  %v1301 = vunpack.c.l.b16 %v1237
  %v1302 = vunpack.c.h.b16 %v1237
  %v1303 = vunpack.c.l.b16 %v1238
  %v1304 = vunpack.c.h.b16 %v1238
  %v1305 = vunpack.c.l.b16 %v1239
  %v1306 = vunpack.c.h.b16 %v1239
  %v1307 = vunpack.c.l.b16 %v1240
  %v1308 = vunpack.c.h.b16 %v1240
  %v1309 = vunpack.c.l.b16 %v1241
  %v1310 = vunpack.c.h.b16 %v1241
  %v1311 = vunpack.c.l.b16 %v1242
  %v1312 = vunpack.c.h.b16 %v1242
  %v1313 = vunpack.c.l.b16 %v1243
  %v1314 = vunpack.c.h.b16 %v1243
  %v1315 = vunpack.c.l.b16 %v1244
  %v1316 = vunpack.c.h.b16 %v1244
  %v1317 = vunpack.c.l.b16 %v1245
  %v1318 = vunpack.c.h.b16 %v1245
  %v1319 = vunpack.c.l.b16 %v1246
  %v1320 = vunpack.c.h.b16 %v1246
  %v1321 = vunpack.c.l.b16 %v1247
  %v1322 = vunpack.c.h.b16 %v1247
  %v1323 = vunpack.c.l.b16 %v1248
  %v1324 = vunpack.c.h.b16 %v1248
  %v1325 = vunpack.c.l.b16 %v1249
  %v1326 = vunpack.c.h.b16 %v1249
  %v1327 = vunpack.c.l.b16 %v1250
  %v1328 = vunpack.c.h.b16 %v1250
  %v1329 = vunpack.c.l.b16 %v1251
  %v1330 = vunpack.c.h.b16 %v1251
  %v1331 = vunpack.c.l.b16 %v1252
  %v1332 = vunpack.c.h.b16 %v1252
  %v1333 = vunpack.c.l.b16 %v1253
  %v1334 = vunpack.c.h.b16 %v1253
  %v1335 = vunpack.c.l.b16 %v1254
  %v1336 = vunpack.c.h.b16 %v1254
  %v1337 = vunpack.c.l.b16 %v1255
  %v1338 = vunpack.c.h.b16 %v1255
  %v1339 = vunpack.c.l.b16 %v1256
  %v1340 = vunpack.c.h.b16 %v1256
  %v1341 = vunpack.c.l.b16 %v1257
  %v1342 = vunpack.c.h.b16 %v1257
  %v1343 = vunpack.c.l.b16 %v1258
  %v1344 = vunpack.c.h.b16 %v1258
  %v1345 = vunpack.c.l.b16 %v1259
  %v1346 = vunpack.c.h.b16 %v1259
  %v1347 = vunpack.c.l.b16 %v1260
  %v1348 = vunpack.c.h.b16 %v1260
  %v1349 = vunpack.c.l.b16 %v1261
  %v1350 = vunpack.c.h.b16 %v1261
  %v1351 = vunpack.c.l.b16 %v1262
  %v1352 = vunpack.c.h.b16 %v1262
  %v1353 = vunpack.c.l.b16 %v1263
  %v1354 = vunpack.c.h.b16 %v1263
  %v1355 = vunpack.c.l.b16 %v1264
  %v1356 = vunpack.c.h.b16 %v1264
  %v1357 = vunpack.c.l.b16 %v1265
  %v1358 = vunpack.c.h.b16 %v1265
  %v1359 = vunpack.c.l.b16 %v1266
  %v1360 = vunpack.c.h.b16 %v1266
  %v1361 = vunpack.c.l.b16 %v1267
  %v1362 = vunpack.c.h.b16 %v1267
  %v1363 = vunpack.c.l.b16 %v1268
  %v1364 = vunpack.c.h.b16 %v1268
  %v1365 = vpack.c.b16 %v1301, %v1301
  %v1366 = vpack.c.b16 %v1302, %v1302
  %v1367 = vpack.c.b16 %v1303, %v1303
  %v1368 = vpack.c.b16 %v1304, %v1304
  %v1369 = vpack.c.b16 %v1305, %v1305
  %v1370 = vpack.c.b16 %v1306, %v1306
  %v1371 = vpack.c.b16 %v1307, %v1307
  %v1372 = vpack.c.b16 %v1308, %v1308
  %v1373 = vpack.c.b16 %v1309, %v1309
  %v1374 = vpack.c.b16 %v1310, %v1310
  %v1375 = vpack.c.b16 %v1311, %v1311
  %v1376 = vpack.c.b16 %v1312, %v1312
  %v1377 = vpack.c.b16 %v1313, %v1313
  %v1378 = vpack.c.b16 %v1314, %v1314
  %v1379 = vpack.c.b16 %v1315, %v1315
  %v1380 = vpack.c.b16 %v1316, %v1316
  %v1381 = vpack.c.b16 %v1317, %v1317
  %v1382 = vpack.c.b16 %v1318, %v1318
  %v1383 = vpack.c.b16 %v1319, %v1319
  %v1384 = vpack.c.b16 %v1320, %v1320
  %v1385 = vpack.c.b16 %v1321, %v1321
  %v1386 = vpack.c.b16 %v1322, %v1322
  %v1387 = vpack.c.b16 %v1323, %v1323
  %v1388 = vpack.c.b16 %v1324, %v1324
  %v1389 = vpack.c.b16 %v1325, %v1325
  %v1390 = vpack.c.b16 %v1326, %v1326
  %v1391 = vpack.c.b16 %v1327, %v1327
  %v1392 = vpack.c.b16 %v1328, %v1328
  %v1393 = vpack.c.b16 %v1329, %v1329
  %v1394 = vpack.c.b16 %v1330, %v1330
  %v1395 = vpack.c.b16 %v1331, %v1331
  %v1396 = vpack.c.b16 %v1332, %v1332
  %v1397 = vpack.c.b16 %v1333, %v1333
  %v1398 = vpack.c.b16 %v1334, %v1334
  %v1399 = vpack.c.b16 %v1335, %v1335
  %v1400 = vpack.c.b16 %v1336, %v1336
  %v1401 = vpack.c.b16 %v1337, %v1337
  %v1402 = vpack.c.b16 %v1338, %v1338
  %v1403 = vpack.c.b16 %v1339, %v1339
  %v1404 = vpack.c.b16 %v1340, %v1340
  %v1405 = vpack.c.b16 %v1341, %v1341
  %v1406 = vpack.c.b16 %v1342, %v1342
  %v1407 = vpack.c.b16 %v1343, %v1343
  %v1408 = vpack.c.b16 %v1344, %v1344
  %v1409 = vpack.c.b16 %v1345, %v1345
  %v1410 = vpack.c.b16 %v1346, %v1346
  %v1411 = vpack.c.b16 %v1347, %v1347
  %v1412 = vpack.c.b16 %v1348, %v1348
  %v1413 = vpack.c.b16 %v1349, %v1349
  %v1414 = vpack.c.b16 %v1350, %v1350
  %v1415 = vpack.c.b16 %v1351, %v1351
  %v1416 = vpack.c.b16 %v1352, %v1352
  %v1417 = vpack.c.b16 %v1353, %v1353
  %v1418 = vpack.c.b16 %v1354, %v1354
  %v1419 = vpack.c.b16 %v1355, %v1355
  %v1420 = vpack.c.b16 %v1356, %v1356
  %v1421 = vpack.c.b16 %v1357, %v1357
  %v1422 = vpack.c.b16 %v1358, %v1358
  %v1423 = vpack.c.b16 %v1359, %v1359
  %v1424 = vpack.c.b16 %v1360, %v1360
  %v1425 = vpack.c.b16 %v1361, %v1361
  %v1426 = vpack.c.b16 %v1362, %v1362
  %v1427 = vpack.c.b16 %v1363, %v1363
  %v1428 = vpack.c.b16 %v1364, %v1364
  %1493 = vst [vmem:[%s4] sm:$0xf] %v1365
  %1494 = vst [vmem:[%s4 + $0x4] sm:$0xf] %v1366
  %1495 = vst [vmem:[%s4 + $0x8] sm:$0xf] %v1367
  %1496 = vst [vmem:[%s4 + $0xc] sm:$0xf] %v1368
  %1497 = vst [vmem:[%s4 + $0x10] sm:$0xf] %v1369
  %1498 = vst [vmem:[%s4 + $0x14] sm:$0xf] %v1370
  %1499 = vst [vmem:[%s4 + $0x18] sm:$0xf] %v1371
  %1500 = vst [vmem:[%s4 + $0x1c] sm:$0xf] %v1372
  %1501 = vst [vmem:[%s4 + $0x20] sm:$0xf] %v1373
  %1502 = vst [vmem:[%s4 + $0x24] sm:$0xf] %v1374
  %1503 = vst [vmem:[%s4 + $0x28] sm:$0xf] %v1375
  %1504 = vst [vmem:[%s4 + $0x2c] sm:$0xf] %v1376
  %1505 = vst [vmem:[%s4 + $0x30] sm:$0xf] %v1377
  %1506 = vst [vmem:[%s4 + $0x34] sm:$0xf] %v1378
  %1507 = vst [vmem:[%s4 + $0x38] sm:$0xf] %v1379
  %1508 = vst [vmem:[%s4 + $0x3c] sm:$0xf] %v1380
  %1509 = vst [vmem:[%s4 + $0x40] sm:$0xf] %v1381
  %1510 = vst [vmem:[%s4 + $0x44] sm:$0xf] %v1382
  %1511 = vst [vmem:[%s4 + $0x48] sm:$0xf] %v1383
  %1512 = vst [vmem:[%s4 + $0x4c] sm:$0xf] %v1384
  %1513 = vst [vmem:[%s4 + $0x50] sm:$0xf] %v1385
  %1514 = vst [vmem:[%s4 + $0x54] sm:$0xf] %v1386
  %1515 = vst [vmem:[%s4 + $0x58] sm:$0xf] %v1387
  %1516 = vst [vmem:[%s4 + $0x5c] sm:$0xf] %v1388
  %1517 = vst [vmem:[%s4 + $0x60] sm:$0xf] %v1389
  %1518 = vst [vmem:[%s4 + $0x64] sm:$0xf] %v1390
  %1519 = vst [vmem:[%s4 + $0x68] sm:$0xf] %v1391
  %1520 = vst [vmem:[%s4 + $0x6c] sm:$0xf] %v1392
  %1521 = vst [vmem:[%s4 + $0x70] sm:$0xf] %v1393
  %1522 = vst [vmem:[%s4 + $0x74] sm:$0xf] %v1394
  %1523 = vst [vmem:[%s4 + $0x78] sm:$0xf] %v1395
  %1524 = vst [vmem:[%s4 + $0x7c] sm:$0xf] %v1396
  %1525 = vst [vmem:[%s4 + $0x80] sm:$0xf] %v1397
  %1526 = vst [vmem:[%s4 + $0x84] sm:$0xf] %v1398
  %1527 = vst [vmem:[%s4 + $0x88] sm:$0xf] %v1399
  %1528 = vst [vmem:[%s4 + $0x8c] sm:$0xf] %v1400
  %1529 = vst [vmem:[%s4 + $0x90] sm:$0xf] %v1401
  %1530 = vst [vmem:[%s4 + $0x94] sm:$0xf] %v1402
  %1531 = vst [vmem:[%s4 + $0x98] sm:$0xf] %v1403
  %1532 = vst [vmem:[%s4 + $0x9c] sm:$0xf] %v1404
  %1533 = vst [vmem:[%s4 + $0xa0] sm:$0xf] %v1405
  %1534 = vst [vmem:[%s4 + $0xa4] sm:$0xf] %v1406
  %1535 = vst [vmem:[%s4 + $0xa8] sm:$0xf] %v1407
  %1536 = vst [vmem:[%s4 + $0xac] sm:$0xf] %v1408
  %1537 = vst [vmem:[%s4 + $0xb0] sm:$0xf] %v1409
  %1538 = vst [vmem:[%s4 + $0xb4] sm:$0xf] %v1410
  %1539 = vst [vmem:[%s4 + $0xb8] sm:$0xf] %v1411
  %1540 = vst [vmem:[%s4 + $0xbc] sm:$0xf] %v1412
  %1541 = vst [vmem:[%s4 + $0xc0] sm:$0xf] %v1413
  %1542 = vst [vmem:[%s4 + $0xc4] sm:$0xf] %v1414
  %1543 = vst [vmem:[%s4 + $0xc8] sm:$0xf] %v1415
  %1544 = vst [vmem:[%s4 + $0xcc] sm:$0xf] %v1416
  %1545 = vst [vmem:[%s4 + $0xd0] sm:$0xf] %v1417
  %1546 = vst [vmem:[%s4 + $0xd4] sm:$0xf] %v1418
  %1547 = vst [vmem:[%s4 + $0xd8] sm:$0xf] %v1419
  %1548 = vst [vmem:[%s4 + $0xdc] sm:$0xf] %v1420
  %1549 = vst [vmem:[%s4 + $0xe0] sm:$0xf] %v1421
  %1550 = vst [vmem:[%s4 + $0xe4] sm:$0xf] %v1422
  %1551 = vst [vmem:[%s4 + $0xe8] sm:$0xf] %v1423
  %1552 = vst [vmem:[%s4 + $0xec] sm:$0xf] %v1424
  %1553 = vst [vmem:[%s4 + $0xf0] sm:$0xf] %v1425
  %1554 = vst [vmem:[%s4 + $0xf4] sm:$0xf] %v1426
  %1555 = vst [vmem:[%s4 + $0xf8] sm:$0xf] %v1427
  %1556 = vst [vmem:[%s4 + $0xfc] sm:$0xf] %v1428
  // Predicated region
  $region18: #{egan_generator_32_forward.6} parent=0 // pred_check
    _
  $region19: #{egan_generator_32_forward.6} parent=0 // pred_check_branch
    %1558 = sbr.rel (0) target = $region21
  $region20: #{egan_generator_32_forward.6} parent=0 // pred_region
    _
  $region21: #{egan_generator_32_forward.6} parent=0 // pred_fallthru
    _
  // Predicated region
  $region22: #{egan_generator_32_forward.6} parent=0 // pred_check
    _
  $region23: #{egan_generator_32_forward.6} parent=0 // pred_check_branch
    %1560 = sbr.rel (0) target = $region25
  $region24: #{egan_generator_32_forward.6} parent=0 // pred_region
    _
  $region25: #{egan_generator_32_forward.6} parent=0 // pred_fallthru
    _

// kernel: egan_generator_32_forward.7
$region0: #{egan_generator_32_forward.7}
  #allocation0 [shape = 'u32[]', space=smem, size = 0x4, offset = 0x4, fixed_abs, tag = 'smem constant byte address 0x4 - core index']
  #allocation1 [shape = 'u32[144,128]{1,0:T(1,128)}', space=vmem, size = 0x12000, scoped, tag = 'internal scratch']
  %s0 = inlined_call_operand.vmem [shape: bf16[2048,128], index: 0, kind: input, shape index: {}]
  %s1 = inlined_call_operand.vmem [shape: bf16[128,128], index: 1, kind: input, shape index: {}]
  %s2 = inlined_call_operand.vmem [shape: f32[1,128], index: 2, kind: input, shape index: {}]
  %s3 = inlined_call_operand.vmem [shape: f32[2048,128], index: 3, kind: output, shape index: {}]
  %s4 = sld [smem:[#allocation0]]
  $region45: #{egan_generator_32_forward.7} parent=0
    _
  %s6 = ssub.s32 1, %s4
  %s7 = scalar_select 0, %s6, %s4
  loop: start=0, step=1, limit=6
  $region2: #{egan_generator_32_forward.7} parent=0 // loop_pre_header
    _
  $region3: #{egan_generator_32_forward.7} parent=0 // loop_header
    %s9 = sphi 0, %s13
    %p10 = scmp.ge.s32.totalorder %s9, 6
    %s19 = sphi 0, %s21
    %s22 = sphi 0, %s19
    %s23 = sphi 0, %s22
    %s39 = sphi 0, %s23
    %s43 = sphi 0, %s43
    %s45 = sphi 0, %s43
    %s46 = sphi 0, %s45
    %s60 = sphi 0, %s46
    %s64 = sphi 0, %s64
    %s66 = sphi 0, %s64
    %s67 = sphi 0, %s66
    %s81 = sphi 0, %s67
    %s87 = sphi 0, %s89
    %s90 = sphi 0, %s87
    %s91 = sphi 0, %s90
    %s107 = sphi 0, %s91
  $region4: #{egan_generator_32_forward.7} parent=0 // loop_header_branch
    %12 = sbr.rel (%p10) target = $region8
  $region5: #{egan_generator_32_forward.7} parent=0 // loop_body
    %s14 = ssub.s32 %s9, 1
    %s15 = ssub.s32 %s9, 2
    %s16 = sadd.s32 %s9, 1
    %s17 = ssub.s32 %s9, %s16
    %p18 = scmp.eq.s32.totalorder %s17, 0
    %s20 = sadd.s32 %s19, 1
    %s21 = scalar_select %p18, %s19, %s20
    %p24 = pneg %p18
    %p25 = scmp.eq.s32.totalorder %s9, 3
    %p26 = por %p24, %p25
    %p27 = scmp.ne.s32.totalorder %s19, %s22
    %p28 = scmp.eq.s32.totalorder %s9, 0
    %p29 = por %p27, %p28
    %p30 = scmp.ne.s32.totalorder %s19, %s22
    %p31 = scmp.eq.s32.totalorder %s14, 3
    %p32 = por %p30, %p31
    %p33 = scmp.ne.s32.totalorder %s22, %s23
    %p34 = scmp.eq.s32.totalorder %s14, 0
    %p35 = por %p33, %p34
    %p36 = scmp.ne.s32.totalorder %s22, %s23
    %p37 = scmp.eq.s32.totalorder %s15, 3
    %p38 = por %p36, %p37
    %p40 = scmp.ne.s32.totalorder %s23, %s39
    %p41 = scmp.eq.s32.totalorder %s15, 0
    %p42 = por %p40, %p41
    %s44 = sadd.s32 %s43, 1
    %p47 = scmp.eq.s32.totalorder %s9, 3
    %p48 = scmp.ne.s32.totalorder %s43, %s45
    %p49 = scmp.eq.s32.totalorder %s9, 0
    %p50 = por %p48, %p49
    %p51 = scmp.ne.s32.totalorder %s43, %s45
    %p52 = scmp.eq.s32.totalorder %s14, 3
    %p53 = por %p51, %p52
    %p54 = scmp.ne.s32.totalorder %s45, %s46
    %p55 = scmp.eq.s32.totalorder %s14, 0
    %p56 = por %p54, %p55
    %p57 = scmp.ne.s32.totalorder %s45, %s46
    %p58 = scmp.eq.s32.totalorder %s15, 3
    %p59 = por %p57, %p58
    %p61 = scmp.ne.s32.totalorder %s46, %s60
    %p62 = scmp.eq.s32.totalorder %s15, 0
    %p63 = por %p61, %p62
    %s65 = sadd.s32 %s64, 1
    %p68 = scmp.eq.s32.totalorder %s9, 3
    %p69 = scmp.ne.s32.totalorder %s64, %s66
    %p70 = scmp.eq.s32.totalorder %s9, 0
    %p71 = por %p69, %p70
    %p72 = scmp.ne.s32.totalorder %s64, %s66
    %p73 = scmp.eq.s32.totalorder %s14, 3
    %p74 = por %p72, %p73
    %p75 = scmp.ne.s32.totalorder %s66, %s67
    %p76 = scmp.eq.s32.totalorder %s14, 0
    %p77 = por %p75, %p76
    %p78 = scmp.ne.s32.totalorder %s66, %s67
    %p79 = scmp.eq.s32.totalorder %s15, 3
    %p80 = por %p78, %p79
    %p82 = scmp.ne.s32.totalorder %s67, %s81
    %p83 = scmp.eq.s32.totalorder %s15, 0
    %p84 = por %p82, %p83
    %s85 = ssub.s32 %s9, %s16
    %p86 = scmp.eq.s32.totalorder %s85, 0
    %s88 = sadd.s32 %s87, 1
    %s89 = scalar_select %p86, %s87, %s88
    %p92 = pneg %p86
    %p93 = scmp.eq.s32.totalorder %s9, 3
    %p94 = por %p92, %p93
    %p95 = scmp.ne.s32.totalorder %s87, %s90
    %p96 = scmp.eq.s32.totalorder %s9, 0
    %p97 = por %p95, %p96
    %p98 = scmp.ne.s32.totalorder %s87, %s90
    %p99 = scmp.eq.s32.totalorder %s14, 3
    %p100 = por %p98, %p99
    %p101 = scmp.ne.s32.totalorder %s90, %s91
    %p102 = scmp.eq.s32.totalorder %s14, 0
    %p103 = por %p101, %p102
    %p104 = scmp.ne.s32.totalorder %s90, %s91
    %p105 = scmp.eq.s32.totalorder %s15, 3
    %p106 = por %p104, %p105
    %p108 = scmp.ne.s32.totalorder %s91, %s107
    %p109 = scmp.eq.s32.totalorder %s15, 0
    %p110 = por %p108, %p109
    %p111 = scmp.le.s32.totalorder 1, %s9
    %p112 = scmp.lt.s32.totalorder %s9, 5
    %p113 = pnand %p111, %p112
    %p114 = pneg %p113
    // Predicated region
    $region9: #{egan_generator_32_forward.7} parent=5 // pred_check
      _
    $region10: #{egan_generator_32_forward.7} parent=5 // pred_check_branch
      %116 = sbr.rel (%p113) target = $region12
    $region11: #{egan_generator_32_forward.7} parent=5 // pred_region
      %s117 = ssub.s32 %s9, 1
      // Predicated region
      $region13: #{egan_generator_32_forward.7} parent=11 // pred_check
        %p118 = pneg %p56
      $region14: #{egan_generator_32_forward.7} parent=11 // pred_check_branch
        %120 = sbr.rel (%p118) target = $region16
      $region15: #{egan_generator_32_forward.7} parent=11 // pred_region
        _
      $region16: #{egan_generator_32_forward.7} parent=11 // pred_fallthru
        _
      // Predicated region
      $region17: #{egan_generator_32_forward.7} parent=11 // pred_check
        %p121 = pneg %p77
      $region18: #{egan_generator_32_forward.7} parent=11 // pred_check_branch
        %123 = sbr.rel (%p121) target = $region20
      $region19: #{egan_generator_32_forward.7} parent=11 // pred_region
        _
      $region20: #{egan_generator_32_forward.7} parent=11 // pred_fallthru
        _
    $region12: #{egan_generator_32_forward.7} parent=5 // pred_fallthru
      _
    %p124 = scmp.lt.s32.totalorder %s9, 4
    // Predicated region
    $region21: #{egan_generator_32_forward.7} parent=5 // pred_check
      %p125 = pneg %p124
    $region22: #{egan_generator_32_forward.7} parent=5 // pred_check_branch
      %127 = sbr.rel (%p125) target = $region24
    $region23: #{egan_generator_32_forward.7} parent=5 // pred_region
      // Predicated region
      $region25: #{egan_generator_32_forward.7} parent=23 // pred_check
        %p128 = pneg %p29
      $region26: #{egan_generator_32_forward.7} parent=23 // pred_check_branch
        %130 = sbr.rel (%p128) target = $region28
      $region27: #{egan_generator_32_forward.7} parent=23 // pred_region
        %s131 = smul.u32 64, %s9
        %p132 = scmp.lt.s32.totalorder %s131, 255
        %s133 = scalar_select %p132, %s131, 255
        %s134 = smul.addr %s133, 4
        %s135 = scalar_lea.vmem %s0, %s134
        %s136 = smul.u32 64, %s9
      $region28: #{egan_generator_32_forward.7} parent=23 // pred_fallthru
        _
    $region24: #{egan_generator_32_forward.7} parent=5 // pred_fallthru
      _
    %p137 = scmp.le.s32.totalorder 1, %s9
    %p138 = scmp.lt.s32.totalorder %s9, 5
    %p139 = pnand %p137, %p138
    %p140 = pneg %p139
    // Predicated region
    $region29: #{egan_generator_32_forward.7} parent=5 // pred_check
      _
    $region30: #{egan_generator_32_forward.7} parent=5 // pred_check_branch
      %142 = sbr.rel (%p139) target = $region32
    $region31: #{egan_generator_32_forward.7} parent=5 // pred_region
      %s143 = ssub.s32 %s9, 1
      %s144 = smul.u32 64, %s14
      %p145 = scmp.lt.s32.totalorder %s144, 255
      %s146 = scalar_select %p145, %s144, 255
      %s147 = smul.addr %s146, 4
      %s148 = scalar_lea.vmem %s0, %s147
      %p149 = pneg %p35
      %p150 = pneg %p32
      %p151 = pneg %p56
      %p152 = pneg %p53
      %p153 = pneg %p77
      %p154 = pneg %p74
      %p155 = pneg %p103
      %p156 = pneg %p100
      %s157 = smul.u32 64, %s14
      %p158 = scmp.lt.s32.totalorder %s157, 255
      %s159 = scalar_select %p158, %s157, 255
      %s160 = smul.addr %s159, 8
      %s161 = scalar_lea.vmem %s3, %s160
      %s162 = smul.u32 64, %s14
      %p163 = scmp.lt.s32.totalorder %s162, 255
      %s164 = scalar_select %p163, %s162, 255
      %s165 = smul.addr %s164, 4
      %s166 = scalar_lea.vmem %s0, %s165
      %s167 = smul.u32 64, %s14
      %s168 = smul.u32 64, %s14
      %p169 = scmp.lt.s32.totalorder %s168, 255
      %s170 = scalar_select %p169, %s168, 255
      %s171 = smul.addr %s170, 8
      %s172 = scalar_lea.vmem %s3, %s171
      %s173 = smul.u32 64, %s14
      %v175 = vld [vmem:[%s166] sm:$0xf]
      %v176 = vld [vmem:[%s166 + $0x4] sm:$0xf]
      %v177 = vld [vmem:[%s166 + $0x8] sm:$0xf]
      %v178 = vld [vmem:[%s166 + $0xc] sm:$0xf]
      %v179 = vld [vmem:[%s166 + $0x10] sm:$0xf]
      %v180 = vld [vmem:[%s166 + $0x14] sm:$0xf]
      %v181 = vld [vmem:[%s166 + $0x18] sm:$0xf]
      %v182 = vld [vmem:[%s166 + $0x1c] sm:$0xf]
      %v183 = vld [vmem:[%s166 + $0x20] sm:$0xf]
      %v184 = vld [vmem:[%s166 + $0x24] sm:$0xf]
      %v185 = vld [vmem:[%s166 + $0x28] sm:$0xf]
      %v186 = vld [vmem:[%s166 + $0x2c] sm:$0xf]
      %v187 = vld [vmem:[%s166 + $0x30] sm:$0xf]
      %v188 = vld [vmem:[%s166 + $0x34] sm:$0xf]
      %v189 = vld [vmem:[%s166 + $0x38] sm:$0xf]
      %v190 = vld [vmem:[%s166 + $0x3c] sm:$0xf]
      %v191 = vld [vmem:[%s166 + $0x40] sm:$0xf]
      %v192 = vld [vmem:[%s166 + $0x44] sm:$0xf]
      %v193 = vld [vmem:[%s166 + $0x48] sm:$0xf]
      %v194 = vld [vmem:[%s166 + $0x4c] sm:$0xf]
      %v195 = vld [vmem:[%s166 + $0x50] sm:$0xf]
      %v196 = vld [vmem:[%s166 + $0x54] sm:$0xf]
      %v197 = vld [vmem:[%s166 + $0x58] sm:$0xf]
      %v198 = vld [vmem:[%s166 + $0x5c] sm:$0xf]
      %v199 = vld [vmem:[%s166 + $0x60] sm:$0xf]
      %v200 = vld [vmem:[%s166 + $0x64] sm:$0xf]
      %v201 = vld [vmem:[%s166 + $0x68] sm:$0xf]
      %v202 = vld [vmem:[%s166 + $0x6c] sm:$0xf]
      %v203 = vld [vmem:[%s166 + $0x70] sm:$0xf]
      %v204 = vld [vmem:[%s166 + $0x74] sm:$0xf]
      %v205 = vld [vmem:[%s166 + $0x78] sm:$0xf]
      %v206 = vld [vmem:[%s166 + $0x7c] sm:$0xf]
      %v207 = vld [vmem:[%s166 + $0x80] sm:$0xf]
      %v208 = vld [vmem:[%s166 + $0x84] sm:$0xf]
      %v209 = vld [vmem:[%s166 + $0x88] sm:$0xf]
      %v210 = vld [vmem:[%s166 + $0x8c] sm:$0xf]
      %v211 = vld [vmem:[%s166 + $0x90] sm:$0xf]
      %v212 = vld [vmem:[%s166 + $0x94] sm:$0xf]
      %v213 = vld [vmem:[%s166 + $0x98] sm:$0xf]
      %v214 = vld [vmem:[%s166 + $0x9c] sm:$0xf]
      %v215 = vld [vmem:[%s166 + $0xa0] sm:$0xf]
      %v216 = vld [vmem:[%s166 + $0xa4] sm:$0xf]
      %v217 = vld [vmem:[%s166 + $0xa8] sm:$0xf]
      %v218 = vld [vmem:[%s166 + $0xac] sm:$0xf]
      %v219 = vld [vmem:[%s166 + $0xb0] sm:$0xf]
      %v220 = vld [vmem:[%s166 + $0xb4] sm:$0xf]
      %v221 = vld [vmem:[%s166 + $0xb8] sm:$0xf]
      %v222 = vld [vmem:[%s166 + $0xbc] sm:$0xf]
      %v223 = vld [vmem:[%s166 + $0xc0] sm:$0xf]
      %v224 = vld [vmem:[%s166 + $0xc4] sm:$0xf]
      %v225 = vld [vmem:[%s166 + $0xc8] sm:$0xf]
      %v226 = vld [vmem:[%s166 + $0xcc] sm:$0xf]
      %v227 = vld [vmem:[%s166 + $0xd0] sm:$0xf]
      %v228 = vld [vmem:[%s166 + $0xd4] sm:$0xf]
      %v229 = vld [vmem:[%s166 + $0xd8] sm:$0xf]
      %v230 = vld [vmem:[%s166 + $0xdc] sm:$0xf]
      %v231 = vld [vmem:[%s166 + $0xe0] sm:$0xf]
      %v232 = vld [vmem:[%s166 + $0xe4] sm:$0xf]
      %v233 = vld [vmem:[%s166 + $0xe8] sm:$0xf]
      %v234 = vld [vmem:[%s166 + $0xec] sm:$0xf]
      %v235 = vld [vmem:[%s166 + $0xf0] sm:$0xf]
      %v236 = vld [vmem:[%s166 + $0xf4] sm:$0xf]
      %v237 = vld [vmem:[%s166 + $0xf8] sm:$0xf]
      %v238 = vld [vmem:[%s166 + $0xfc] sm:$0xf]
      %v239 = vld [vmem:[%s1] sm:$0xf]
      %v240 = vld [vmem:[%s1 + $0x4] sm:$0xf]
      %v241 = vld [vmem:[%s1 + $0x8] sm:$0xf]
      %v242 = vld [vmem:[%s1 + $0xc] sm:$0xf]
      %v243 = vld [vmem:[%s1 + $0x10] sm:$0xf]
      %v244 = vld [vmem:[%s1 + $0x14] sm:$0xf]
      %v245 = vld [vmem:[%s1 + $0x18] sm:$0xf]
      %v246 = vld [vmem:[%s1 + $0x1c] sm:$0xf]
      %v247 = vld [vmem:[%s1 + $0x20] sm:$0xf]
      %v248 = vld [vmem:[%s1 + $0x24] sm:$0xf]
      %v249 = vld [vmem:[%s1 + $0x28] sm:$0xf]
      %v250 = vld [vmem:[%s1 + $0x2c] sm:$0xf]
      %v251 = vld [vmem:[%s1 + $0x30] sm:$0xf]
      %v252 = vld [vmem:[%s1 + $0x34] sm:$0xf]
      %v253 = vld [vmem:[%s1 + $0x38] sm:$0xf]
      %v254 = vld [vmem:[%s1 + $0x3c] sm:$0xf]
      %v255 = vld [vmem:[%s2] sm:$0x1]
      %v257 = vlaneseq
      %v258 = vshrl.u32 %v257, 7
      %v259 = vsub.s32 0, %v258
      %v260 = vrot.slane %v255, %v259
      %v326 = vunpack.c.l.b16 %v175
      %v327 = vunpack.c.l.b16 %v176
      %v328 = vunpack.c.l.b16 %v177
      %v329 = vunpack.c.l.b16 %v178
      %v330 = vunpack.c.l.b16 %v179
      %v331 = vunpack.c.l.b16 %v180
      %v332 = vunpack.c.l.b16 %v181
      %v333 = vunpack.c.l.b16 %v182
      %v334 = vunpack.c.l.b16 %v183
      %v335 = vunpack.c.l.b16 %v184
      %v336 = vunpack.c.l.b16 %v185
      %v337 = vunpack.c.l.b16 %v186
      %v338 = vunpack.c.l.b16 %v187
      %v339 = vunpack.c.l.b16 %v188
      %v340 = vunpack.c.l.b16 %v189
      %v341 = vunpack.c.l.b16 %v190
      %v342 = vunpack.c.l.b16 %v191
      %v343 = vunpack.c.l.b16 %v192
      %v344 = vunpack.c.l.b16 %v193
      %v345 = vunpack.c.l.b16 %v194
      %v346 = vunpack.c.l.b16 %v195
      %v347 = vunpack.c.l.b16 %v196
      %v348 = vunpack.c.l.b16 %v197
      %v349 = vunpack.c.l.b16 %v198
      %v350 = vunpack.c.l.b16 %v199
      %v351 = vunpack.c.l.b16 %v200
      %v352 = vunpack.c.l.b16 %v201
      %v353 = vunpack.c.l.b16 %v202
      %v354 = vunpack.c.l.b16 %v203
      %v355 = vunpack.c.l.b16 %v204
      %v356 = vunpack.c.l.b16 %v205
      %v357 = vunpack.c.l.b16 %v206
      %v358 = vunpack.c.l.b16 %v207
      %v359 = vunpack.c.l.b16 %v208
      %v360 = vunpack.c.l.b16 %v209
      %v361 = vunpack.c.l.b16 %v210
      %v362 = vunpack.c.l.b16 %v211
      %v363 = vunpack.c.l.b16 %v212
      %v364 = vunpack.c.l.b16 %v213
      %v365 = vunpack.c.l.b16 %v214
      %v366 = vunpack.c.l.b16 %v215
      %v367 = vunpack.c.l.b16 %v216
      %v368 = vunpack.c.l.b16 %v217
      %v369 = vunpack.c.l.b16 %v218
      %v370 = vunpack.c.l.b16 %v219
      %v371 = vunpack.c.l.b16 %v220
      %v372 = vunpack.c.l.b16 %v221
      %v373 = vunpack.c.l.b16 %v222
      %v374 = vunpack.c.l.b16 %v223
      %v375 = vunpack.c.l.b16 %v224
      %v376 = vunpack.c.l.b16 %v225
      %v377 = vunpack.c.l.b16 %v226
      %v378 = vunpack.c.l.b16 %v227
      %v379 = vunpack.c.l.b16 %v228
      %v380 = vunpack.c.l.b16 %v229
      %v381 = vunpack.c.l.b16 %v230
      %v382 = vunpack.c.l.b16 %v231
      %v383 = vunpack.c.l.b16 %v232
      %v384 = vunpack.c.l.b16 %v233
      %v385 = vunpack.c.l.b16 %v234
      %v386 = vunpack.c.l.b16 %v235
      %v387 = vunpack.c.l.b16 %v236
      %v388 = vunpack.c.l.b16 %v237
      %v389 = vunpack.c.l.b16 %v238
      %v390 = vpack.c.b16 %v327, %v326
      %v391 = vpack.c.b16 %v329, %v328
      %v392 = vpack.c.b16 %v331, %v330
      %v393 = vpack.c.b16 %v333, %v332
      %v394 = vpack.c.b16 %v335, %v334
      %v395 = vpack.c.b16 %v337, %v336
      %v396 = vpack.c.b16 %v339, %v338
      %v397 = vpack.c.b16 %v341, %v340
      %v398 = vpack.c.b16 %v343, %v342
      %v399 = vpack.c.b16 %v345, %v344
      %v400 = vpack.c.b16 %v347, %v346
      %v401 = vpack.c.b16 %v349, %v348
      %v402 = vpack.c.b16 %v351, %v350
      %v403 = vpack.c.b16 %v353, %v352
      %v404 = vpack.c.b16 %v355, %v354
      %v405 = vpack.c.b16 %v357, %v356
      %v406 = vpack.c.b16 %v359, %v358
      %v407 = vpack.c.b16 %v361, %v360
      %v408 = vpack.c.b16 %v363, %v362
      %v409 = vpack.c.b16 %v365, %v364
      %v410 = vpack.c.b16 %v367, %v366
      %v411 = vpack.c.b16 %v369, %v368
      %v412 = vpack.c.b16 %v371, %v370
      %v413 = vpack.c.b16 %v373, %v372
      %v414 = vpack.c.b16 %v375, %v374
      %v415 = vpack.c.b16 %v377, %v376
      %v416 = vpack.c.b16 %v379, %v378
      %v417 = vpack.c.b16 %v381, %v380
      %v418 = vpack.c.b16 %v383, %v382
      %v419 = vpack.c.b16 %v385, %v384
      %v420 = vpack.c.b16 %v387, %v386
      %v421 = vpack.c.b16 %v389, %v388
      %v470 = vunpack.c.l.b16 %v239
      %v471 = vunpack.c.l.b16 %v240
      %v472 = vunpack.c.l.b16 %v241
      %v473 = vunpack.c.l.b16 %v242
      %v474 = vunpack.c.l.b16 %v243
      %v475 = vunpack.c.l.b16 %v244
      %v476 = vunpack.c.l.b16 %v245
      %v477 = vunpack.c.l.b16 %v246
      %v478 = vunpack.c.l.b16 %v247
      %v479 = vunpack.c.l.b16 %v248
      %v480 = vunpack.c.l.b16 %v249
      %v481 = vunpack.c.l.b16 %v250
      %v482 = vunpack.c.l.b16 %v251
      %v483 = vunpack.c.l.b16 %v252
      %v484 = vunpack.c.l.b16 %v253
      %v485 = vunpack.c.l.b16 %v254
      %v486 = vpack.c.b16 %v471, %v470
      %v487 = vpack.c.b16 %v473, %v472
      %v488 = vpack.c.b16 %v475, %v474
      %v489 = vpack.c.b16 %v477, %v476
      %v490 = vpack.c.b16 %v479, %v478
      %v491 = vpack.c.b16 %v481, %v480
      %v492 = vpack.c.b16 %v483, %v482
      %v493 = vpack.c.b16 %v485, %v484
      %502 = vmatprep.subr.bf16.mxu0 0
      %503 = vmatpush1.bf16.msra.mxu0 %v486
      %504 = vmatprep.subr.bf16.mxu0 0
      %505 = vmatpush1.bf16.msra.mxu0 %v487
      %506 = vmatprep.subr.bf16.mxu0 0
      %507 = vmatpush1.bf16.msra.mxu0 %v488
      %508 = vmatprep.subr.bf16.mxu0 0
      %509 = vmatpush1.bf16.msra.mxu0 %v489
      %510 = vmatprep.subr.bf16.mxu0 0
      %511 = vmatpush1.bf16.msra.mxu0 %v490
      %512 = vmatprep.subr.bf16.mxu0 0
      %513 = vmatpush1.bf16.msra.mxu0 %v491
      %514 = vmatprep.subr.bf16.mxu0 0
      %515 = vmatpush1.bf16.msra.mxu0 %v492
      %516 = vmatprep.subr.bf16.mxu0 0
      %517 = vmatpush1.bf16.msra.mxu0 %v493
      %518 = vmatprep.subr.bf16.mxu0 0
      %519 = vmatpush1.bf16.msra.mxu0 0
      %520 = vmatprep.subr.bf16.mxu0 0
      %521 = vmatpush1.bf16.msra.mxu0 0
      %522 = vmatprep.subr.bf16.mxu0 0
      %523 = vmatpush1.bf16.msra.mxu0 0
      %524 = vmatprep.subr.bf16.mxu0 0
      %525 = vmatpush1.bf16.msra.mxu0 0
      %526 = vmatprep.subr.bf16.mxu0 0
      %527 = vmatpush1.bf16.msra.mxu0 0
      %528 = vmatprep.subr.bf16.mxu0 0
      %529 = vmatpush1.bf16.msra.mxu0 0
      %530 = vmatprep.subr.bf16.mxu0 0
      %531 = vmatpush1.bf16.msra.mxu0 0
      %532 = vmatprep.subr.bf16.mxu0 0
      %533 = vmatpush1.bf16.msra.mxu0 0
      %534 = vmatprep.mubr.bf16.mxu0 0
      %535 = vmatmul.mubr.bf16.gmra.mrb[0].mxu0 %v390
      %v536 = vpop.f32.mrb[0].mxu0
      %v537 = vadd.f32 %v260, %v536
      %v538 = vpop.f32.mrb[0].mxu0
      %v539 = vpop.f32.mrb[0].mxu0
      %v540 = vadd.f32 %v260, %v539
      %v541 = vpop.f32.mrb[0].mxu0
      %542 = vmatprep.mubr.bf16.mxu0 0
      %543 = vmatmul.mubr.bf16.gmra.mrb[0].mxu0 %v391
      %v544 = vpop.f32.mrb[0].mxu0
      %v545 = vadd.f32 %v260, %v544
      %v546 = vpop.f32.mrb[0].mxu0
      %v547 = vpop.f32.mrb[0].mxu0
      %v548 = vadd.f32 %v260, %v547
      %v549 = vpop.f32.mrb[0].mxu0
      %550 = vmatprep.mubr.bf16.mxu0 0
      %551 = vmatmul.mubr.bf16.gmra.mrb[0].mxu0 %v392
      %v552 = vpop.f32.mrb[0].mxu0
      %v553 = vadd.f32 %v260, %v552
      %v554 = vpop.f32.mrb[0].mxu0
      %v555 = vpop.f32.mrb[0].mxu0
      %v556 = vadd.f32 %v260, %v555
      %v557 = vpop.f32.mrb[0].mxu0
      %558 = vmatprep.mubr.bf16.mxu0 0
      %559 = vmatmul.mubr.bf16.gmra.mrb[0].mxu0 %v393
      %v560 = vpop.f32.mrb[0].mxu0
      %v561 = vadd.f32 %v260, %v560
      %v562 = vpop.f32.mrb[0].mxu0
      %v563 = vpop.f32.mrb[0].mxu0
      %v564 = vadd.f32 %v260, %v563
      %v565 = vpop.f32.mrb[0].mxu0
      %566 = vmatprep.mubr.bf16.mxu0 0
      %567 = vmatmul.mubr.bf16.gmra.mrb[0].mxu0 %v394
      %v568 = vpop.f32.mrb[0].mxu0
      %v569 = vadd.f32 %v260, %v568
      %v570 = vpop.f32.mrb[0].mxu0
      %v571 = vpop.f32.mrb[0].mxu0
      %v572 = vadd.f32 %v260, %v571
      %v573 = vpop.f32.mrb[0].mxu0
      %574 = vmatprep.mubr.bf16.mxu0 0
      %575 = vmatmul.mubr.bf16.gmra.mrb[0].mxu0 %v395
      %v576 = vpop.f32.mrb[0].mxu0
      %v577 = vadd.f32 %v260, %v576
      %v578 = vpop.f32.mrb[0].mxu0
      %v579 = vpop.f32.mrb[0].mxu0
      %v580 = vadd.f32 %v260, %v579
      %v581 = vpop.f32.mrb[0].mxu0
      %582 = vmatprep.mubr.bf16.mxu0 0
      %583 = vmatmul.mubr.bf16.gmra.mrb[0].mxu0 %v396
      %v584 = vpop.f32.mrb[0].mxu0
      %v585 = vadd.f32 %v260, %v584
      %v586 = vpop.f32.mrb[0].mxu0
      %v587 = vpop.f32.mrb[0].mxu0
      %v588 = vadd.f32 %v260, %v587
      %v589 = vpop.f32.mrb[0].mxu0
      %590 = vmatprep.mubr.bf16.mxu0 0
      %591 = vmatmul.mubr.bf16.gmra.mrb[0].mxu0 %v397
      %v592 = vpop.f32.mrb[0].mxu0
      %v593 = vadd.f32 %v260, %v592
      %v594 = vpop.f32.mrb[0].mxu0
      %v595 = vpop.f32.mrb[0].mxu0
      %v596 = vadd.f32 %v260, %v595
      %v597 = vpop.f32.mrb[0].mxu0
      %598 = vmatprep.mubr.bf16.mxu0 0
      %599 = vmatmul.mubr.bf16.gmra.mrb[0].mxu0 %v398
      %v600 = vpop.f32.mrb[0].mxu0
      %v601 = vadd.f32 %v260, %v600
      %v602 = vpop.f32.mrb[0].mxu0
      %v603 = vpop.f32.mrb[0].mxu0
      %v604 = vadd.f32 %v260, %v603
      %v605 = vpop.f32.mrb[0].mxu0
      %606 = vmatprep.mubr.bf16.mxu0 0
      %607 = vmatmul.mubr.bf16.gmra.mrb[0].mxu0 %v399
      %v608 = vpop.f32.mrb[0].mxu0
      %v609 = vadd.f32 %v260, %v608
      %v610 = vpop.f32.mrb[0].mxu0
      %v611 = vpop.f32.mrb[0].mxu0
      %v612 = vadd.f32 %v260, %v611
      %v613 = vpop.f32.mrb[0].mxu0
      %614 = vmatprep.mubr.bf16.mxu0 0
      %615 = vmatmul.mubr.bf16.gmra.mrb[0].mxu0 %v400
      %v616 = vpop.f32.mrb[0].mxu0
      %v617 = vadd.f32 %v260, %v616
      %v618 = vpop.f32.mrb[0].mxu0
      %v619 = vpop.f32.mrb[0].mxu0
      %v620 = vadd.f32 %v260, %v619
      %v621 = vpop.f32.mrb[0].mxu0
      %622 = vmatprep.mubr.bf16.mxu0 0
      %623 = vmatmul.mubr.bf16.gmra.mrb[0].mxu0 %v401
      %v624 = vpop.f32.mrb[0].mxu0
      %v625 = vadd.f32 %v260, %v624
      %v626 = vpop.f32.mrb[0].mxu0
      %v627 = vpop.f32.mrb[0].mxu0
      %v628 = vadd.f32 %v260, %v627
      %v629 = vpop.f32.mrb[0].mxu0
      %630 = vmatprep.mubr.bf16.mxu0 0
      %631 = vmatmul.mubr.bf16.gmra.mrb[0].mxu0 %v402
      %v632 = vpop.f32.mrb[0].mxu0
      %v633 = vadd.f32 %v260, %v632
      %v634 = vpop.f32.mrb[0].mxu0
      %v635 = vpop.f32.mrb[0].mxu0
      %v636 = vadd.f32 %v260, %v635
      %v637 = vpop.f32.mrb[0].mxu0
      %638 = vmatprep.mubr.bf16.mxu0 0
      %639 = vmatmul.mubr.bf16.gmra.mrb[0].mxu0 %v403
      %v640 = vpop.f32.mrb[0].mxu0
      %v641 = vadd.f32 %v260, %v640
      %v642 = vpop.f32.mrb[0].mxu0
      %v643 = vpop.f32.mrb[0].mxu0
      %v644 = vadd.f32 %v260, %v643
      %v645 = vpop.f32.mrb[0].mxu0
      %646 = vmatprep.mubr.bf16.mxu0 0
      %647 = vmatmul.mubr.bf16.gmra.mrb[0].mxu0 %v404
      %v648 = vpop.f32.mrb[0].mxu0
      %v649 = vadd.f32 %v260, %v648
      %v650 = vpop.f32.mrb[0].mxu0
      %v651 = vpop.f32.mrb[0].mxu0
      %v652 = vadd.f32 %v260, %v651
      %v653 = vpop.f32.mrb[0].mxu0
      %654 = vmatprep.mubr.bf16.mxu0 0
      %655 = vmatmul.mubr.bf16.gmra.mrb[0].mxu0 %v405
      %v656 = vpop.f32.mrb[0].mxu0
      %v657 = vadd.f32 %v260, %v656
      %v658 = vpop.f32.mrb[0].mxu0
      %v659 = vpop.f32.mrb[0].mxu0
      %v660 = vadd.f32 %v260, %v659
      %v661 = vpop.f32.mrb[0].mxu0
      %662 = vmatprep.mubr.bf16.mxu0 0
      %663 = vmatmul.mubr.bf16.gmra.mrb[0].mxu0 %v406
      %v664 = vpop.f32.mrb[0].mxu0
      %v665 = vadd.f32 %v260, %v664
      %v666 = vpop.f32.mrb[0].mxu0
      %v667 = vpop.f32.mrb[0].mxu0
      %v668 = vadd.f32 %v260, %v667
      %v669 = vpop.f32.mrb[0].mxu0
      %670 = vmatprep.mubr.bf16.mxu0 0
      %671 = vmatmul.mubr.bf16.gmra.mrb[0].mxu0 %v407
      %v672 = vpop.f32.mrb[0].mxu0
      %v673 = vadd.f32 %v260, %v672
      %v674 = vpop.f32.mrb[0].mxu0
      %v675 = vpop.f32.mrb[0].mxu0
      %v676 = vadd.f32 %v260, %v675
      %v677 = vpop.f32.mrb[0].mxu0
      %678 = vmatprep.mubr.bf16.mxu0 0
      %679 = vmatmul.mubr.bf16.gmra.mrb[0].mxu0 %v408
      %v680 = vpop.f32.mrb[0].mxu0
      %v681 = vadd.f32 %v260, %v680
      %v682 = vpop.f32.mrb[0].mxu0
      %v683 = vpop.f32.mrb[0].mxu0
      %v684 = vadd.f32 %v260, %v683
      %v685 = vpop.f32.mrb[0].mxu0
      %686 = vmatprep.mubr.bf16.mxu0 0
      %687 = vmatmul.mubr.bf16.gmra.mrb[0].mxu0 %v409
      %v688 = vpop.f32.mrb[0].mxu0
      %v689 = vadd.f32 %v260, %v688
      %v690 = vpop.f32.mrb[0].mxu0
      %v691 = vpop.f32.mrb[0].mxu0
      %v692 = vadd.f32 %v260, %v691
      %v693 = vpop.f32.mrb[0].mxu0
      %694 = vmatprep.mubr.bf16.mxu0 0
      %695 = vmatmul.mubr.bf16.gmra.mrb[0].mxu0 %v410
      %v696 = vpop.f32.mrb[0].mxu0
      %v697 = vadd.f32 %v260, %v696
      %v698 = vpop.f32.mrb[0].mxu0
      %v699 = vpop.f32.mrb[0].mxu0
      %v700 = vadd.f32 %v260, %v699
      %v701 = vpop.f32.mrb[0].mxu0
      %702 = vmatprep.mubr.bf16.mxu0 0
      %703 = vmatmul.mubr.bf16.gmra.mrb[0].mxu0 %v411
      %v704 = vpop.f32.mrb[0].mxu0
      %v705 = vadd.f32 %v260, %v704
      %v706 = vpop.f32.mrb[0].mxu0
      %v707 = vpop.f32.mrb[0].mxu0
      %v708 = vadd.f32 %v260, %v707
      %v709 = vpop.f32.mrb[0].mxu0
      %710 = vmatprep.mubr.bf16.mxu0 0
      %711 = vmatmul.mubr.bf16.gmra.mrb[0].mxu0 %v412
      %v712 = vpop.f32.mrb[0].mxu0
      %v713 = vadd.f32 %v260, %v712
      %v714 = vpop.f32.mrb[0].mxu0
      %v715 = vpop.f32.mrb[0].mxu0
      %v716 = vadd.f32 %v260, %v715
      %v717 = vpop.f32.mrb[0].mxu0
      %718 = vmatprep.mubr.bf16.mxu0 0
      %719 = vmatmul.mubr.bf16.gmra.mrb[0].mxu0 %v413
      %v720 = vpop.f32.mrb[0].mxu0
      %v721 = vadd.f32 %v260, %v720
      %v722 = vpop.f32.mrb[0].mxu0
      %v723 = vpop.f32.mrb[0].mxu0
      %v724 = vadd.f32 %v260, %v723
      %v725 = vpop.f32.mrb[0].mxu0
      %726 = vmatprep.mubr.bf16.mxu0 0
      %727 = vmatmul.mubr.bf16.gmra.mrb[0].mxu0 %v414
      %v728 = vpop.f32.mrb[0].mxu0
      %v729 = vadd.f32 %v260, %v728
      %v730 = vpop.f32.mrb[0].mxu0
      %v731 = vpop.f32.mrb[0].mxu0
      %v732 = vadd.f32 %v260, %v731
      %v733 = vpop.f32.mrb[0].mxu0
      %734 = vmatprep.mubr.bf16.mxu0 0
      %735 = vmatmul.mubr.bf16.gmra.mrb[0].mxu0 %v415
      %v736 = vpop.f32.mrb[0].mxu0
      %v737 = vadd.f32 %v260, %v736
      %v738 = vpop.f32.mrb[0].mxu0
      %v739 = vpop.f32.mrb[0].mxu0
      %v740 = vadd.f32 %v260, %v739
      %v741 = vpop.f32.mrb[0].mxu0
      %742 = vmatprep.mubr.bf16.mxu0 0
      %743 = vmatmul.mubr.bf16.gmra.mrb[0].mxu0 %v416
      %v744 = vpop.f32.mrb[0].mxu0
      %v745 = vadd.f32 %v260, %v744
      %v746 = vpop.f32.mrb[0].mxu0
      %v747 = vpop.f32.mrb[0].mxu0
      %v748 = vadd.f32 %v260, %v747
      %v749 = vpop.f32.mrb[0].mxu0
      %750 = vmatprep.mubr.bf16.mxu0 0
      %751 = vmatmul.mubr.bf16.gmra.mrb[0].mxu0 %v417
      %v752 = vpop.f32.mrb[0].mxu0
      %v753 = vadd.f32 %v260, %v752
      %v754 = vpop.f32.mrb[0].mxu0
      %v755 = vpop.f32.mrb[0].mxu0
      %v756 = vadd.f32 %v260, %v755
      %v757 = vpop.f32.mrb[0].mxu0
      %758 = vmatprep.mubr.bf16.mxu0 0
      %759 = vmatmul.mubr.bf16.gmra.mrb[0].mxu0 %v418
      %v760 = vpop.f32.mrb[0].mxu0
      %v761 = vadd.f32 %v260, %v760
      %v762 = vpop.f32.mrb[0].mxu0
      %v763 = vpop.f32.mrb[0].mxu0
      %v764 = vadd.f32 %v260, %v763
      %v765 = vpop.f32.mrb[0].mxu0
      %766 = vmatprep.mubr.bf16.mxu0 0
      %767 = vmatmul.mubr.bf16.gmra.mrb[0].mxu0 %v419
      %v768 = vpop.f32.mrb[0].mxu0
      %v769 = vadd.f32 %v260, %v768
      %v770 = vpop.f32.mrb[0].mxu0
      %v771 = vpop.f32.mrb[0].mxu0
      %v772 = vadd.f32 %v260, %v771
      %v773 = vpop.f32.mrb[0].mxu0
      %774 = vmatprep.mubr.bf16.mxu0 0
      %775 = vmatmul.mubr.bf16.gmra.mrb[0].mxu0 %v420
      %v776 = vpop.f32.mrb[0].mxu0
      %v777 = vadd.f32 %v260, %v776
      %v778 = vpop.f32.mrb[0].mxu0
      %v779 = vpop.f32.mrb[0].mxu0
      %v780 = vadd.f32 %v260, %v779
      %v781 = vpop.f32.mrb[0].mxu0
      %782 = vmatprep.mubr.bf16.mxu0 0
      %783 = vmatmul.mubr.bf16.gmra.mrb[0].mxu0 %v421
      %v784 = vpop.f32.mrb[0].mxu0
      %v785 = vadd.f32 %v260, %v784
      %v786 = vpop.f32.mrb[0].mxu0
      %v787 = vpop.f32.mrb[0].mxu0
      %v788 = vadd.f32 %v260, %v787
      %v789 = vpop.f32.mrb[0].mxu0
      %790 = vdwg.mxu0
      %v791 = vtanh.pop %v537
      %v792 = vtanh.pop %v540
      %v793 = vtanh.pop %v545
      %v794 = vtanh.pop %v548
      %v795 = vtanh.pop %v553
      %v796 = vtanh.pop %v556
      %v797 = vtanh.pop %v561
      %v798 = vtanh.pop %v564
      %v799 = vtanh.pop %v569
      %v800 = vtanh.pop %v572
      %v801 = vtanh.pop %v577
      %v802 = vtanh.pop %v580
      %v803 = vtanh.pop %v585
      %v804 = vtanh.pop %v588
      %v805 = vtanh.pop %v593
      %v806 = vtanh.pop %v596
      %v807 = vtanh.pop %v601
      %v808 = vtanh.pop %v604
      %v809 = vtanh.pop %v609
      %v810 = vtanh.pop %v612
      %v811 = vtanh.pop %v617
      %v812 = vtanh.pop %v620
      %v813 = vtanh.pop %v625
      %v814 = vtanh.pop %v628
      %v815 = vtanh.pop %v633
      %v816 = vtanh.pop %v636
      %v817 = vtanh.pop %v641
      %v818 = vtanh.pop %v644
      %v819 = vtanh.pop %v649
      %v820 = vtanh.pop %v652
      %v821 = vtanh.pop %v657
      %v822 = vtanh.pop %v660
      %v823 = vtanh.pop %v665
      %v824 = vtanh.pop %v668
      %v825 = vtanh.pop %v673
      %v826 = vtanh.pop %v676
      %v827 = vtanh.pop %v681
      %v828 = vtanh.pop %v684
      %v829 = vtanh.pop %v689
      %v830 = vtanh.pop %v692
      %v831 = vtanh.pop %v697
      %v832 = vtanh.pop %v700
      %v833 = vtanh.pop %v705
      %v834 = vtanh.pop %v708
      %v835 = vtanh.pop %v713
      %v836 = vtanh.pop %v716
      %v837 = vtanh.pop %v721
      %v838 = vtanh.pop %v724
      %v839 = vtanh.pop %v729
      %v840 = vtanh.pop %v732
      %v841 = vtanh.pop %v737
      %v842 = vtanh.pop %v740
      %v843 = vtanh.pop %v745
      %v844 = vtanh.pop %v748
      %v845 = vtanh.pop %v753
      %v846 = vtanh.pop %v756
      %v847 = vtanh.pop %v761
      %v848 = vtanh.pop %v764
      %v849 = vtanh.pop %v769
      %v850 = vtanh.pop %v772
      %v851 = vtanh.pop %v777
      %v852 = vtanh.pop %v780
      %v853 = vtanh.pop %v785
      %v854 = vtanh.pop %v788
      %855 = vst [vmem:[%s172] sm:$0xff] %v791
      %856 = vst [vmem:[%s172 + $0x8] sm:$0xff] %v792
      %857 = vst [vmem:[%s172 + $0x10] sm:$0xff] %v793
      %858 = vst [vmem:[%s172 + $0x18] sm:$0xff] %v794
      %859 = vst [vmem:[%s172 + $0x20] sm:$0xff] %v795
      %860 = vst [vmem:[%s172 + $0x28] sm:$0xff] %v796
      %861 = vst [vmem:[%s172 + $0x30] sm:$0xff] %v797
      %862 = vst [vmem:[%s172 + $0x38] sm:$0xff] %v798
      %863 = vst [vmem:[%s172 + $0x40] sm:$0xff] %v799
      %864 = vst [vmem:[%s172 + $0x48] sm:$0xff] %v800
      %865 = vst [vmem:[%s172 + $0x50] sm:$0xff] %v801
      %866 = vst [vmem:[%s172 + $0x58] sm:$0xff] %v802
      %867 = vst [vmem:[%s172 + $0x60] sm:$0xff] %v803
      %868 = vst [vmem:[%s172 + $0x68] sm:$0xff] %v804
      %869 = vst [vmem:[%s172 + $0x70] sm:$0xff] %v805
      %870 = vst [vmem:[%s172 + $0x78] sm:$0xff] %v806
      %871 = vst [vmem:[%s172 + $0x80] sm:$0xff] %v807
      %872 = vst [vmem:[%s172 + $0x88] sm:$0xff] %v808
      %873 = vst [vmem:[%s172 + $0x90] sm:$0xff] %v809
      %874 = vst [vmem:[%s172 + $0x98] sm:$0xff] %v810
      %875 = vst [vmem:[%s172 + $0xa0] sm:$0xff] %v811
      %876 = vst [vmem:[%s172 + $0xa8] sm:$0xff] %v812
      %877 = vst [vmem:[%s172 + $0xb0] sm:$0xff] %v813
      %878 = vst [vmem:[%s172 + $0xb8] sm:$0xff] %v814
      %879 = vst [vmem:[%s172 + $0xc0] sm:$0xff] %v815
      %880 = vst [vmem:[%s172 + $0xc8] sm:$0xff] %v816
      %881 = vst [vmem:[%s172 + $0xd0] sm:$0xff] %v817
      %882 = vst [vmem:[%s172 + $0xd8] sm:$0xff] %v818
      %883 = vst [vmem:[%s172 + $0xe0] sm:$0xff] %v819
      %884 = vst [vmem:[%s172 + $0xe8] sm:$0xff] %v820
      %885 = vst [vmem:[%s172 + $0xf0] sm:$0xff] %v821
      %886 = vst [vmem:[%s172 + $0xf8] sm:$0xff] %v822
      %887 = vst [vmem:[%s172 + $0x100] sm:$0xff] %v823
      %888 = vst [vmem:[%s172 + $0x108] sm:$0xff] %v824
      %889 = vst [vmem:[%s172 + $0x110] sm:$0xff] %v825
      %890 = vst [vmem:[%s172 + $0x118] sm:$0xff] %v826
      %891 = vst [vmem:[%s172 + $0x120] sm:$0xff] %v827
      %892 = vst [vmem:[%s172 + $0x128] sm:$0xff] %v828
      %893 = vst [vmem:[%s172 + $0x130] sm:$0xff] %v829
      %894 = vst [vmem:[%s172 + $0x138] sm:$0xff] %v830
      %895 = vst [vmem:[%s172 + $0x140] sm:$0xff] %v831
      %896 = vst [vmem:[%s172 + $0x148] sm:$0xff] %v832
      %897 = vst [vmem:[%s172 + $0x150] sm:$0xff] %v833
      %898 = vst [vmem:[%s172 + $0x158] sm:$0xff] %v834
      %899 = vst [vmem:[%s172 + $0x160] sm:$0xff] %v835
      %900 = vst [vmem:[%s172 + $0x168] sm:$0xff] %v836
      %901 = vst [vmem:[%s172 + $0x170] sm:$0xff] %v837
      %902 = vst [vmem:[%s172 + $0x178] sm:$0xff] %v838
      %903 = vst [vmem:[%s172 + $0x180] sm:$0xff] %v839
      %904 = vst [vmem:[%s172 + $0x188] sm:$0xff] %v840
      %905 = vst [vmem:[%s172 + $0x190] sm:$0xff] %v841
      %906 = vst [vmem:[%s172 + $0x198] sm:$0xff] %v842
      %907 = vst [vmem:[%s172 + $0x1a0] sm:$0xff] %v843
      %908 = vst [vmem:[%s172 + $0x1a8] sm:$0xff] %v844
      %909 = vst [vmem:[%s172 + $0x1b0] sm:$0xff] %v845
      %910 = vst [vmem:[%s172 + $0x1b8] sm:$0xff] %v846
      %911 = vst [vmem:[%s172 + $0x1c0] sm:$0xff] %v847
      %912 = vst [vmem:[%s172 + $0x1c8] sm:$0xff] %v848
      %913 = vst [vmem:[%s172 + $0x1d0] sm:$0xff] %v849
      %914 = vst [vmem:[%s172 + $0x1d8] sm:$0xff] %v850
      %915 = vst [vmem:[%s172 + $0x1e0] sm:$0xff] %v851
      %916 = vst [vmem:[%s172 + $0x1e8] sm:$0xff] %v852
      %917 = vst [vmem:[%s172 + $0x1f0] sm:$0xff] %v853
      %918 = vst [vmem:[%s172 + $0x1f8] sm:$0xff] %v854
      %s919 = smul.u32 64, %s14
      %p920 = scmp.lt.s32.totalorder %s919, 255
      %s921 = scalar_select %p920, %s919, 255
      %s922 = smul.addr %s921, 8
      %s923 = scalar_lea.vmem %s3, %s922
      // Predicated region
      $region33: #{egan_generator_32_forward.7} parent=31 // pred_check
        %p924 = pneg %p100
      $region34: #{egan_generator_32_forward.7} parent=31 // pred_check_branch
        %926 = sbr.rel (%p924) target = $region36
      $region35: #{egan_generator_32_forward.7} parent=31 // pred_region
        %s927 = smul.u32 64, %s14
      $region36: #{egan_generator_32_forward.7} parent=31 // pred_fallthru
        _
    $region32: #{egan_generator_32_forward.7} parent=5 // pred_fallthru
      _
    %p928 = scmp.le.s32.totalorder 2, %s9
    // Predicated region
    $region37: #{egan_generator_32_forward.7} parent=5 // pred_check
      %p929 = pneg %p928
    $region38: #{egan_generator_32_forward.7} parent=5 // pred_check_branch
      %931 = sbr.rel (%p929) target = $region40
    $region39: #{egan_generator_32_forward.7} parent=5 // pred_region
      %s932 = ssub.s32 %s9, 2
      // Predicated region
      $region41: #{egan_generator_32_forward.7} parent=39 // pred_check
        %p933 = pneg %p106
      $region42: #{egan_generator_32_forward.7} parent=39 // pred_check_branch
        %935 = sbr.rel (%p933) target = $region44
      $region43: #{egan_generator_32_forward.7} parent=39 // pred_region
        %s936 = smul.u32 64, %s15
        %p937 = scmp.lt.s32.totalorder %s936, 255
        %s938 = scalar_select %p937, %s936, 255
        %s939 = smul.addr %s938, 8
        %s940 = scalar_lea.vmem %s3, %s939
      $region44: #{egan_generator_32_forward.7} parent=39 // pred_fallthru
        _
    $region40: #{egan_generator_32_forward.7} parent=5 // pred_fallthru
      _
  $region6: #{egan_generator_32_forward.7} parent=0 // loop_footer
    %s13 = sadd.s32 1, %s9
  $region7: #{egan_generator_32_forward.7} parent=0 // loop_footer_branch
    %8 = sbr.rel target = $region3
  $region8: #{egan_generator_32_forward.7} parent=0 // loop_exit
    _

</llo_original>
